<compile_context>
chip_gen: v6e
topology: v6e:2x2x1
jax: 0.10.0
libtpu: 0.0.40
codegen_flags: <defaults>
</compile_context>

<pallas_src>
import functools

import jax
import jax.numpy as jnp
from jax import lax
from jax.experimental import pallas as pl
from jax.experimental.pallas import tpu as pltpu


def _simple_attn_kernel(x_ref, kw_ref, kb_ref, vw_ref, vb_ref, seg_ref, rep_ref,
                        o_ref, *, headc, n_tokens, use_bf16_matmul):
    # x block: (1, Np, L) packed rows (L = pack*C lanes); params: (1, L);
    # seg/rep: (L, L) constant 0/1 masks (constant block index -> one DMA).
    x = x_ref[0]                               # (Np, L) f32
    seg = seg_ref[...]                         # same-(token-slot, head) mask
    rep = rep_ref[...]                         # same-channel-mod-C replication
    kw = kw_ref[...]                           # (1, L) — broadcasts over rows
    kb = kb_ref[...]
    vw = vw_ref[...]
    vb = vb_ref[...]

    eps = jnp.float32(1e-5)
    inv_n = jnp.float32(1.0 / n_tokens)

    # Per-(token-slot, head) LayerNorm via segment projectors.  Torch
    # semantics: mean over headc, unbiased std, divide by (std + eps).
    # Statistics stay f32 at HIGHEST precision (reviewer correctness note).
    p_mean = seg * jnp.float32(1.0 / headc)
    p_var = seg * jnp.float32(1.0 / (headc - 1))
    mean = jnp.dot(x, p_mean, preferred_element_type=jnp.float32,
                   precision=lax.Precision.HIGHEST)
    diff = x - mean
    var = jnp.dot(diff * diff, p_var, preferred_element_type=jnp.float32,
                  precision=lax.Precision.HIGHEST)
    # Computed once, reused by both LayerNorms.  pl.reciprocal(approx=True)
    # would route this to the EUP slot; kept exact to hold the 1e-4 check.
    inv = pl.reciprocal(jnp.sqrt(var) + eps, approx=False)
    norm = diff * inv

    k = kw * norm + kb                         # (Np, L)
    v = vw * norm + vb                         # (Np, L)

    mm_dtype = jnp.bfloat16 if use_bf16_matmul else jnp.float32

    # K^T V without materializing k.T: contract axis 0 of both operands.
    p = lax.dot_general(k.astype(mm_dtype), v.astype(mm_dtype),
                        (((0,), (0,)), ((), ())),
                        preferred_element_type=jnp.float32)        # (L, L)
    # Kill cross-token-slot / cross-head products, then sum the `pack`
    # diagonal CxC blocks and replicate back onto the token-slot diagonal:
    #   blockdiag(A, A, ..., A) = (rep @ (p * seg) @ rep) * seg, 1/N folded.
    pm = p * seg
    a_big = jnp.dot(rep,
                    jnp.dot(pm, rep, preferred_element_type=jnp.float32,
                            precision=lax.Precision.HIGHEST),
                    preferred_element_type=jnp.float32,
                    precision=lax.Precision.HIGHEST)
    a_big = a_big * (seg * inv_n)

    # out = q @ A + residual(x), q is the raw x tile; store lane-dense.
    o_ref[0] = jnp.dot(x.astype(mm_dtype), a_big.astype(mm_dtype),
                       preferred_element_type=jnp.float32) + x


def simple_attn_pallas(x, kln_w, kln_b, vln_w, vln_b, heads, *,
                       use_bf16_matmul=False):
    """x: (B, N, C) float32. LN params: (heads, 1, headc). Returns (B, N, C)."""
    B, N, C = x.shape
    headc = C // heads
    assert heads * headc == C
    # Unbiased std of a single sample is undefined (reviewer concern #2).
    assert headc >= 2, "headc must be >= 2 for torch-style unbiased std"

    # Lane packing: put `pack` consecutive tokens into one 128-lane row so
    # every vreg, VPU op and store is lane-dense and the big MXU contractions
    # are pack*C wide.  Falls back to pack=1 when shapes don't allow it.
    if C < 128 and 128 % C == 0 and N % (128 // C) == 0:
        pack = 128 // C
    else:
        pack = 1
    lanes = C * pack
    n_packed = N // pack

    x_p = x.reshape(B, n_packed, lanes)        # free row-major reinterpretation

    def expand(p):                             # (heads, 1, headc) -> (1, lanes)
        return jnp.tile(p.reshape(1, C), (1, pack))

    kw, kb, vw, vb = expand(kln_w), expand(kln_b), expand(vln_w), expand(vln_b)

    # Constant masks built once on the host (not regenerated per grid step).
    seg_id = jnp.arange(lanes, dtype=jnp.int32) // headc
    seg = (seg_id[:, None] == seg_id[None, :]).astype(jnp.float32)   # (L, L)
    rep_id = jnp.arange(lanes, dtype=jnp.int32) % C
    rep = (rep_id[:, None] == rep_id[None, :]).astype(jnp.float32)   # (L, L)

    x_spec = pl.BlockSpec((1, n_packed, lanes), lambda b: (b, 0, 0))
    # Constant block index => fetched into VMEM once, not once per grid step.
    vec_spec = pl.BlockSpec((1, lanes), lambda b: (0, 0))
    mat_spec = pl.BlockSpec((lanes, lanes), lambda b: (0, 0))

    kernel = functools.partial(_simple_attn_kernel, headc=headc, n_tokens=N,
                               use_bf16_matmul=use_bf16_matmul)

    out_p = pl.pallas_call(
        kernel,
        out_shape=jax.ShapeDtypeStruct((B, n_packed, lanes), jnp.float32),
        grid_spec=pltpu.PrefetchScalarGridSpec(
            num_scalar_prefetch=0,
            grid=(B,),
            in_specs=[x_spec, vec_spec, vec_spec, vec_spec, vec_spec,
                      mat_spec, mat_spec],
            out_specs=x_spec,
        ),
        compiler_params=pltpu.CompilerParams(
            dimension_semantics=("parallel",),
            # Explicit budget so tile choices carry to v7x (64 MiB physical,
            # 32 MiB default scoped) as well as v5e/v6e (128 MiB).
            vmem_limit_bytes=32 * 1024 * 1024,
        ),
    )(x_p, kw, kb, vw, vb, seg, rep)

    return out_p.reshape(B, N, C)


def simple_attn_ref(x, kln_w, kln_b, vln_w, vln_b, heads):
    """Pure-JAX reference mirroring the PyTorch forward exactly."""
    B, N, C = x.shape
    headc = C // heads
    qkv = x.reshape(B, N, heads, headc).transpose(0, 2, 1, 3)  # (B, H, N, D)

    def ln(t, w, b, eps=1e-5):
        mean = jnp.mean(t, axis=-1, keepdims=True)
        diff = t - mean
        var = jnp.sum(diff * diff, axis=-1, keepdims=True) / (t.shape[-1] - 1)
        std = jnp.sqrt(var)
        return w * (diff / (std + eps)) + b

    q = qkv
    k = ln(qkv, kln_w, kln_b)
    v = ln(qkv, vln_w, vln_b)
    a = jnp.einsum("bhnd,bhne->bhde", k, v) / N
    out = jnp.einsum("bhnd,bhde->bhne", q, a)
    out = out.transpose(0, 2, 1, 3).reshape(B, N, C)
    return out + x


if __name__ == "__main__":
    # Small shapes consistent with the module: midc=32, heads=4, headc=8
    B, N, midc, heads = 2, 8, 32, 4
    headc = midc // heads

    key = jax.random.PRNGKey(0)
    kx, kkw, kkb, kvw, kvb = jax.random.split(key, 5)

    x = jax.random.normal(kx, (B, N, midc), dtype=jnp.float32)

    # Module initializes LN weight=ones, bias=zeros; perturb so the affine
    # path is actually exercised.
    kln_w = jnp.ones((heads, 1, headc), jnp.float32) + 0.1 * jax.random.normal(
        kkw, (heads, 1, headc), dtype=jnp.float32)
    kln_b = 0.1 * jax.random.normal(kkb, (heads, 1, headc), dtype=jnp.float32)
    vln_w = jnp.ones((heads, 1, headc), jnp.float32) + 0.1 * jax.random.normal(
        kvw, (heads, 1, headc), dtype=jnp.float32)
    vln_b = 0.1 * jax.random.normal(kvb, (heads, 1, headc), dtype=jnp.float32)

    out = simple_attn_pallas(x, kln_w, kln_b, vln_w, vln_b, heads)
    out = jax.block_until_ready(out)

    ref = simple_attn_ref(x, kln_w, kln_b, vln_w, vln_b, heads)
    assert out.shape == (B, N, midc)
    assert jnp.allclose(out, ref, atol=1e-4, rtol=1e-4), "mismatch vs reference"

    print("KERNEL_OK")
</pallas_src>

<mosaic_0001>
module attributes {stable_mosaic.version = 11 : i64} {
  func.func @_simple_attn_kernel(%arg0: i32, %arg1: memref<1x2x128xf32, #tpu.memory_space<vmem>>, %arg2: memref<1x128xf32, #tpu.memory_space<vmem>>, %arg3: memref<1x128xf32, #tpu.memory_space<vmem>>, %arg4: memref<1x128xf32, #tpu.memory_space<vmem>>, %arg5: memref<1x128xf32, #tpu.memory_space<vmem>>, %arg6: memref<128x128xf32, #tpu.memory_space<vmem>>, %arg7: memref<128x128xf32, #tpu.memory_space<vmem>>, %arg8: memref<1x2x128xf32, #tpu.memory_space<vmem>>) attributes {dimension_semantics = [#tpu.dimension_semantics<parallel>], iteration_bounds = array<i64: 2>, scalar_prefetch = 0 : i64, scratch_operands = 0 : i64, tpu.core_type = #tpu.core_type<tc>, window_params = [{transform_indices = @transform_0, window_bounds = array<i64: 1, 2, 128>}, {pipeline_mode = #tpu.pipeline_mode<synchronous>, transform_indices = @transform_1, window_bounds = array<i64: 1, 128>}, {pipeline_mode = #tpu.pipeline_mode<synchronous>, transform_indices = @transform_2, window_bounds = array<i64: 1, 128>}, {pipeline_mode = #tpu.pipeline_mode<synchronous>, transform_indices = @transform_3, window_bounds = array<i64: 1, 128>}, {pipeline_mode = #tpu.pipeline_mode<synchronous>, transform_indices = @transform_4, window_bounds = array<i64: 1, 128>}, {pipeline_mode = #tpu.pipeline_mode<synchronous>, transform_indices = @transform_5, window_bounds = array<i64: 128, 128>}, {pipeline_mode = #tpu.pipeline_mode<synchronous>, transform_indices = @transform_6, window_bounds = array<i64: 128, 128>}, {transform_indices = @transform_7, window_bounds = array<i64: 1, 2, 128>}]} {
    %c0 = arith.constant 0 : index
    %c0_0 = arith.constant 0 : index
    %c0_1 = arith.constant 0 : index
    %0 = vector.load %arg1[%c0, %c0_0, %c0_1] : memref<1x2x128xf32, #tpu.memory_space<vmem>>, vector<1x2x128xf32>
    %1 = vector.shape_cast %0 : vector<1x2x128xf32> to vector<2x128xf32>
    %c0_2 = arith.constant 0 : index
    %c0_3 = arith.constant 0 : index
    %2 = vector.load %arg6[%c0_2, %c0_3] : memref<128x128xf32, #tpu.memory_space<vmem>>, vector<128x128xf32>
    %c0_4 = arith.constant 0 : index
    %c0_5 = arith.constant 0 : index
    %3 = vector.load %arg7[%c0_4, %c0_5] : memref<128x128xf32, #tpu.memory_space<vmem>>, vector<128x128xf32>
    %c0_6 = arith.constant 0 : index
    %c0_7 = arith.constant 0 : index
    %4 = vector.load %arg2[%c0_6, %c0_7] : memref<1x128xf32, #tpu.memory_space<vmem>>, vector<1x128xf32>
    %c0_8 = arith.constant 0 : index
    %c0_9 = arith.constant 0 : index
    %5 = vector.load %arg3[%c0_8, %c0_9] : memref<1x128xf32, #tpu.memory_space<vmem>>, vector<1x128xf32>
    %c0_10 = arith.constant 0 : index
    %c0_11 = arith.constant 0 : index
    %6 = vector.load %arg4[%c0_10, %c0_11] : memref<1x128xf32, #tpu.memory_space<vmem>>, vector<1x128xf32>
    %c0_12 = arith.constant 0 : index
    %c0_13 = arith.constant 0 : index
    %7 = vector.load %arg5[%c0_12, %c0_13] : memref<1x128xf32, #tpu.memory_space<vmem>>, vector<1x128xf32>
    %cst = arith.constant 1.250000e-01 : f32
    %8 = vector.broadcast %cst : f32 to vector<128x128xf32>
    %9 = arith.mulf %2, %8 : vector<128x128xf32>
    %cst_14 = arith.constant 0.142857149 : f32
    %10 = vector.broadcast %cst_14 : f32 to vector<128x128xf32>
    %11 = arith.mulf %2, %10 : vector<128x128xf32>
    %cst_15 = arith.constant dense<0.000000e+00> : vector<2x128xf32>
    %12 = tpu.matmul %1, %9, %cst_15 {dimension_numbers = #tpu.dot_dimension_numbers<[1], [0], [0], [1], [0, 0, 1, 1], [], []>, precision = #tpu.contract_precision<fp32>} : vector<2x128xf32>, vector<128x128xf32>, vector<2x128xf32> -> vector<2x128xf32>
    %13 = arith.subf %1, %12 : vector<2x128xf32>
    %14 = arith.mulf %13, %13 : vector<2x128xf32>
    %cst_16 = arith.constant dense<0.000000e+00> : vector<2x128xf32>
    %15 = tpu.matmul %14, %11, %cst_16 {dimension_numbers = #tpu.dot_dimension_numbers<[1], [0], [0], [1], [0, 0, 1, 1], [], []>, precision = #tpu.contract_precision<fp32>} : vector<2x128xf32>, vector<128x128xf32>, vector<2x128xf32> -> vector<2x128xf32>
    %16 = math.sqrt %15 : vector<2x128xf32>
    %cst_17 = arith.constant 9.99999974E-6 : f32
    %17 = vector.broadcast %cst_17 : f32 to vector<2x128xf32>
    %18 = arith.addf %16, %17 : vector<2x128xf32>
    %19 = tpu.reciprocal %18 : vector<2x128xf32> -> vector<2x128xf32>
    %20 = arith.mulf %13, %19 : vector<2x128xf32>
    %21 = vector.broadcast %4 : vector<1x128xf32> to vector<2x128xf32>
    %22 = arith.mulf %21, %20 : vector<2x128xf32>
    %23 = vector.broadcast %5 : vector<1x128xf32> to vector<2x128xf32>
    %24 = arith.addf %22, %23 : vector<2x128xf32>
    %25 = vector.broadcast %6 : vector<1x128xf32> to vector<2x128xf32>
    %26 = arith.mulf %25, %20 : vector<2x128xf32>
    %27 = vector.broadcast %7 : vector<1x128xf32> to vector<2x128xf32>
    %28 = arith.addf %26, %27 : vector<2x128xf32>
    %cst_18 = arith.constant dense<0.000000e+00> : vector<128x128xf32>
    %29 = tpu.matmul %24, %28, %cst_18 {dimension_numbers = #tpu.dot_dimension_numbers<[0], [0], [1], [1], [0, 1, 1, 1], [], []>} : vector<2x128xf32>, vector<2x128xf32>, vector<128x128xf32> -> vector<128x128xf32>
    %30 = arith.mulf %29, %2 : vector<128x128xf32>
    %cst_19 = arith.constant dense<0.000000e+00> : vector<128x128xf32>
    %31 = tpu.matmul %30, %3, %cst_19 {dimension_numbers = #tpu.dot_dimension_numbers<[1], [0], [0], [1], [0, 0, 1, 1], [], []>, precision = #tpu.contract_precision<fp32>} : vector<128x128xf32>, vector<128x128xf32>, vector<128x128xf32> -> vector<128x128xf32>
    %cst_20 = arith.constant dense<0.000000e+00> : vector<128x128xf32>
    %32 = tpu.matmul %3, %31, %cst_20 {dimension_numbers = #tpu.dot_dimension_numbers<[1], [0], [0], [1], [0, 0, 1, 1], [], []>, precision = #tpu.contract_precision<fp32>} : vector<128x128xf32>, vector<128x128xf32>, vector<128x128xf32> -> vector<128x128xf32>
    %cst_21 = arith.constant 1.250000e-01 : f32
    %33 = vector.broadcast %cst_21 : f32 to vector<128x128xf32>
    %34 = arith.mulf %2, %33 : vector<128x128xf32>
    %35 = arith.mulf %32, %34 : vector<128x128xf32>
    %cst_22 = arith.constant dense<0.000000e+00> : vector<2x128xf32>
    %36 = tpu.matmul %1, %35, %cst_22 {dimension_numbers = #tpu.dot_dimension_numbers<[1], [0], [0], [1], [0, 0, 1, 1], [], []>} : vector<2x128xf32>, vector<128x128xf32>, vector<2x128xf32> -> vector<2x128xf32>
    %37 = arith.addf %36, %1 : vector<2x128xf32>
    %c0_23 = arith.constant 0 : index
    %c0_24 = arith.constant 0 : index
    %c0_25 = arith.constant 0 : index
    %38 = vector.load %arg8[%c0_23, %c0_24, %c0_25] : memref<1x2x128xf32, #tpu.memory_space<vmem>>, vector<1x2x128xf32>
    %39 = vector.shape_cast %38 : vector<1x2x128xf32> to vector<2x128xf32>
    %40 = vector.shape_cast %37 : vector<2x128xf32> to vector<1x2x128xf32>
    tpu.vector_store %arg8[%c0_23, %c0_24, %c0_25], %40 {strides = array<i32>} : memref<1x2x128xf32, #tpu.memory_space<vmem>>, vector<1x2x128xf32>,
    return
  }
  func.func @transform_0(%arg0: i32) -> (i32, i32, i32) {
    %c0_i32 = arith.constant 0 : i32
    %c0_i32_0 = arith.constant 0 : i32
    %c0_i32_1 = arith.constant 0 : i32
    return %arg0, %c0_i32, %c0_i32_0 : i32, i32, i32
  }
  func.func @transform_1(%arg0: i32) -> (i32, i32) {
    %c0_i32 = arith.constant 0 : i32
    %c0_i32_0 = arith.constant 0 : i32
    %c0_i32_1 = arith.constant 0 : i32
    return %c0_i32, %c0_i32_0 : i32, i32
  }
  func.func @transform_2(%arg0: i32) -> (i32, i32) {
    %c0_i32 = arith.constant 0 : i32
    %c0_i32_0 = arith.constant 0 : i32
    %c0_i32_1 = arith.constant 0 : i32
    return %c0_i32, %c0_i32_0 : i32, i32
  }
  func.func @transform_3(%arg0: i32) -> (i32, i32) {
    %c0_i32 = arith.constant 0 : i32
    %c0_i32_0 = arith.constant 0 : i32
    %c0_i32_1 = arith.constant 0 : i32
    return %c0_i32, %c0_i32_0 : i32, i32
  }
  func.func @transform_4(%arg0: i32) -> (i32, i32) {
    %c0_i32 = arith.constant 0 : i32
    %c0_i32_0 = arith.constant 0 : i32
    %c0_i32_1 = arith.constant 0 : i32
    return %c0_i32, %c0_i32_0 : i32, i32
  }
  func.func @transform_5(%arg0: i32) -> (i32, i32) {
    %c0_i32 = arith.constant 0 : i32
    %c0_i32_0 = arith.constant 0 : i32
    %c0_i32_1 = arith.constant 0 : i32
    return %c0_i32, %c0_i32_0 : i32, i32
  }
  func.func @transform_6(%arg0: i32) -> (i32, i32) {
    %c0_i32 = arith.constant 0 : i32
    %c0_i32_0 = arith.constant 0 : i32
    %c0_i32_1 = arith.constant 0 : i32
    return %c0_i32, %c0_i32_0 : i32, i32
  }
  func.func @transform_7(%arg0: i32) -> (i32, i32, i32) {
    %c0_i32 = arith.constant 0 : i32
    %c0_i32_0 = arith.constant 0 : i32
    %c0_i32_1 = arith.constant 0 : i32
    return %arg0, %c0_i32, %c0_i32_0 : i32, i32, i32
  }
}

</mosaic_0001>

<llo_original>
// kernel: tpu_custom_call.1
$region0: #{tpu_custom_call.1}
  #allocation0 [shape = 'u32[]', space=smem, size = 0x4, offset = 0x4, fixed_abs, tag = 'smem constant byte address 0x4 - core index']
  #allocation1 [shape = 'u32[144,128]{1,0:T(1,128)}', space=vmem, size = 0x12000, scoped, tag = 'internal scratch']
  %s0 = inlined_call_operand.hbm [shape: f32[2,2,128], index: 0, kind: input, shape index: {}]
  %s1 = inlined_call_operand.vmem [shape: f32[1,128], index: 1, kind: input, shape index: {}]
  %s2 = inlined_call_operand.vmem [shape: f32[1,128], index: 2, kind: input, shape index: {}]
  %s3 = inlined_call_operand.vmem [shape: f32[1,128], index: 3, kind: input, shape index: {}]
  %s4 = inlined_call_operand.vmem [shape: f32[1,128], index: 4, kind: input, shape index: {}]
  %s5 = inlined_call_operand.hbm [shape: f32[128,128], index: 5, kind: input, shape index: {}]
  %s6 = inlined_call_operand.hbm [shape: f32[128,128], index: 6, kind: input, shape index: {}]
  %s7 = inlined_call_operand.hbm [shape: f32[2,2,128], index: 7, kind: output, shape index: {}]
  %s8 = sld [smem:[#allocation0]]
  $region73: #{tpu_custom_call.1} parent=0
    _
  %s10 = ssub.s32 1, %s8
  %s11 = scalar_select 0, %s10, %s8
  $region1: #{tpu_custom_call.1} parent=0
    #allocation2 [shape = 'u8[2048]{0}', space=vmem, size = 0x800, scoped, tag = 'input window, operand 0']
    #allocation3 [shape = 's32[2]{0}', space=sflag, size = 0x8, scoped, tag = 'scoped memory for tpu_custom_call.1']
    #allocation4 [shape = 's32[2]{0}', space=sflag, size = 0x8, scoped, tag = 'scoped memory for tpu_custom_call.1']
    #allocation5 [shape = 'u8[65536]{0}', space=vmem, size = 0x10000, scoped, tag = 'input window, operand 5, single buffered']
    #allocation6 [shape = 's32[1]{0}', space=sflag, size = 0x4, scoped, tag = 'scoped memory for tpu_custom_call.1']
    #allocation7 [shape = 'u8[65536]{0}', space=vmem, size = 0x10000, scoped, tag = 'input window, operand 6, single buffered']
    #allocation8 [shape = 'u8[2048]{0}', space=vmem, size = 0x800, scoped, tag = 'output window, operand 0']
    %12 = vsyncpa [#allocation3], 0
    %s13 = scalar_lea.sflag [#allocation3], 1
    %14 = vsyncpa %s13, 0
    %15 = vsyncpa [#allocation6], 0
    %16 = vsyncpa [#allocation4], 0
    %s17 = scalar_lea.sflag [#allocation4], 1
    %18 = vsyncpa %s17, 0
    loop: start=0, step=1, limit=4
    $region2: #{tpu_custom_call.1} parent=1 // loop_pre_header
      _
    $region3: #{tpu_custom_call.1} parent=1 // loop_header
      %s20 = sphi 0, %s24
      %p21 = scmp.ge.s32.totalorder %s20, 4
      %s30 = sphi 0, %s32
      %s33 = sphi 0, %s30
      %s34 = sphi 0, %s33
      %s50 = sphi 0, %s34
      %s54 = sphi 0, %s54
      %s56 = sphi 0, %s54
      %s57 = sphi 0, %s56
      %s71 = sphi 0, %s57
      %s75 = sphi 0, %s75
      %s77 = sphi 0, %s75
      %s78 = sphi 0, %s77
      %s92 = sphi 0, %s78
      %s96 = sphi 0, %s96
      %s98 = sphi 0, %s96
      %s99 = sphi 0, %s98
      %s113 = sphi 0, %s99
      %s117 = sphi 0, %s117
      %s119 = sphi 0, %s117
      %s120 = sphi 0, %s119
      %s134 = sphi 0, %s120
      %s138 = sphi 0, %s138
      %s140 = sphi 0, %s138
      %s141 = sphi 0, %s140
      %s155 = sphi 0, %s141
      %s159 = sphi 0, %s159
      %s161 = sphi 0, %s159
      %s162 = sphi 0, %s161
      %s176 = sphi 0, %s162
      %s182 = sphi 0, %s184
      %s185 = sphi 0, %s182
      %s186 = sphi 0, %s185
      %s202 = sphi 0, %s186
    $region4: #{tpu_custom_call.1} parent=1 // loop_header_branch
      %23 = sbr.rel (%p21) target = $region8
    $region5: #{tpu_custom_call.1} parent=1 // loop_body
      %s25 = ssub.s32 %s20, 1
      %s26 = ssub.s32 %s20, 2
      %s27 = sadd.s32 %s20, 1
      %s28 = ssub.s32 %s20, %s27
      %p29 = scmp.eq.s32.totalorder %s28, 0
      %s31 = sadd.s32 %s30, 1
      %s32 = scalar_select %p29, %s30, %s31
      %p35 = pneg %p29
      %p36 = scmp.eq.s32.totalorder %s20, 1
      %p37 = por %p35, %p36
      %p38 = scmp.ne.s32.totalorder %s30, %s33
      %p39 = scmp.eq.s32.totalorder %s20, 0
      %p40 = por %p38, %p39
      %p41 = scmp.ne.s32.totalorder %s30, %s33
      %p42 = scmp.eq.s32.totalorder %s25, 1
      %p43 = por %p41, %p42
      %p44 = scmp.ne.s32.totalorder %s33, %s34
      %p45 = scmp.eq.s32.totalorder %s25, 0
      %p46 = por %p44, %p45
      %p47 = scmp.ne.s32.totalorder %s33, %s34
      %p48 = scmp.eq.s32.totalorder %s26, 1
      %p49 = por %p47, %p48
      %p51 = scmp.ne.s32.totalorder %s34, %s50
      %p52 = scmp.eq.s32.totalorder %s26, 0
      %p53 = por %p51, %p52
      %s55 = sadd.s32 %s54, 1
      %p58 = scmp.eq.s32.totalorder %s20, 1
      %p59 = scmp.ne.s32.totalorder %s54, %s56
      %p60 = scmp.eq.s32.totalorder %s20, 0
      %p61 = por %p59, %p60
      %p62 = scmp.ne.s32.totalorder %s54, %s56
      %p63 = scmp.eq.s32.totalorder %s25, 1
      %p64 = por %p62, %p63
      %p65 = scmp.ne.s32.totalorder %s56, %s57
      %p66 = scmp.eq.s32.totalorder %s25, 0
      %p67 = por %p65, %p66
      %p68 = scmp.ne.s32.totalorder %s56, %s57
      %p69 = scmp.eq.s32.totalorder %s26, 1
      %p70 = por %p68, %p69
      %p72 = scmp.ne.s32.totalorder %s57, %s71
      %p73 = scmp.eq.s32.totalorder %s26, 0
      %p74 = por %p72, %p73
      %s76 = sadd.s32 %s75, 1
      %p79 = scmp.eq.s32.totalorder %s20, 1
      %p80 = scmp.ne.s32.totalorder %s75, %s77
      %p81 = scmp.eq.s32.totalorder %s20, 0
      %p82 = por %p80, %p81
      %p83 = scmp.ne.s32.totalorder %s75, %s77
      %p84 = scmp.eq.s32.totalorder %s25, 1
      %p85 = por %p83, %p84
      %p86 = scmp.ne.s32.totalorder %s77, %s78
      %p87 = scmp.eq.s32.totalorder %s25, 0
      %p88 = por %p86, %p87
      %p89 = scmp.ne.s32.totalorder %s77, %s78
      %p90 = scmp.eq.s32.totalorder %s26, 1
      %p91 = por %p89, %p90
      %p93 = scmp.ne.s32.totalorder %s78, %s92
      %p94 = scmp.eq.s32.totalorder %s26, 0
      %p95 = por %p93, %p94
      %s97 = sadd.s32 %s96, 1
      %p100 = scmp.eq.s32.totalorder %s20, 1
      %p101 = scmp.ne.s32.totalorder %s96, %s98
      %p102 = scmp.eq.s32.totalorder %s20, 0
      %p103 = por %p101, %p102
      %p104 = scmp.ne.s32.totalorder %s96, %s98
      %p105 = scmp.eq.s32.totalorder %s25, 1
      %p106 = por %p104, %p105
      %p107 = scmp.ne.s32.totalorder %s98, %s99
      %p108 = scmp.eq.s32.totalorder %s25, 0
      %p109 = por %p107, %p108
      %p110 = scmp.ne.s32.totalorder %s98, %s99
      %p111 = scmp.eq.s32.totalorder %s26, 1
      %p112 = por %p110, %p111
      %p114 = scmp.ne.s32.totalorder %s99, %s113
      %p115 = scmp.eq.s32.totalorder %s26, 0
      %p116 = por %p114, %p115
      %s118 = sadd.s32 %s117, 1
      %p121 = scmp.eq.s32.totalorder %s20, 1
      %p122 = scmp.ne.s32.totalorder %s117, %s119
      %p123 = scmp.eq.s32.totalorder %s20, 0
      %p124 = por %p122, %p123
      %p125 = scmp.ne.s32.totalorder %s117, %s119
      %p126 = scmp.eq.s32.totalorder %s25, 1
      %p127 = por %p125, %p126
      %p128 = scmp.ne.s32.totalorder %s119, %s120
      %p129 = scmp.eq.s32.totalorder %s25, 0
      %p130 = por %p128, %p129
      %p131 = scmp.ne.s32.totalorder %s119, %s120
      %p132 = scmp.eq.s32.totalorder %s26, 1
      %p133 = por %p131, %p132
      %p135 = scmp.ne.s32.totalorder %s120, %s134
      %p136 = scmp.eq.s32.totalorder %s26, 0
      %p137 = por %p135, %p136
      %s139 = sadd.s32 %s138, 1
      %p142 = scmp.eq.s32.totalorder %s20, 1
      %p143 = scmp.ne.s32.totalorder %s138, %s140
      %p144 = scmp.eq.s32.totalorder %s20, 0
      %p145 = por %p143, %p144
      %p146 = scmp.ne.s32.totalorder %s138, %s140
      %p147 = scmp.eq.s32.totalorder %s25, 1
      %p148 = por %p146, %p147
      %p149 = scmp.ne.s32.totalorder %s140, %s141
      %p150 = scmp.eq.s32.totalorder %s25, 0
      %p151 = por %p149, %p150
      %p152 = scmp.ne.s32.totalorder %s140, %s141
      %p153 = scmp.eq.s32.totalorder %s26, 1
      %p154 = por %p152, %p153
      %p156 = scmp.ne.s32.totalorder %s141, %s155
      %p157 = scmp.eq.s32.totalorder %s26, 0
      %p158 = por %p156, %p157
      %s160 = sadd.s32 %s159, 1
      %p163 = scmp.eq.s32.totalorder %s20, 1
      %p164 = scmp.ne.s32.totalorder %s159, %s161
      %p165 = scmp.eq.s32.totalorder %s20, 0
      %p166 = por %p164, %p165
      %p167 = scmp.ne.s32.totalorder %s159, %s161
      %p168 = scmp.eq.s32.totalorder %s25, 1
      %p169 = por %p167, %p168
      %p170 = scmp.ne.s32.totalorder %s161, %s162
      %p171 = scmp.eq.s32.totalorder %s25, 0
      %p172 = por %p170, %p171
      %p173 = scmp.ne.s32.totalorder %s161, %s162
      %p174 = scmp.eq.s32.totalorder %s26, 1
      %p175 = por %p173, %p174
      %p177 = scmp.ne.s32.totalorder %s162, %s176
      %p178 = scmp.eq.s32.totalorder %s26, 0
      %p179 = por %p177, %p178
      %s180 = ssub.s32 %s20, %s27
      %p181 = scmp.eq.s32.totalorder %s180, 0
      %s183 = sadd.s32 %s182, 1
      %s184 = scalar_select %p181, %s182, %s183
      %p187 = pneg %p181
      %p188 = scmp.eq.s32.totalorder %s20, 1
      %p189 = por %p187, %p188
      %p190 = scmp.ne.s32.totalorder %s182, %s185
      %p191 = scmp.eq.s32.totalorder %s20, 0
      %p192 = por %p190, %p191
      %p193 = scmp.ne.s32.totalorder %s182, %s185
      %p194 = scmp.eq.s32.totalorder %s25, 1
      %p195 = por %p193, %p194
      %p196 = scmp.ne.s32.totalorder %s185, %s186
      %p197 = scmp.eq.s32.totalorder %s25, 0
      %p198 = por %p196, %p197
      %p199 = scmp.ne.s32.totalorder %s185, %s186
      %p200 = scmp.eq.s32.totalorder %s26, 1
      %p201 = por %p199, %p200
      %p203 = scmp.ne.s32.totalorder %s186, %s202
      %p204 = scmp.eq.s32.totalorder %s26, 0
      %p205 = por %p203, %p204
      %p206 = scmp.le.s32.totalorder 1, %s20
      %p207 = scmp.lt.s32.totalorder %s20, 3
      %p208 = pnand %p206, %p207
      %p209 = pneg %p208
      // Predicated region
      $region9: #{tpu_custom_call.1} parent=5 // pred_check
        _
      $region10: #{tpu_custom_call.1} parent=5 // pred_check_branch
        %211 = sbr.rel (%p208) target = $region12
      $region11: #{tpu_custom_call.1} parent=5 // pred_region
        %s212 = ssub.s32 %s20, 1
        // Predicated region
        $region13: #{tpu_custom_call.1} parent=11 // pred_check
          %p213 = pneg %p67
        $region14: #{tpu_custom_call.1} parent=11 // pred_check_branch
          %215 = sbr.rel (%p213) target = $region16
        $region15: #{tpu_custom_call.1} parent=11 // pred_region
          _
        $region16: #{tpu_custom_call.1} parent=11 // pred_fallthru
          _
        // Predicated region
        $region17: #{tpu_custom_call.1} parent=11 // pred_check
          %p216 = pneg %p88
        $region18: #{tpu_custom_call.1} parent=11 // pred_check_branch
          %218 = sbr.rel (%p216) target = $region20
        $region19: #{tpu_custom_call.1} parent=11 // pred_region
          _
        $region20: #{tpu_custom_call.1} parent=11 // pred_fallthru
          _
        // Predicated region
        $region21: #{tpu_custom_call.1} parent=11 // pred_check
          %p219 = pneg %p109
        $region22: #{tpu_custom_call.1} parent=11 // pred_check_branch
          %221 = sbr.rel (%p219) target = $region24
        $region23: #{tpu_custom_call.1} parent=11 // pred_region
          _
        $region24: #{tpu_custom_call.1} parent=11 // pred_fallthru
          _
        // Predicated region
        $region25: #{tpu_custom_call.1} parent=11 // pred_check
          %p222 = pneg %p130
        $region26: #{tpu_custom_call.1} parent=11 // pred_check_branch
          %224 = sbr.rel (%p222) target = $region28
        $region27: #{tpu_custom_call.1} parent=11 // pred_region
          _
        $region28: #{tpu_custom_call.1} parent=11 // pred_fallthru
          _
        // Predicated region
        $region29: #{tpu_custom_call.1} parent=11 // pred_check
          %p225 = pneg %p151
        $region30: #{tpu_custom_call.1} parent=11 // pred_check_branch
          %227 = sbr.rel (%p225) target = $region32
        $region31: #{tpu_custom_call.1} parent=11 // pred_region
          %s229 = ssub.s32 2048, 2048
          %230 = vsyncadd [#allocation6], %s229
          %s231 = sshll.u32 [#allocation5], 4
          %s232 = int_to_ptr.vmem [resolvable:$true] %s231
          %237 = dma.hbm_to_vmem [thread:$0]  %s5, 2048, %s232, [#allocation6], 128, 128, 8
        $region32: #{tpu_custom_call.1} parent=11 // pred_fallthru
          _
        // Predicated region
        $region33: #{tpu_custom_call.1} parent=11 // pred_check
          %p238 = pneg %p172
        $region34: #{tpu_custom_call.1} parent=11 // pred_check_branch
          %240 = sbr.rel (%p238) target = $region36
        $region35: #{tpu_custom_call.1} parent=11 // pred_region
          %s242 = ssub.s32 2048, 2048
          %243 = vsyncadd [#allocation6], %s242
          %s244 = sshll.u32 [#allocation7], 4
          %s245 = int_to_ptr.vmem [resolvable:$true] %s244
          %250 = dma.hbm_to_vmem [thread:$0]  %s6, 2048, %s245, [#allocation6], 128, 128, 8
        $region36: #{tpu_custom_call.1} parent=11 // pred_fallthru
          _
      $region12: #{tpu_custom_call.1} parent=5 // pred_fallthru
        _
      %p251 = scmp.lt.s32.totalorder %s20, 2
      // Predicated region
      $region37: #{tpu_custom_call.1} parent=5 // pred_check
        %p252 = pneg %p251
      $region38: #{tpu_custom_call.1} parent=5 // pred_check_branch
        %254 = sbr.rel (%p252) target = $region40
      $region39: #{tpu_custom_call.1} parent=5 // pred_region
        // Predicated region
        $region41: #{tpu_custom_call.1} parent=39 // pred_check
          %p255 = pneg %p40
        $region42: #{tpu_custom_call.1} parent=39 // pred_check_branch
          %257 = sbr.rel (%p255) target = $region44
        $region43: #{tpu_custom_call.1} parent=39 // pred_region
          %s258 = sand.u32 %s30, 1
          %s259 = scalar_lea.sflag [#allocation3], %s258
          %s260 = sand.u32 %s30, 1
          %s261 = smul.addr %s260, 2
          %s262 = scalar_lea.vmem [#allocation2], %s261
          %s264 = ssub.s32 32, 32
          %265 = vsyncadd %s259, %s264
          %s266 = smul.addr %s20, 32
          %s267 = scalar_lea.hbm %s0, %s266
          %s269 = sshll.u32 %s262, 4
          %s270 = int_to_ptr.vmem [resolvable:$true] %s269
          %272 = dma.hbm_to_vmem [thread:$0]  %s267, 32, %s270, %s259
        $region44: #{tpu_custom_call.1} parent=39 // pred_fallthru
          _
      $region40: #{tpu_custom_call.1} parent=5 // pred_fallthru
        _
      %p273 = scmp.le.s32.totalorder 1, %s20
      %p274 = scmp.lt.s32.totalorder %s20, 3
      %p275 = pnand %p273, %p274
      %p276 = pneg %p275
      // Predicated region
      $region45: #{tpu_custom_call.1} parent=5 // pred_check
        _
      $region46: #{tpu_custom_call.1} parent=5 // pred_check_branch
        %278 = sbr.rel (%p275) target = $region48
      $region47: #{tpu_custom_call.1} parent=5 // pred_region
        %s279 = ssub.s32 %s20, 1
        %s280 = sand.u32 %s33, 1
        %s281 = scalar_lea.sflag [#allocation3], %s280
        %s282 = sand.u32 %s33, 1
        %s283 = smul.addr %s282, 2
        %s284 = scalar_lea.vmem [#allocation2], %s283
        // Predicated region
        $region49: #{tpu_custom_call.1} parent=47 // pred_check
          %p285 = pneg %p46
        $region50: #{tpu_custom_call.1} parent=47 // pred_check_branch
          %287 = sbr.rel (%p285) target = $region52
        $region51: #{tpu_custom_call.1} parent=47 // pred_region
          %288 = dma.done %s281, 32
        $region52: #{tpu_custom_call.1} parent=47 // pred_fallthru
          _
        // Predicated region
        $region53: #{tpu_custom_call.1} parent=47 // pred_check
          %p289 = pneg %p151
        $region54: #{tpu_custom_call.1} parent=47 // pred_check_branch
          %291 = sbr.rel (%p289) target = $region56
        $region55: #{tpu_custom_call.1} parent=47 // pred_region
          %292 = dma.done [#allocation6], 2048
        $region56: #{tpu_custom_call.1} parent=47 // pred_fallthru
          _
        // Predicated region
        $region57: #{tpu_custom_call.1} parent=47 // pred_check
          %p293 = pneg %p172
        $region58: #{tpu_custom_call.1} parent=47 // pred_check_branch
          %295 = sbr.rel (%p293) target = $region60
        $region59: #{tpu_custom_call.1} parent=47 // pred_region
          %296 = dma.done [#allocation6], 2048
        $region60: #{tpu_custom_call.1} parent=47 // pred_fallthru
          _
        %s297 = sand.u32 %s33, 1
        %s298 = scalar_lea.sflag [#allocation3], %s297
        %s299 = sand.u32 %s33, 1
        %s300 = smul.addr %s299, 2
        %s301 = scalar_lea.vmem [#allocation2], %s300
        %p302 = pneg %p46
        %p303 = pneg %p43
        %p304 = pneg %p67
        %p305 = pneg %p64
        %p306 = pneg %p88
        %p307 = pneg %p85
        %p308 = pneg %p109
        %p309 = pneg %p106
        %p310 = pneg %p130
        %p311 = pneg %p127
        %p312 = pneg %p151
        %p313 = pneg %p148
        %p314 = pneg %p172
        %p315 = pneg %p169
        %p316 = pneg %p198
        %p317 = pneg %p195
        %s318 = sand.u32 %s185, 1
        %s319 = scalar_lea.sflag [#allocation4], %s318
        %s320 = sand.u32 %s185, 1
        %s321 = smul.addr %s320, 2
        %s322 = scalar_lea.vmem [#allocation8], %s321
        %v323 = vld [vmem:[%s284] sm:$0x3]
        %v324 = vld [vmem:[#allocation5] sm:$0xff]
        %v325 = vld [vmem:[#allocation5 + $0x8] sm:$0xff]
        %v326 = vld [vmem:[#allocation5 + $0x10] sm:$0xff]
        %v327 = vld [vmem:[#allocation5 + $0x18] sm:$0xff]
        %v328 = vld [vmem:[#allocation5 + $0x20] sm:$0xff]
        %v329 = vld [vmem:[#allocation5 + $0x28] sm:$0xff]
        %v330 = vld [vmem:[#allocation5 + $0x30] sm:$0xff]
        %v331 = vld [vmem:[#allocation5 + $0x38] sm:$0xff]
        %v332 = vld [vmem:[#allocation5 + $0x40] sm:$0xff]
        %v333 = vld [vmem:[#allocation5 + $0x48] sm:$0xff]
        %v334 = vld [vmem:[#allocation5 + $0x50] sm:$0xff]
        %v335 = vld [vmem:[#allocation5 + $0x58] sm:$0xff]
        %v336 = vld [vmem:[#allocation5 + $0x60] sm:$0xff]
        %v337 = vld [vmem:[#allocation5 + $0x68] sm:$0xff]
        %v338 = vld [vmem:[#allocation5 + $0x70] sm:$0xff]
        %v339 = vld [vmem:[#allocation5 + $0x78] sm:$0xff]
        %v340 = vld [vmem:[#allocation7] sm:$0xff]
        %v341 = vld [vmem:[#allocation7 + $0x8] sm:$0xff]
        %v342 = vld [vmem:[#allocation7 + $0x10] sm:$0xff]
        %v343 = vld [vmem:[#allocation7 + $0x18] sm:$0xff]
        %v344 = vld [vmem:[#allocation7 + $0x20] sm:$0xff]
        %v345 = vld [vmem:[#allocation7 + $0x28] sm:$0xff]
        %v346 = vld [vmem:[#allocation7 + $0x30] sm:$0xff]
        %v347 = vld [vmem:[#allocation7 + $0x38] sm:$0xff]
        %v348 = vld [vmem:[#allocation7 + $0x40] sm:$0xff]
        %v349 = vld [vmem:[#allocation7 + $0x48] sm:$0xff]
        %v350 = vld [vmem:[#allocation7 + $0x50] sm:$0xff]
        %v351 = vld [vmem:[#allocation7 + $0x58] sm:$0xff]
        %v352 = vld [vmem:[#allocation7 + $0x60] sm:$0xff]
        %v353 = vld [vmem:[#allocation7 + $0x68] sm:$0xff]
        %v354 = vld [vmem:[#allocation7 + $0x70] sm:$0xff]
        %v355 = vld [vmem:[#allocation7 + $0x78] sm:$0xff]
        %v356 = vld [vmem:[%s1] sm:$0x1]
        %v357 = vld [vmem:[%s2] sm:$0x1]
        %v358 = vld [vmem:[%s3] sm:$0x1]
        %v359 = vld [vmem:[%s4] sm:$0x1]
        %v360 = vmul.f32 %v324, 0.125
        %v361 = vmul.f32 %v325, 0.125
        %v362 = vmul.f32 %v326, 0.125
        %v363 = vmul.f32 %v327, 0.125
        %v364 = vmul.f32 %v328, 0.125
        %v365 = vmul.f32 %v329, 0.125
        %v366 = vmul.f32 %v330, 0.125
        %v367 = vmul.f32 %v331, 0.125
        %v368 = vmul.f32 %v332, 0.125
        %v369 = vmul.f32 %v333, 0.125
        %v370 = vmul.f32 %v334, 0.125
        %v371 = vmul.f32 %v335, 0.125
        %v372 = vmul.f32 %v336, 0.125
        %v373 = vmul.f32 %v337, 0.125
        %v374 = vmul.f32 %v338, 0.125
        %v375 = vmul.f32 %v339, 0.125
        %v376 = vmul.f32 %v324, 0.14285715
        %v377 = vmul.f32 %v325, 0.14285715
        %v378 = vmul.f32 %v326, 0.14285715
        %v379 = vmul.f32 %v327, 0.14285715
        %v380 = vmul.f32 %v328, 0.14285715
        %v381 = vmul.f32 %v329, 0.14285715
        %v382 = vmul.f32 %v330, 0.14285715
        %v383 = vmul.f32 %v331, 0.14285715
        %v384 = vmul.f32 %v332, 0.14285715
        %v385 = vmul.f32 %v333, 0.14285715
        %v386 = vmul.f32 %v334, 0.14285715
        %v387 = vmul.f32 %v335, 0.14285715
        %v388 = vmul.f32 %v336, 0.14285715
        %v389 = vmul.f32 %v337, 0.14285715
        %v390 = vmul.f32 %v338, 0.14285715
        %v391 = vmul.f32 %v339, 0.14285715
        %392 = vmatprep.subr.mxu0 0.0
        %v393 = vand.u32 %v375, 4294901760
        %394 = vmatpush1.msra.mxu0 %v393
        %395 = vmatprep.subr.mxu0 0.0
        %v396 = vand.u32 %v374, 4294901760
        %397 = vmatpush1.msra.mxu0 %v396
        %398 = vmatprep.subr.mxu0 0.0
        %v399 = vand.u32 %v373, 4294901760
        %400 = vmatpush1.msra.mxu0 %v399
        %401 = vmatprep.subr.mxu0 0.0
        %v402 = vand.u32 %v372, 4294901760
        %403 = vmatpush1.msra.mxu0 %v402
        %404 = vmatprep.subr.mxu0 0.0
        %v405 = vand.u32 %v371, 4294901760
        %406 = vmatpush1.msra.mxu0 %v405
        %407 = vmatprep.subr.mxu0 0.0
        %v408 = vand.u32 %v370, 4294901760
        %409 = vmatpush1.msra.mxu0 %v408
        %410 = vmatprep.subr.mxu0 0.0
        %v411 = vand.u32 %v369, 4294901760
        %412 = vmatpush1.msra.mxu0 %v411
        %413 = vmatprep.subr.mxu0 0.0
        %v414 = vand.u32 %v368, 4294901760
        %415 = vmatpush1.msra.mxu0 %v414
        %416 = vmatprep.subr.mxu0 0.0
        %v417 = vand.u32 %v367, 4294901760
        %418 = vmatpush1.msra.mxu0 %v417
        %419 = vmatprep.subr.mxu0 0.0
        %v420 = vand.u32 %v366, 4294901760
        %421 = vmatpush1.msra.mxu0 %v420
        %422 = vmatprep.subr.mxu0 0.0
        %v423 = vand.u32 %v365, 4294901760
        %424 = vmatpush1.msra.mxu0 %v423
        %425 = vmatprep.subr.mxu0 0.0
        %v426 = vand.u32 %v364, 4294901760
        %427 = vmatpush1.msra.mxu0 %v426
        %428 = vmatprep.subr.mxu0 0.0
        %v429 = vand.u32 %v363, 4294901760
        %430 = vmatpush1.msra.mxu0 %v429
        %431 = vmatprep.subr.mxu0 0.0
        %v432 = vand.u32 %v362, 4294901760
        %433 = vmatpush1.msra.mxu0 %v432
        %434 = vmatprep.subr.mxu0 0.0
        %v435 = vand.u32 %v361, 4294901760
        %436 = vmatpush1.msra.mxu0 %v435
        %437 = vmatprep.subr.mxu0 0.0
        %v438 = vand.u32 %v360, 4294901760
        %439 = vmatpush1.msra.mxu0 %v438
        %440 = vmatprep.subr.mxu0 0.0
        %441 = vmatpush2.msra.mxu0 0.0
        %442 = vmatprep.subr.mxu0 0.0
        %443 = vmatpush2.msra.mxu0 0.0
        %444 = vmatprep.subr.mxu0 0.0
        %445 = vmatpush2.msra.mxu0 0.0
        %446 = vmatprep.subr.mxu0 0.0
        %447 = vmatpush2.msra.mxu0 0.0
        %448 = vmatprep.subr.mxu0 0.0
        %449 = vmatpush2.msra.mxu0 0.0
        %450 = vmatprep.subr.mxu0 0.0
        %451 = vmatpush2.msra.mxu0 0.0
        %452 = vmatprep.subr.mxu0 0.0
        %453 = vmatpush2.msra.mxu0 0.0
        %454 = vmatprep.subr.mxu0 0.0
        %455 = vmatpush2.msra.mxu0 0.0
        %456 = vmatprep.subr.mxu0 0.0
        %457 = vmatpush2.msra.mxu0 0.0
        %458 = vmatprep.subr.mxu0 0.0
        %459 = vmatpush2.msra.mxu0 0.0
        %460 = vmatprep.subr.mxu0 0.0
        %461 = vmatpush2.msra.mxu0 0.0
        %462 = vmatprep.subr.mxu0 0.0
        %463 = vmatpush2.msra.mxu0 0.0
        %464 = vmatprep.subr.mxu0 0.0
        %465 = vmatpush2.msra.mxu0 0.0
        %466 = vmatprep.subr.mxu0 0.0
        %467 = vmatpush2.msra.mxu0 0.0
        %468 = vmatprep.subr.mxu0 0.0
        %469 = vmatpush2.msra.mxu0 0.0
        %470 = vmatprep.subr.mxu0 0.0
        %471 = vmatpush2.msra.mxu0 0.0
        %472 = vmatprep.mubr.f32.mxu0 0.0
        %v473 = vand.u32 %v323, 4294901760
        %v474 = vsub.f32 %v323, %v473
        %v475 = vand.u32 %v474, 4294901760
        %v476 = vsub.f32 %v474, %v475
        %v477 = vand.u32 %v476, 4294901760
        %478 = vmatmul.mubr.f32.gmra.mxu0 %v477
        %v479 = vpop.f32.mrf.mxu0
        %v480 = vadd.f32 0.0, %v479
        %v481 = vpop.f32.mrf.mxu0
        %482 = vdwg.mxu0
        %483 = vmatprep.subr.mxu0 0.0
        %v484 = vand.u32 %v375, 4294901760
        %v485 = vsub.f32 %v375, %v484
        %v486 = vand.u32 %v485, 4294901760
        %v487 = vsub.f32 %v485, %v486
        %v488 = vand.u32 %v487, 4294901760
        %489 = vmatpush1.msra.mxu0 %v488
        %490 = vmatprep.subr.mxu0 0.0
        %v491 = vand.u32 %v374, 4294901760
        %v492 = vsub.f32 %v374, %v491
        %v493 = vand.u32 %v492, 4294901760
        %v494 = vsub.f32 %v492, %v493
        %v495 = vand.u32 %v494, 4294901760
        %496 = vmatpush1.msra.mxu0 %v495
        %497 = vmatprep.subr.mxu0 0.0
        %v498 = vand.u32 %v373, 4294901760
        %v499 = vsub.f32 %v373, %v498
        %v500 = vand.u32 %v499, 4294901760
        %v501 = vsub.f32 %v499, %v500
        %v502 = vand.u32 %v501, 4294901760
        %503 = vmatpush1.msra.mxu0 %v502
        %504 = vmatprep.subr.mxu0 0.0
        %v505 = vand.u32 %v372, 4294901760
        %v506 = vsub.f32 %v372, %v505
        %v507 = vand.u32 %v506, 4294901760
        %v508 = vsub.f32 %v506, %v507
        %v509 = vand.u32 %v508, 4294901760
        %510 = vmatpush1.msra.mxu0 %v509
        %511 = vmatprep.subr.mxu0 0.0
        %v512 = vand.u32 %v371, 4294901760
        %v513 = vsub.f32 %v371, %v512
        %v514 = vand.u32 %v513, 4294901760
        %v515 = vsub.f32 %v513, %v514
        %v516 = vand.u32 %v515, 4294901760
        %517 = vmatpush1.msra.mxu0 %v516
        %518 = vmatprep.subr.mxu0 0.0
        %v519 = vand.u32 %v370, 4294901760
        %v520 = vsub.f32 %v370, %v519
        %v521 = vand.u32 %v520, 4294901760
        %v522 = vsub.f32 %v520, %v521
        %v523 = vand.u32 %v522, 4294901760
        %524 = vmatpush1.msra.mxu0 %v523
        %525 = vmatprep.subr.mxu0 0.0
        %v526 = vand.u32 %v369, 4294901760
        %v527 = vsub.f32 %v369, %v526
        %v528 = vand.u32 %v527, 4294901760
        %v529 = vsub.f32 %v527, %v528
        %v530 = vand.u32 %v529, 4294901760
        %531 = vmatpush1.msra.mxu0 %v530
        %532 = vmatprep.subr.mxu0 0.0
        %v533 = vand.u32 %v368, 4294901760
        %v534 = vsub.f32 %v368, %v533
        %v535 = vand.u32 %v534, 4294901760
        %v536 = vsub.f32 %v534, %v535
        %v537 = vand.u32 %v536, 4294901760
        %538 = vmatpush1.msra.mxu0 %v537
        %539 = vmatprep.subr.mxu0 0.0
        %v540 = vand.u32 %v367, 4294901760
        %v541 = vsub.f32 %v367, %v540
        %v542 = vand.u32 %v541, 4294901760
        %v543 = vsub.f32 %v541, %v542
        %v544 = vand.u32 %v543, 4294901760
        %545 = vmatpush1.msra.mxu0 %v544
        %546 = vmatprep.subr.mxu0 0.0
        %v547 = vand.u32 %v366, 4294901760
        %v548 = vsub.f32 %v366, %v547
        %v549 = vand.u32 %v548, 4294901760
        %v550 = vsub.f32 %v548, %v549
        %v551 = vand.u32 %v550, 4294901760
        %552 = vmatpush1.msra.mxu0 %v551
        %553 = vmatprep.subr.mxu0 0.0
        %v554 = vand.u32 %v365, 4294901760
        %v555 = vsub.f32 %v365, %v554
        %v556 = vand.u32 %v555, 4294901760
        %v557 = vsub.f32 %v555, %v556
        %v558 = vand.u32 %v557, 4294901760
        %559 = vmatpush1.msra.mxu0 %v558
        %560 = vmatprep.subr.mxu0 0.0
        %v561 = vand.u32 %v364, 4294901760
        %v562 = vsub.f32 %v364, %v561
        %v563 = vand.u32 %v562, 4294901760
        %v564 = vsub.f32 %v562, %v563
        %v565 = vand.u32 %v564, 4294901760
        %566 = vmatpush1.msra.mxu0 %v565
        %567 = vmatprep.subr.mxu0 0.0
        %v568 = vand.u32 %v363, 4294901760
        %v569 = vsub.f32 %v363, %v568
        %v570 = vand.u32 %v569, 4294901760
        %v571 = vsub.f32 %v569, %v570
        %v572 = vand.u32 %v571, 4294901760
        %573 = vmatpush1.msra.mxu0 %v572
        %574 = vmatprep.subr.mxu0 0.0
        %v575 = vand.u32 %v362, 4294901760
        %v576 = vsub.f32 %v362, %v575
        %v577 = vand.u32 %v576, 4294901760
        %v578 = vsub.f32 %v576, %v577
        %v579 = vand.u32 %v578, 4294901760
        %580 = vmatpush1.msra.mxu0 %v579
        %581 = vmatprep.subr.mxu0 0.0
        %v582 = vand.u32 %v361, 4294901760
        %v583 = vsub.f32 %v361, %v582
        %v584 = vand.u32 %v583, 4294901760
        %v585 = vsub.f32 %v583, %v584
        %v586 = vand.u32 %v585, 4294901760
        %587 = vmatpush1.msra.mxu0 %v586
        %588 = vmatprep.subr.mxu0 0.0
        %v589 = vand.u32 %v360, 4294901760
        %v590 = vsub.f32 %v360, %v589
        %v591 = vand.u32 %v590, 4294901760
        %v592 = vsub.f32 %v590, %v591
        %v593 = vand.u32 %v592, 4294901760
        %594 = vmatpush1.msra.mxu0 %v593
        %595 = vmatprep.subr.mxu0 0.0
        %596 = vmatpush2.msra.mxu0 0.0
        %597 = vmatprep.subr.mxu0 0.0
        %598 = vmatpush2.msra.mxu0 0.0
        %599 = vmatprep.subr.mxu0 0.0
        %600 = vmatpush2.msra.mxu0 0.0
        %601 = vmatprep.subr.mxu0 0.0
        %602 = vmatpush2.msra.mxu0 0.0
        %603 = vmatprep.subr.mxu0 0.0
        %604 = vmatpush2.msra.mxu0 0.0
        %605 = vmatprep.subr.mxu0 0.0
        %606 = vmatpush2.msra.mxu0 0.0
        %607 = vmatprep.subr.mxu0 0.0
        %608 = vmatpush2.msra.mxu0 0.0
        %609 = vmatprep.subr.mxu0 0.0
        %610 = vmatpush2.msra.mxu0 0.0
        %611 = vmatprep.subr.mxu0 0.0
        %612 = vmatpush2.msra.mxu0 0.0
        %613 = vmatprep.subr.mxu0 0.0
        %614 = vmatpush2.msra.mxu0 0.0
        %615 = vmatprep.subr.mxu0 0.0
        %616 = vmatpush2.msra.mxu0 0.0
        %617 = vmatprep.subr.mxu0 0.0
        %618 = vmatpush2.msra.mxu0 0.0
        %619 = vmatprep.subr.mxu0 0.0
        %620 = vmatpush2.msra.mxu0 0.0
        %621 = vmatprep.subr.mxu0 0.0
        %622 = vmatpush2.msra.mxu0 0.0
        %623 = vmatprep.subr.mxu0 0.0
        %624 = vmatpush2.msra.mxu0 0.0
        %625 = vmatprep.subr.mxu0 0.0
        %626 = vmatpush2.msra.mxu0 0.0
        %627 = vmatprep.mubr.f32.mxu0 0.0
        %v628 = vand.u32 %v323, 4294901760
        %629 = vmatmul.mubr.f32.gmra.mxu0 %v628
        %v630 = vpop.f32.mrf.mxu0
        %v631 = vadd.f32 %v480, %v630
        %v632 = vpop.f32.mrf.mxu0
        %633 = vdwg.mxu0
        %634 = vmatprep.subr.mxu0 0.0
        %v635 = vand.u32 %v375, 4294901760
        %v636 = vsub.f32 %v375, %v635
        %637 = vmatpush1.msra.mxu0 %v636
        %638 = vmatprep.subr.mxu0 0.0
        %v639 = vand.u32 %v374, 4294901760
        %v640 = vsub.f32 %v374, %v639
        %641 = vmatpush1.msra.mxu0 %v640
        %642 = vmatprep.subr.mxu0 0.0
        %v643 = vand.u32 %v373, 4294901760
        %v644 = vsub.f32 %v373, %v643
        %645 = vmatpush1.msra.mxu0 %v644
        %646 = vmatprep.subr.mxu0 0.0
        %v647 = vand.u32 %v372, 4294901760
        %v648 = vsub.f32 %v372, %v647
        %649 = vmatpush1.msra.mxu0 %v648
        %650 = vmatprep.subr.mxu0 0.0
        %v651 = vand.u32 %v371, 4294901760
        %v652 = vsub.f32 %v371, %v651
        %653 = vmatpush1.msra.mxu0 %v652
        %654 = vmatprep.subr.mxu0 0.0
        %v655 = vand.u32 %v370, 4294901760
        %v656 = vsub.f32 %v370, %v655
        %657 = vmatpush1.msra.mxu0 %v656
        %658 = vmatprep.subr.mxu0 0.0
        %v659 = vand.u32 %v369, 4294901760
        %v660 = vsub.f32 %v369, %v659
        %661 = vmatpush1.msra.mxu0 %v660
        %662 = vmatprep.subr.mxu0 0.0
        %v663 = vand.u32 %v368, 4294901760
        %v664 = vsub.f32 %v368, %v663
        %665 = vmatpush1.msra.mxu0 %v664
        %666 = vmatprep.subr.mxu0 0.0
        %v667 = vand.u32 %v367, 4294901760
        %v668 = vsub.f32 %v367, %v667
        %669 = vmatpush1.msra.mxu0 %v668
        %670 = vmatprep.subr.mxu0 0.0
        %v671 = vand.u32 %v366, 4294901760
        %v672 = vsub.f32 %v366, %v671
        %673 = vmatpush1.msra.mxu0 %v672
        %674 = vmatprep.subr.mxu0 0.0
        %v675 = vand.u32 %v365, 4294901760
        %v676 = vsub.f32 %v365, %v675
        %677 = vmatpush1.msra.mxu0 %v676
        %678 = vmatprep.subr.mxu0 0.0
        %v679 = vand.u32 %v364, 4294901760
        %v680 = vsub.f32 %v364, %v679
        %681 = vmatpush1.msra.mxu0 %v680
        %682 = vmatprep.subr.mxu0 0.0
        %v683 = vand.u32 %v363, 4294901760
        %v684 = vsub.f32 %v363, %v683
        %685 = vmatpush1.msra.mxu0 %v684
        %686 = vmatprep.subr.mxu0 0.0
        %v687 = vand.u32 %v362, 4294901760
        %v688 = vsub.f32 %v362, %v687
        %689 = vmatpush1.msra.mxu0 %v688
        %690 = vmatprep.subr.mxu0 0.0
        %v691 = vand.u32 %v361, 4294901760
        %v692 = vsub.f32 %v361, %v691
        %693 = vmatpush1.msra.mxu0 %v692
        %694 = vmatprep.subr.mxu0 0.0
        %v695 = vand.u32 %v360, 4294901760
        %v696 = vsub.f32 %v360, %v695
        %697 = vmatpush1.msra.mxu0 %v696
        %698 = vmatprep.subr.mxu0 0.0
        %699 = vmatpush2.msra.mxu0 0.0
        %700 = vmatprep.subr.mxu0 0.0
        %701 = vmatpush2.msra.mxu0 0.0
        %702 = vmatprep.subr.mxu0 0.0
        %703 = vmatpush2.msra.mxu0 0.0
        %704 = vmatprep.subr.mxu0 0.0
        %705 = vmatpush2.msra.mxu0 0.0
        %706 = vmatprep.subr.mxu0 0.0
        %707 = vmatpush2.msra.mxu0 0.0
        %708 = vmatprep.subr.mxu0 0.0
        %709 = vmatpush2.msra.mxu0 0.0
        %710 = vmatprep.subr.mxu0 0.0
        %711 = vmatpush2.msra.mxu0 0.0
        %712 = vmatprep.subr.mxu0 0.0
        %713 = vmatpush2.msra.mxu0 0.0
        %714 = vmatprep.subr.mxu0 0.0
        %715 = vmatpush2.msra.mxu0 0.0
        %716 = vmatprep.subr.mxu0 0.0
        %717 = vmatpush2.msra.mxu0 0.0
        %718 = vmatprep.subr.mxu0 0.0
        %719 = vmatpush2.msra.mxu0 0.0
        %720 = vmatprep.subr.mxu0 0.0
        %721 = vmatpush2.msra.mxu0 0.0
        %722 = vmatprep.subr.mxu0 0.0
        %723 = vmatpush2.msra.mxu0 0.0
        %724 = vmatprep.subr.mxu0 0.0
        %725 = vmatpush2.msra.mxu0 0.0
        %726 = vmatprep.subr.mxu0 0.0
        %727 = vmatpush2.msra.mxu0 0.0
        %728 = vmatprep.subr.mxu0 0.0
        %729 = vmatpush2.msra.mxu0 0.0
        %730 = vmatprep.mubr.f32.mxu0 0.0
        %v731 = vand.u32 %v323, 4294901760
        %v732 = vsub.f32 %v323, %v731
        %733 = vmatmul.mubr.f32.gmra.mxu0 %v732
        %v734 = vpop.f32.mrf.mxu0
        %v735 = vadd.f32 %v631, %v734
        %v736 = vpop.f32.mrf.mxu0
        %737 = vdwg.mxu0
        %738 = vmatprep.subr.mxu0 0.0
        %v739 = vand.u32 %v375, 4294901760
        %740 = vmatpush1.msra.mxu0 %v739
        %741 = vmatprep.subr.mxu0 0.0
        %v742 = vand.u32 %v374, 4294901760
        %743 = vmatpush1.msra.mxu0 %v742
        %744 = vmatprep.subr.mxu0 0.0
        %v745 = vand.u32 %v373, 4294901760
        %746 = vmatpush1.msra.mxu0 %v745
        %747 = vmatprep.subr.mxu0 0.0
        %v748 = vand.u32 %v372, 4294901760
        %749 = vmatpush1.msra.mxu0 %v748
        %750 = vmatprep.subr.mxu0 0.0
        %v751 = vand.u32 %v371, 4294901760
        %752 = vmatpush1.msra.mxu0 %v751
        %753 = vmatprep.subr.mxu0 0.0
        %v754 = vand.u32 %v370, 4294901760
        %755 = vmatpush1.msra.mxu0 %v754
        %756 = vmatprep.subr.mxu0 0.0
        %v757 = vand.u32 %v369, 4294901760
        %758 = vmatpush1.msra.mxu0 %v757
        %759 = vmatprep.subr.mxu0 0.0
        %v760 = vand.u32 %v368, 4294901760
        %761 = vmatpush1.msra.mxu0 %v760
        %762 = vmatprep.subr.mxu0 0.0
        %v763 = vand.u32 %v367, 4294901760
        %764 = vmatpush1.msra.mxu0 %v763
        %765 = vmatprep.subr.mxu0 0.0
        %v766 = vand.u32 %v366, 4294901760
        %767 = vmatpush1.msra.mxu0 %v766
        %768 = vmatprep.subr.mxu0 0.0
        %v769 = vand.u32 %v365, 4294901760
        %770 = vmatpush1.msra.mxu0 %v769
        %771 = vmatprep.subr.mxu0 0.0
        %v772 = vand.u32 %v364, 4294901760
        %773 = vmatpush1.msra.mxu0 %v772
        %774 = vmatprep.subr.mxu0 0.0
        %v775 = vand.u32 %v363, 4294901760
        %776 = vmatpush1.msra.mxu0 %v775
        %777 = vmatprep.subr.mxu0 0.0
        %v778 = vand.u32 %v362, 4294901760
        %779 = vmatpush1.msra.mxu0 %v778
        %780 = vmatprep.subr.mxu0 0.0
        %v781 = vand.u32 %v361, 4294901760
        %782 = vmatpush1.msra.mxu0 %v781
        %783 = vmatprep.subr.mxu0 0.0
        %v784 = vand.u32 %v360, 4294901760
        %785 = vmatpush1.msra.mxu0 %v784
        %786 = vmatprep.subr.mxu0 0.0
        %787 = vmatpush2.msra.mxu0 0.0
        %788 = vmatprep.subr.mxu0 0.0
        %789 = vmatpush2.msra.mxu0 0.0
        %790 = vmatprep.subr.mxu0 0.0
        %791 = vmatpush2.msra.mxu0 0.0
        %792 = vmatprep.subr.mxu0 0.0
        %793 = vmatpush2.msra.mxu0 0.0
        %794 = vmatprep.subr.mxu0 0.0
        %795 = vmatpush2.msra.mxu0 0.0
        %796 = vmatprep.subr.mxu0 0.0
        %797 = vmatpush2.msra.mxu0 0.0
        %798 = vmatprep.subr.mxu0 0.0
        %799 = vmatpush2.msra.mxu0 0.0
        %800 = vmatprep.subr.mxu0 0.0
        %801 = vmatpush2.msra.mxu0 0.0
        %802 = vmatprep.subr.mxu0 0.0
        %803 = vmatpush2.msra.mxu0 0.0
        %804 = vmatprep.subr.mxu0 0.0
        %805 = vmatpush2.msra.mxu0 0.0
        %806 = vmatprep.subr.mxu0 0.0
        %807 = vmatpush2.msra.mxu0 0.0
        %808 = vmatprep.subr.mxu0 0.0
        %809 = vmatpush2.msra.mxu0 0.0
        %810 = vmatprep.subr.mxu0 0.0
        %811 = vmatpush2.msra.mxu0 0.0
        %812 = vmatprep.subr.mxu0 0.0
        %813 = vmatpush2.msra.mxu0 0.0
        %814 = vmatprep.subr.mxu0 0.0
        %815 = vmatpush2.msra.mxu0 0.0
        %816 = vmatprep.subr.mxu0 0.0
        %817 = vmatpush2.msra.mxu0 0.0
        %818 = vmatprep.mubr.f32.mxu0 0.0
        %v819 = vand.u32 %v323, 4294901760
        %v820 = vsub.f32 %v323, %v819
        %v821 = vand.u32 %v820, 4294901760
        %822 = vmatmul.mubr.f32.gmra.mxu0 %v821
        %v823 = vpop.f32.mrf.mxu0
        %v824 = vadd.f32 %v735, %v823
        %v825 = vpop.f32.mrf.mxu0
        %826 = vdwg.mxu0
        %827 = vmatprep.subr.mxu0 0.0
        %v828 = vand.u32 %v375, 4294901760
        %v829 = vsub.f32 %v375, %v828
        %v830 = vand.u32 %v829, 4294901760
        %831 = vmatpush1.msra.mxu0 %v830
        %832 = vmatprep.subr.mxu0 0.0
        %v833 = vand.u32 %v374, 4294901760
        %v834 = vsub.f32 %v374, %v833
        %v835 = vand.u32 %v834, 4294901760
        %836 = vmatpush1.msra.mxu0 %v835
        %837 = vmatprep.subr.mxu0 0.0
        %v838 = vand.u32 %v373, 4294901760
        %v839 = vsub.f32 %v373, %v838
        %v840 = vand.u32 %v839, 4294901760
        %841 = vmatpush1.msra.mxu0 %v840
        %842 = vmatprep.subr.mxu0 0.0
        %v843 = vand.u32 %v372, 4294901760
        %v844 = vsub.f32 %v372, %v843
        %v845 = vand.u32 %v844, 4294901760
        %846 = vmatpush1.msra.mxu0 %v845
        %847 = vmatprep.subr.mxu0 0.0
        %v848 = vand.u32 %v371, 4294901760
        %v849 = vsub.f32 %v371, %v848
        %v850 = vand.u32 %v849, 4294901760
        %851 = vmatpush1.msra.mxu0 %v850
        %852 = vmatprep.subr.mxu0 0.0
        %v853 = vand.u32 %v370, 4294901760
        %v854 = vsub.f32 %v370, %v853
        %v855 = vand.u32 %v854, 4294901760
        %856 = vmatpush1.msra.mxu0 %v855
        %857 = vmatprep.subr.mxu0 0.0
        %v858 = vand.u32 %v369, 4294901760
        %v859 = vsub.f32 %v369, %v858
        %v860 = vand.u32 %v859, 4294901760
        %861 = vmatpush1.msra.mxu0 %v860
        %862 = vmatprep.subr.mxu0 0.0
        %v863 = vand.u32 %v368, 4294901760
        %v864 = vsub.f32 %v368, %v863
        %v865 = vand.u32 %v864, 4294901760
        %866 = vmatpush1.msra.mxu0 %v865
        %867 = vmatprep.subr.mxu0 0.0
        %v868 = vand.u32 %v367, 4294901760
        %v869 = vsub.f32 %v367, %v868
        %v870 = vand.u32 %v869, 4294901760
        %871 = vmatpush1.msra.mxu0 %v870
        %872 = vmatprep.subr.mxu0 0.0
        %v873 = vand.u32 %v366, 4294901760
        %v874 = vsub.f32 %v366, %v873
        %v875 = vand.u32 %v874, 4294901760
        %876 = vmatpush1.msra.mxu0 %v875
        %877 = vmatprep.subr.mxu0 0.0
        %v878 = vand.u32 %v365, 4294901760
        %v879 = vsub.f32 %v365, %v878
        %v880 = vand.u32 %v879, 4294901760
        %881 = vmatpush1.msra.mxu0 %v880
        %882 = vmatprep.subr.mxu0 0.0
        %v883 = vand.u32 %v364, 4294901760
        %v884 = vsub.f32 %v364, %v883
        %v885 = vand.u32 %v884, 4294901760
        %886 = vmatpush1.msra.mxu0 %v885
        %887 = vmatprep.subr.mxu0 0.0
        %v888 = vand.u32 %v363, 4294901760
        %v889 = vsub.f32 %v363, %v888
        %v890 = vand.u32 %v889, 4294901760
        %891 = vmatpush1.msra.mxu0 %v890
        %892 = vmatprep.subr.mxu0 0.0
        %v893 = vand.u32 %v362, 4294901760
        %v894 = vsub.f32 %v362, %v893
        %v895 = vand.u32 %v894, 4294901760
        %896 = vmatpush1.msra.mxu0 %v895
        %897 = vmatprep.subr.mxu0 0.0
        %v898 = vand.u32 %v361, 4294901760
        %v899 = vsub.f32 %v361, %v898
        %v900 = vand.u32 %v899, 4294901760
        %901 = vmatpush1.msra.mxu0 %v900
        %902 = vmatprep.subr.mxu0 0.0
        %v903 = vand.u32 %v360, 4294901760
        %v904 = vsub.f32 %v360, %v903
        %v905 = vand.u32 %v904, 4294901760
        %906 = vmatpush1.msra.mxu0 %v905
        %907 = vmatprep.subr.mxu0 0.0
        %908 = vmatpush2.msra.mxu0 0.0
        %909 = vmatprep.subr.mxu0 0.0
        %910 = vmatpush2.msra.mxu0 0.0
        %911 = vmatprep.subr.mxu0 0.0
        %912 = vmatpush2.msra.mxu0 0.0
        %913 = vmatprep.subr.mxu0 0.0
        %914 = vmatpush2.msra.mxu0 0.0
        %915 = vmatprep.subr.mxu0 0.0
        %916 = vmatpush2.msra.mxu0 0.0
        %917 = vmatprep.subr.mxu0 0.0
        %918 = vmatpush2.msra.mxu0 0.0
        %919 = vmatprep.subr.mxu0 0.0
        %920 = vmatpush2.msra.mxu0 0.0
        %921 = vmatprep.subr.mxu0 0.0
        %922 = vmatpush2.msra.mxu0 0.0
        %923 = vmatprep.subr.mxu0 0.0
        %924 = vmatpush2.msra.mxu0 0.0
        %925 = vmatprep.subr.mxu0 0.0
        %926 = vmatpush2.msra.mxu0 0.0
        %927 = vmatprep.subr.mxu0 0.0
        %928 = vmatpush2.msra.mxu0 0.0
        %929 = vmatprep.subr.mxu0 0.0
        %930 = vmatpush2.msra.mxu0 0.0
        %931 = vmatprep.subr.mxu0 0.0
        %932 = vmatpush2.msra.mxu0 0.0
        %933 = vmatprep.subr.mxu0 0.0
        %934 = vmatpush2.msra.mxu0 0.0
        %935 = vmatprep.subr.mxu0 0.0
        %936 = vmatpush2.msra.mxu0 0.0
        %937 = vmatprep.subr.mxu0 0.0
        %938 = vmatpush2.msra.mxu0 0.0
        %939 = vmatprep.mubr.f32.mxu0 0.0
        %v940 = vand.u32 %v323, 4294901760
        %941 = vmatmul.mubr.f32.gmra.mxu0 %v940
        %v942 = vpop.f32.mrf.mxu0
        %v943 = vadd.f32 %v824, %v942
        %v944 = vpop.f32.mrf.mxu0
        %945 = vdwg.mxu0
        %946 = vmatprep.subr.mxu0 0.0
        %v947 = vand.u32 %v375, 4294901760
        %948 = vmatpush1.msra.mxu0 %v947
        %949 = vmatprep.subr.mxu0 0.0
        %v950 = vand.u32 %v374, 4294901760
        %951 = vmatpush1.msra.mxu0 %v950
        %952 = vmatprep.subr.mxu0 0.0
        %v953 = vand.u32 %v373, 4294901760
        %954 = vmatpush1.msra.mxu0 %v953
        %955 = vmatprep.subr.mxu0 0.0
        %v956 = vand.u32 %v372, 4294901760
        %957 = vmatpush1.msra.mxu0 %v956
        %958 = vmatprep.subr.mxu0 0.0
        %v959 = vand.u32 %v371, 4294901760
        %960 = vmatpush1.msra.mxu0 %v959
        %961 = vmatprep.subr.mxu0 0.0
        %v962 = vand.u32 %v370, 4294901760
        %963 = vmatpush1.msra.mxu0 %v962
        %964 = vmatprep.subr.mxu0 0.0
        %v965 = vand.u32 %v369, 4294901760
        %966 = vmatpush1.msra.mxu0 %v965
        %967 = vmatprep.subr.mxu0 0.0
        %v968 = vand.u32 %v368, 4294901760
        %969 = vmatpush1.msra.mxu0 %v968
        %970 = vmatprep.subr.mxu0 0.0
        %v971 = vand.u32 %v367, 4294901760
        %972 = vmatpush1.msra.mxu0 %v971
        %973 = vmatprep.subr.mxu0 0.0
        %v974 = vand.u32 %v366, 4294901760
        %975 = vmatpush1.msra.mxu0 %v974
        %976 = vmatprep.subr.mxu0 0.0
        %v977 = vand.u32 %v365, 4294901760
        %978 = vmatpush1.msra.mxu0 %v977
        %979 = vmatprep.subr.mxu0 0.0
        %v980 = vand.u32 %v364, 4294901760
        %981 = vmatpush1.msra.mxu0 %v980
        %982 = vmatprep.subr.mxu0 0.0
        %v983 = vand.u32 %v363, 4294901760
        %984 = vmatpush1.msra.mxu0 %v983
        %985 = vmatprep.subr.mxu0 0.0
        %v986 = vand.u32 %v362, 4294901760
        %987 = vmatpush1.msra.mxu0 %v986
        %988 = vmatprep.subr.mxu0 0.0
        %v989 = vand.u32 %v361, 4294901760
        %990 = vmatpush1.msra.mxu0 %v989
        %991 = vmatprep.subr.mxu0 0.0
        %v992 = vand.u32 %v360, 4294901760
        %993 = vmatpush1.msra.mxu0 %v992
        %994 = vmatprep.subr.mxu0 0.0
        %995 = vmatpush2.msra.mxu0 0.0
        %996 = vmatprep.subr.mxu0 0.0
        %997 = vmatpush2.msra.mxu0 0.0
        %998 = vmatprep.subr.mxu0 0.0
        %999 = vmatpush2.msra.mxu0 0.0
        %1000 = vmatprep.subr.mxu0 0.0
        %1001 = vmatpush2.msra.mxu0 0.0
        %1002 = vmatprep.subr.mxu0 0.0
        %1003 = vmatpush2.msra.mxu0 0.0
        %1004 = vmatprep.subr.mxu0 0.0
        %1005 = vmatpush2.msra.mxu0 0.0
        %1006 = vmatprep.subr.mxu0 0.0
        %1007 = vmatpush2.msra.mxu0 0.0
        %1008 = vmatprep.subr.mxu0 0.0
        %1009 = vmatpush2.msra.mxu0 0.0
        %1010 = vmatprep.subr.mxu0 0.0
        %1011 = vmatpush2.msra.mxu0 0.0
        %1012 = vmatprep.subr.mxu0 0.0
        %1013 = vmatpush2.msra.mxu0 0.0
        %1014 = vmatprep.subr.mxu0 0.0
        %1015 = vmatpush2.msra.mxu0 0.0
        %1016 = vmatprep.subr.mxu0 0.0
        %1017 = vmatpush2.msra.mxu0 0.0
        %1018 = vmatprep.subr.mxu0 0.0
        %1019 = vmatpush2.msra.mxu0 0.0
        %1020 = vmatprep.subr.mxu0 0.0
        %1021 = vmatpush2.msra.mxu0 0.0
        %1022 = vmatprep.subr.mxu0 0.0
        %1023 = vmatpush2.msra.mxu0 0.0
        %1024 = vmatprep.subr.mxu0 0.0
        %1025 = vmatpush2.msra.mxu0 0.0
        %1026 = vmatprep.mubr.f32.mxu0 0.0
        %v1027 = vand.u32 %v323, 4294901760
        %1028 = vmatmul.mubr.f32.gmra.mxu0 %v1027
        %v1029 = vpop.f32.mrf.mxu0
        %v1030 = vadd.f32 %v943, %v1029
        %v1031 = vpop.f32.mrf.mxu0
        %1032 = vdwg.mxu0
        %v1033 = vsub.f32 %v323, %v1030
        %v1034 = vmul.f32 %v1033, %v1033
        %1035 = vmatprep.subr.mxu0 0.0
        %v1036 = vand.u32 %v391, 4294901760
        %1037 = vmatpush1.msra.mxu0 %v1036
        %1038 = vmatprep.subr.mxu0 0.0
        %v1039 = vand.u32 %v390, 4294901760
        %1040 = vmatpush1.msra.mxu0 %v1039
        %1041 = vmatprep.subr.mxu0 0.0
        %v1042 = vand.u32 %v389, 4294901760
        %1043 = vmatpush1.msra.mxu0 %v1042
        %1044 = vmatprep.subr.mxu0 0.0
        %v1045 = vand.u32 %v388, 4294901760
        %1046 = vmatpush1.msra.mxu0 %v1045
        %1047 = vmatprep.subr.mxu0 0.0
        %v1048 = vand.u32 %v387, 4294901760
        %1049 = vmatpush1.msra.mxu0 %v1048
        %1050 = vmatprep.subr.mxu0 0.0
        %v1051 = vand.u32 %v386, 4294901760
        %1052 = vmatpush1.msra.mxu0 %v1051
        %1053 = vmatprep.subr.mxu0 0.0
        %v1054 = vand.u32 %v385, 4294901760
        %1055 = vmatpush1.msra.mxu0 %v1054
        %1056 = vmatprep.subr.mxu0 0.0
        %v1057 = vand.u32 %v384, 4294901760
        %1058 = vmatpush1.msra.mxu0 %v1057
        %1059 = vmatprep.subr.mxu0 0.0
        %v1060 = vand.u32 %v383, 4294901760
        %1061 = vmatpush1.msra.mxu0 %v1060
        %1062 = vmatprep.subr.mxu0 0.0
        %v1063 = vand.u32 %v382, 4294901760
        %1064 = vmatpush1.msra.mxu0 %v1063
        %1065 = vmatprep.subr.mxu0 0.0
        %v1066 = vand.u32 %v381, 4294901760
        %1067 = vmatpush1.msra.mxu0 %v1066
        %1068 = vmatprep.subr.mxu0 0.0
        %v1069 = vand.u32 %v380, 4294901760
        %1070 = vmatpush1.msra.mxu0 %v1069
        %1071 = vmatprep.subr.mxu0 0.0
        %v1072 = vand.u32 %v379, 4294901760
        %1073 = vmatpush1.msra.mxu0 %v1072
        %1074 = vmatprep.subr.mxu0 0.0
        %v1075 = vand.u32 %v378, 4294901760
        %1076 = vmatpush1.msra.mxu0 %v1075
        %1077 = vmatprep.subr.mxu0 0.0
        %v1078 = vand.u32 %v377, 4294901760
        %1079 = vmatpush1.msra.mxu0 %v1078
        %1080 = vmatprep.subr.mxu0 0.0
        %v1081 = vand.u32 %v376, 4294901760
        %1082 = vmatpush1.msra.mxu0 %v1081
        %1083 = vmatprep.subr.mxu0 0.0
        %1084 = vmatpush2.msra.mxu0 0.0
        %1085 = vmatprep.subr.mxu0 0.0
        %1086 = vmatpush2.msra.mxu0 0.0
        %1087 = vmatprep.subr.mxu0 0.0
        %1088 = vmatpush2.msra.mxu0 0.0
        %1089 = vmatprep.subr.mxu0 0.0
        %1090 = vmatpush2.msra.mxu0 0.0
        %1091 = vmatprep.subr.mxu0 0.0
        %1092 = vmatpush2.msra.mxu0 0.0
        %1093 = vmatprep.subr.mxu0 0.0
        %1094 = vmatpush2.msra.mxu0 0.0
        %1095 = vmatprep.subr.mxu0 0.0
        %1096 = vmatpush2.msra.mxu0 0.0
        %1097 = vmatprep.subr.mxu0 0.0
        %1098 = vmatpush2.msra.mxu0 0.0
        %1099 = vmatprep.subr.mxu0 0.0
        %1100 = vmatpush2.msra.mxu0 0.0
        %1101 = vmatprep.subr.mxu0 0.0
        %1102 = vmatpush2.msra.mxu0 0.0
        %1103 = vmatprep.subr.mxu0 0.0
        %1104 = vmatpush2.msra.mxu0 0.0
        %1105 = vmatprep.subr.mxu0 0.0
        %1106 = vmatpush2.msra.mxu0 0.0
        %1107 = vmatprep.subr.mxu0 0.0
        %1108 = vmatpush2.msra.mxu0 0.0
        %1109 = vmatprep.subr.mxu0 0.0
        %1110 = vmatpush2.msra.mxu0 0.0
        %1111 = vmatprep.subr.mxu0 0.0
        %1112 = vmatpush2.msra.mxu0 0.0
        %1113 = vmatprep.subr.mxu0 0.0
        %1114 = vmatpush2.msra.mxu0 0.0
        %1115 = vmatprep.mubr.f32.mxu0 0.0
        %v1116 = vand.u32 %v1034, 4294901760
        %v1117 = vsub.f32 %v1034, %v1116
        %v1118 = vand.u32 %v1117, 4294901760
        %v1119 = vsub.f32 %v1117, %v1118
        %v1120 = vand.u32 %v1119, 4294901760
        %1121 = vmatmul.mubr.f32.gmra.mxu0 %v1120
        %v1122 = vpop.f32.mrf.mxu0
        %v1123 = vadd.f32 0.0, %v1122
        %v1124 = vpop.f32.mrf.mxu0
        %1125 = vdwg.mxu0
        %1126 = vmatprep.subr.mxu0 0.0
        %v1127 = vand.u32 %v391, 4294901760
        %v1128 = vsub.f32 %v391, %v1127
        %v1129 = vand.u32 %v1128, 4294901760
        %v1130 = vsub.f32 %v1128, %v1129
        %v1131 = vand.u32 %v1130, 4294901760
        %1132 = vmatpush1.msra.mxu0 %v1131
        %1133 = vmatprep.subr.mxu0 0.0
        %v1134 = vand.u32 %v390, 4294901760
        %v1135 = vsub.f32 %v390, %v1134
        %v1136 = vand.u32 %v1135, 4294901760
        %v1137 = vsub.f32 %v1135, %v1136
        %v1138 = vand.u32 %v1137, 4294901760
        %1139 = vmatpush1.msra.mxu0 %v1138
        %1140 = vmatprep.subr.mxu0 0.0
        %v1141 = vand.u32 %v389, 4294901760
        %v1142 = vsub.f32 %v389, %v1141
        %v1143 = vand.u32 %v1142, 4294901760
        %v1144 = vsub.f32 %v1142, %v1143
        %v1145 = vand.u32 %v1144, 4294901760
        %1146 = vmatpush1.msra.mxu0 %v1145
        %1147 = vmatprep.subr.mxu0 0.0
        %v1148 = vand.u32 %v388, 4294901760
        %v1149 = vsub.f32 %v388, %v1148
        %v1150 = vand.u32 %v1149, 4294901760
        %v1151 = vsub.f32 %v1149, %v1150
        %v1152 = vand.u32 %v1151, 4294901760
        %1153 = vmatpush1.msra.mxu0 %v1152
        %1154 = vmatprep.subr.mxu0 0.0
        %v1155 = vand.u32 %v387, 4294901760
        %v1156 = vsub.f32 %v387, %v1155
        %v1157 = vand.u32 %v1156, 4294901760
        %v1158 = vsub.f32 %v1156, %v1157
        %v1159 = vand.u32 %v1158, 4294901760
        %1160 = vmatpush1.msra.mxu0 %v1159
        %1161 = vmatprep.subr.mxu0 0.0
        %v1162 = vand.u32 %v386, 4294901760
        %v1163 = vsub.f32 %v386, %v1162
        %v1164 = vand.u32 %v1163, 4294901760
        %v1165 = vsub.f32 %v1163, %v1164
        %v1166 = vand.u32 %v1165, 4294901760
        %1167 = vmatpush1.msra.mxu0 %v1166
        %1168 = vmatprep.subr.mxu0 0.0
        %v1169 = vand.u32 %v385, 4294901760
        %v1170 = vsub.f32 %v385, %v1169
        %v1171 = vand.u32 %v1170, 4294901760
        %v1172 = vsub.f32 %v1170, %v1171
        %v1173 = vand.u32 %v1172, 4294901760
        %1174 = vmatpush1.msra.mxu0 %v1173
        %1175 = vmatprep.subr.mxu0 0.0
        %v1176 = vand.u32 %v384, 4294901760
        %v1177 = vsub.f32 %v384, %v1176
        %v1178 = vand.u32 %v1177, 4294901760
        %v1179 = vsub.f32 %v1177, %v1178
        %v1180 = vand.u32 %v1179, 4294901760
        %1181 = vmatpush1.msra.mxu0 %v1180
        %1182 = vmatprep.subr.mxu0 0.0
        %v1183 = vand.u32 %v383, 4294901760
        %v1184 = vsub.f32 %v383, %v1183
        %v1185 = vand.u32 %v1184, 4294901760
        %v1186 = vsub.f32 %v1184, %v1185
        %v1187 = vand.u32 %v1186, 4294901760
        %1188 = vmatpush1.msra.mxu0 %v1187
        %1189 = vmatprep.subr.mxu0 0.0
        %v1190 = vand.u32 %v382, 4294901760
        %v1191 = vsub.f32 %v382, %v1190
        %v1192 = vand.u32 %v1191, 4294901760
        %v1193 = vsub.f32 %v1191, %v1192
        %v1194 = vand.u32 %v1193, 4294901760
        %1195 = vmatpush1.msra.mxu0 %v1194
        %1196 = vmatprep.subr.mxu0 0.0
        %v1197 = vand.u32 %v381, 4294901760
        %v1198 = vsub.f32 %v381, %v1197
        %v1199 = vand.u32 %v1198, 4294901760
        %v1200 = vsub.f32 %v1198, %v1199
        %v1201 = vand.u32 %v1200, 4294901760
        %1202 = vmatpush1.msra.mxu0 %v1201
        %1203 = vmatprep.subr.mxu0 0.0
        %v1204 = vand.u32 %v380, 4294901760
        %v1205 = vsub.f32 %v380, %v1204
        %v1206 = vand.u32 %v1205, 4294901760
        %v1207 = vsub.f32 %v1205, %v1206
        %v1208 = vand.u32 %v1207, 4294901760
        %1209 = vmatpush1.msra.mxu0 %v1208
        %1210 = vmatprep.subr.mxu0 0.0
        %v1211 = vand.u32 %v379, 4294901760
        %v1212 = vsub.f32 %v379, %v1211
        %v1213 = vand.u32 %v1212, 4294901760
        %v1214 = vsub.f32 %v1212, %v1213
        %v1215 = vand.u32 %v1214, 4294901760
        %1216 = vmatpush1.msra.mxu0 %v1215
        %1217 = vmatprep.subr.mxu0 0.0
        %v1218 = vand.u32 %v378, 4294901760
        %v1219 = vsub.f32 %v378, %v1218
        %v1220 = vand.u32 %v1219, 4294901760
        %v1221 = vsub.f32 %v1219, %v1220
        %v1222 = vand.u32 %v1221, 4294901760
        %1223 = vmatpush1.msra.mxu0 %v1222
        %1224 = vmatprep.subr.mxu0 0.0
        %v1225 = vand.u32 %v377, 4294901760
        %v1226 = vsub.f32 %v377, %v1225
        %v1227 = vand.u32 %v1226, 4294901760
        %v1228 = vsub.f32 %v1226, %v1227
        %v1229 = vand.u32 %v1228, 4294901760
        %1230 = vmatpush1.msra.mxu0 %v1229
        %1231 = vmatprep.subr.mxu0 0.0
        %v1232 = vand.u32 %v376, 4294901760
        %v1233 = vsub.f32 %v376, %v1232
        %v1234 = vand.u32 %v1233, 4294901760
        %v1235 = vsub.f32 %v1233, %v1234
        %v1236 = vand.u32 %v1235, 4294901760
        %1237 = vmatpush1.msra.mxu0 %v1236
        %1238 = vmatprep.subr.mxu0 0.0
        %1239 = vmatpush2.msra.mxu0 0.0
        %1240 = vmatprep.subr.mxu0 0.0
        %1241 = vmatpush2.msra.mxu0 0.0
        %1242 = vmatprep.subr.mxu0 0.0
        %1243 = vmatpush2.msra.mxu0 0.0
        %1244 = vmatprep.subr.mxu0 0.0
        %1245 = vmatpush2.msra.mxu0 0.0
        %1246 = vmatprep.subr.mxu0 0.0
        %1247 = vmatpush2.msra.mxu0 0.0
        %1248 = vmatprep.subr.mxu0 0.0
        %1249 = vmatpush2.msra.mxu0 0.0
        %1250 = vmatprep.subr.mxu0 0.0
        %1251 = vmatpush2.msra.mxu0 0.0
        %1252 = vmatprep.subr.mxu0 0.0
        %1253 = vmatpush2.msra.mxu0 0.0
        %1254 = vmatprep.subr.mxu0 0.0
        %1255 = vmatpush2.msra.mxu0 0.0
        %1256 = vmatprep.subr.mxu0 0.0
        %1257 = vmatpush2.msra.mxu0 0.0
        %1258 = vmatprep.subr.mxu0 0.0
        %1259 = vmatpush2.msra.mxu0 0.0
        %1260 = vmatprep.subr.mxu0 0.0
        %1261 = vmatpush2.msra.mxu0 0.0
        %1262 = vmatprep.subr.mxu0 0.0
        %1263 = vmatpush2.msra.mxu0 0.0
        %1264 = vmatprep.subr.mxu0 0.0
        %1265 = vmatpush2.msra.mxu0 0.0
        %1266 = vmatprep.subr.mxu0 0.0
        %1267 = vmatpush2.msra.mxu0 0.0
        %1268 = vmatprep.subr.mxu0 0.0
        %1269 = vmatpush2.msra.mxu0 0.0
        %1270 = vmatprep.mubr.f32.mxu0 0.0
        %v1271 = vand.u32 %v1034, 4294901760
        %1272 = vmatmul.mubr.f32.gmra.mxu0 %v1271
        %v1273 = vpop.f32.mrf.mxu0
        %v1274 = vadd.f32 %v1123, %v1273
        %v1275 = vpop.f32.mrf.mxu0
        %1276 = vdwg.mxu0
        %1277 = vmatprep.subr.mxu0 0.0
        %v1278 = vand.u32 %v391, 4294901760
        %v1279 = vsub.f32 %v391, %v1278
        %1280 = vmatpush1.msra.mxu0 %v1279
        %1281 = vmatprep.subr.mxu0 0.0
        %v1282 = vand.u32 %v390, 4294901760
        %v1283 = vsub.f32 %v390, %v1282
        %1284 = vmatpush1.msra.mxu0 %v1283
        %1285 = vmatprep.subr.mxu0 0.0
        %v1286 = vand.u32 %v389, 4294901760
        %v1287 = vsub.f32 %v389, %v1286
        %1288 = vmatpush1.msra.mxu0 %v1287
        %1289 = vmatprep.subr.mxu0 0.0
        %v1290 = vand.u32 %v388, 4294901760
        %v1291 = vsub.f32 %v388, %v1290
        %1292 = vmatpush1.msra.mxu0 %v1291
        %1293 = vmatprep.subr.mxu0 0.0
        %v1294 = vand.u32 %v387, 4294901760
        %v1295 = vsub.f32 %v387, %v1294
        %1296 = vmatpush1.msra.mxu0 %v1295
        %1297 = vmatprep.subr.mxu0 0.0
        %v1298 = vand.u32 %v386, 4294901760
        %v1299 = vsub.f32 %v386, %v1298
        %1300 = vmatpush1.msra.mxu0 %v1299
        %1301 = vmatprep.subr.mxu0 0.0
        %v1302 = vand.u32 %v385, 4294901760
        %v1303 = vsub.f32 %v385, %v1302
        %1304 = vmatpush1.msra.mxu0 %v1303
        %1305 = vmatprep.subr.mxu0 0.0
        %v1306 = vand.u32 %v384, 4294901760
        %v1307 = vsub.f32 %v384, %v1306
        %1308 = vmatpush1.msra.mxu0 %v1307
        %1309 = vmatprep.subr.mxu0 0.0
        %v1310 = vand.u32 %v383, 4294901760
        %v1311 = vsub.f32 %v383, %v1310
        %1312 = vmatpush1.msra.mxu0 %v1311
        %1313 = vmatprep.subr.mxu0 0.0
        %v1314 = vand.u32 %v382, 4294901760
        %v1315 = vsub.f32 %v382, %v1314
        %1316 = vmatpush1.msra.mxu0 %v1315
        %1317 = vmatprep.subr.mxu0 0.0
        %v1318 = vand.u32 %v381, 4294901760
        %v1319 = vsub.f32 %v381, %v1318
        %1320 = vmatpush1.msra.mxu0 %v1319
        %1321 = vmatprep.subr.mxu0 0.0
        %v1322 = vand.u32 %v380, 4294901760
        %v1323 = vsub.f32 %v380, %v1322
        %1324 = vmatpush1.msra.mxu0 %v1323
        %1325 = vmatprep.subr.mxu0 0.0
        %v1326 = vand.u32 %v379, 4294901760
        %v1327 = vsub.f32 %v379, %v1326
        %1328 = vmatpush1.msra.mxu0 %v1327
        %1329 = vmatprep.subr.mxu0 0.0
        %v1330 = vand.u32 %v378, 4294901760
        %v1331 = vsub.f32 %v378, %v1330
        %1332 = vmatpush1.msra.mxu0 %v1331
        %1333 = vmatprep.subr.mxu0 0.0
        %v1334 = vand.u32 %v377, 4294901760
        %v1335 = vsub.f32 %v377, %v1334
        %1336 = vmatpush1.msra.mxu0 %v1335
        %1337 = vmatprep.subr.mxu0 0.0
        %v1338 = vand.u32 %v376, 4294901760
        %v1339 = vsub.f32 %v376, %v1338
        %1340 = vmatpush1.msra.mxu0 %v1339
        %1341 = vmatprep.subr.mxu0 0.0
        %1342 = vmatpush2.msra.mxu0 0.0
        %1343 = vmatprep.subr.mxu0 0.0
        %1344 = vmatpush2.msra.mxu0 0.0
        %1345 = vmatprep.subr.mxu0 0.0
        %1346 = vmatpush2.msra.mxu0 0.0
        %1347 = vmatprep.subr.mxu0 0.0
        %1348 = vmatpush2.msra.mxu0 0.0
        %1349 = vmatprep.subr.mxu0 0.0
        %1350 = vmatpush2.msra.mxu0 0.0
        %1351 = vmatprep.subr.mxu0 0.0
        %1352 = vmatpush2.msra.mxu0 0.0
        %1353 = vmatprep.subr.mxu0 0.0
        %1354 = vmatpush2.msra.mxu0 0.0
        %1355 = vmatprep.subr.mxu0 0.0
        %1356 = vmatpush2.msra.mxu0 0.0
        %1357 = vmatprep.subr.mxu0 0.0
        %1358 = vmatpush2.msra.mxu0 0.0
        %1359 = vmatprep.subr.mxu0 0.0
        %1360 = vmatpush2.msra.mxu0 0.0
        %1361 = vmatprep.subr.mxu0 0.0
        %1362 = vmatpush2.msra.mxu0 0.0
        %1363 = vmatprep.subr.mxu0 0.0
        %1364 = vmatpush2.msra.mxu0 0.0
        %1365 = vmatprep.subr.mxu0 0.0
        %1366 = vmatpush2.msra.mxu0 0.0
        %1367 = vmatprep.subr.mxu0 0.0
        %1368 = vmatpush2.msra.mxu0 0.0
        %1369 = vmatprep.subr.mxu0 0.0
        %1370 = vmatpush2.msra.mxu0 0.0
        %1371 = vmatprep.subr.mxu0 0.0
        %1372 = vmatpush2.msra.mxu0 0.0
        %1373 = vmatprep.mubr.f32.mxu0 0.0
        %v1374 = vand.u32 %v1034, 4294901760
        %v1375 = vsub.f32 %v1034, %v1374
        %1376 = vmatmul.mubr.f32.gmra.mxu0 %v1375
        %v1377 = vpop.f32.mrf.mxu0
        %v1378 = vadd.f32 %v1274, %v1377
        %v1379 = vpop.f32.mrf.mxu0
        %1380 = vdwg.mxu0
        %1381 = vmatprep.subr.mxu0 0.0
        %v1382 = vand.u32 %v391, 4294901760
        %1383 = vmatpush1.msra.mxu0 %v1382
        %1384 = vmatprep.subr.mxu0 0.0
        %v1385 = vand.u32 %v390, 4294901760
        %1386 = vmatpush1.msra.mxu0 %v1385
        %1387 = vmatprep.subr.mxu0 0.0
        %v1388 = vand.u32 %v389, 4294901760
        %1389 = vmatpush1.msra.mxu0 %v1388
        %1390 = vmatprep.subr.mxu0 0.0
        %v1391 = vand.u32 %v388, 4294901760
        %1392 = vmatpush1.msra.mxu0 %v1391
        %1393 = vmatprep.subr.mxu0 0.0
        %v1394 = vand.u32 %v387, 4294901760
        %1395 = vmatpush1.msra.mxu0 %v1394
        %1396 = vmatprep.subr.mxu0 0.0
        %v1397 = vand.u32 %v386, 4294901760
        %1398 = vmatpush1.msra.mxu0 %v1397
        %1399 = vmatprep.subr.mxu0 0.0
        %v1400 = vand.u32 %v385, 4294901760
        %1401 = vmatpush1.msra.mxu0 %v1400
        %1402 = vmatprep.subr.mxu0 0.0
        %v1403 = vand.u32 %v384, 4294901760
        %1404 = vmatpush1.msra.mxu0 %v1403
        %1405 = vmatprep.subr.mxu0 0.0
        %v1406 = vand.u32 %v383, 4294901760
        %1407 = vmatpush1.msra.mxu0 %v1406
        %1408 = vmatprep.subr.mxu0 0.0
        %v1409 = vand.u32 %v382, 4294901760
        %1410 = vmatpush1.msra.mxu0 %v1409
        %1411 = vmatprep.subr.mxu0 0.0
        %v1412 = vand.u32 %v381, 4294901760
        %1413 = vmatpush1.msra.mxu0 %v1412
        %1414 = vmatprep.subr.mxu0 0.0
        %v1415 = vand.u32 %v380, 4294901760
        %1416 = vmatpush1.msra.mxu0 %v1415
        %1417 = vmatprep.subr.mxu0 0.0
        %v1418 = vand.u32 %v379, 4294901760
        %1419 = vmatpush1.msra.mxu0 %v1418
        %1420 = vmatprep.subr.mxu0 0.0
        %v1421 = vand.u32 %v378, 4294901760
        %1422 = vmatpush1.msra.mxu0 %v1421
        %1423 = vmatprep.subr.mxu0 0.0
        %v1424 = vand.u32 %v377, 4294901760
        %1425 = vmatpush1.msra.mxu0 %v1424
        %1426 = vmatprep.subr.mxu0 0.0
        %v1427 = vand.u32 %v376, 4294901760
        %1428 = vmatpush1.msra.mxu0 %v1427
        %1429 = vmatprep.subr.mxu0 0.0
        %1430 = vmatpush2.msra.mxu0 0.0
        %1431 = vmatprep.subr.mxu0 0.0
        %1432 = vmatpush2.msra.mxu0 0.0
        %1433 = vmatprep.subr.mxu0 0.0
        %1434 = vmatpush2.msra.mxu0 0.0
        %1435 = vmatprep.subr.mxu0 0.0
        %1436 = vmatpush2.msra.mxu0 0.0
        %1437 = vmatprep.subr.mxu0 0.0
        %1438 = vmatpush2.msra.mxu0 0.0
        %1439 = vmatprep.subr.mxu0 0.0
        %1440 = vmatpush2.msra.mxu0 0.0
        %1441 = vmatprep.subr.mxu0 0.0
        %1442 = vmatpush2.msra.mxu0 0.0
        %1443 = vmatprep.subr.mxu0 0.0
        %1444 = vmatpush2.msra.mxu0 0.0
        %1445 = vmatprep.subr.mxu0 0.0
        %1446 = vmatpush2.msra.mxu0 0.0
        %1447 = vmatprep.subr.mxu0 0.0
        %1448 = vmatpush2.msra.mxu0 0.0
        %1449 = vmatprep.subr.mxu0 0.0
        %1450 = vmatpush2.msra.mxu0 0.0
        %1451 = vmatprep.subr.mxu0 0.0
        %1452 = vmatpush2.msra.mxu0 0.0
        %1453 = vmatprep.subr.mxu0 0.0
        %1454 = vmatpush2.msra.mxu0 0.0
        %1455 = vmatprep.subr.mxu0 0.0
        %1456 = vmatpush2.msra.mxu0 0.0
        %1457 = vmatprep.subr.mxu0 0.0
        %1458 = vmatpush2.msra.mxu0 0.0
        %1459 = vmatprep.subr.mxu0 0.0
        %1460 = vmatpush2.msra.mxu0 0.0
        %1461 = vmatprep.mubr.f32.mxu0 0.0
        %v1462 = vand.u32 %v1034, 4294901760
        %v1463 = vsub.f32 %v1034, %v1462
        %v1464 = vand.u32 %v1463, 4294901760
        %1465 = vmatmul.mubr.f32.gmra.mxu0 %v1464
        %v1466 = vpop.f32.mrf.mxu0
        %v1467 = vadd.f32 %v1378, %v1466
        %v1468 = vpop.f32.mrf.mxu0
        %1469 = vdwg.mxu0
        %1470 = vmatprep.subr.mxu0 0.0
        %v1471 = vand.u32 %v391, 4294901760
        %v1472 = vsub.f32 %v391, %v1471
        %v1473 = vand.u32 %v1472, 4294901760
        %1474 = vmatpush1.msra.mxu0 %v1473
        %1475 = vmatprep.subr.mxu0 0.0
        %v1476 = vand.u32 %v390, 4294901760
        %v1477 = vsub.f32 %v390, %v1476
        %v1478 = vand.u32 %v1477, 4294901760
        %1479 = vmatpush1.msra.mxu0 %v1478
        %1480 = vmatprep.subr.mxu0 0.0
        %v1481 = vand.u32 %v389, 4294901760
        %v1482 = vsub.f32 %v389, %v1481
        %v1483 = vand.u32 %v1482, 4294901760
        %1484 = vmatpush1.msra.mxu0 %v1483
        %1485 = vmatprep.subr.mxu0 0.0
        %v1486 = vand.u32 %v388, 4294901760
        %v1487 = vsub.f32 %v388, %v1486
        %v1488 = vand.u32 %v1487, 4294901760
        %1489 = vmatpush1.msra.mxu0 %v1488
        %1490 = vmatprep.subr.mxu0 0.0
        %v1491 = vand.u32 %v387, 4294901760
        %v1492 = vsub.f32 %v387, %v1491
        %v1493 = vand.u32 %v1492, 4294901760
        %1494 = vmatpush1.msra.mxu0 %v1493
        %1495 = vmatprep.subr.mxu0 0.0
        %v1496 = vand.u32 %v386, 4294901760
        %v1497 = vsub.f32 %v386, %v1496
        %v1498 = vand.u32 %v1497, 4294901760
        %1499 = vmatpush1.msra.mxu0 %v1498
        %1500 = vmatprep.subr.mxu0 0.0
        %v1501 = vand.u32 %v385, 4294901760
        %v1502 = vsub.f32 %v385, %v1501
        %v1503 = vand.u32 %v1502, 4294901760
        %1504 = vmatpush1.msra.mxu0 %v1503
        %1505 = vmatprep.subr.mxu0 0.0
        %v1506 = vand.u32 %v384, 4294901760
        %v1507 = vsub.f32 %v384, %v1506
        %v1508 = vand.u32 %v1507, 4294901760
        %1509 = vmatpush1.msra.mxu0 %v1508
        %1510 = vmatprep.subr.mxu0 0.0
        %v1511 = vand.u32 %v383, 4294901760
        %v1512 = vsub.f32 %v383, %v1511
        %v1513 = vand.u32 %v1512, 4294901760
        %1514 = vmatpush1.msra.mxu0 %v1513
        %1515 = vmatprep.subr.mxu0 0.0
        %v1516 = vand.u32 %v382, 4294901760
        %v1517 = vsub.f32 %v382, %v1516
        %v1518 = vand.u32 %v1517, 4294901760
        %1519 = vmatpush1.msra.mxu0 %v1518
        %1520 = vmatprep.subr.mxu0 0.0
        %v1521 = vand.u32 %v381, 4294901760
        %v1522 = vsub.f32 %v381, %v1521
        %v1523 = vand.u32 %v1522, 4294901760
        %1524 = vmatpush1.msra.mxu0 %v1523
        %1525 = vmatprep.subr.mxu0 0.0
        %v1526 = vand.u32 %v380, 4294901760
        %v1527 = vsub.f32 %v380, %v1526
        %v1528 = vand.u32 %v1527, 4294901760
        %1529 = vmatpush1.msra.mxu0 %v1528
        %1530 = vmatprep.subr.mxu0 0.0
        %v1531 = vand.u32 %v379, 4294901760
        %v1532 = vsub.f32 %v379, %v1531
        %v1533 = vand.u32 %v1532, 4294901760
        %1534 = vmatpush1.msra.mxu0 %v1533
        %1535 = vmatprep.subr.mxu0 0.0
        %v1536 = vand.u32 %v378, 4294901760
        %v1537 = vsub.f32 %v378, %v1536
        %v1538 = vand.u32 %v1537, 4294901760
        %1539 = vmatpush1.msra.mxu0 %v1538
        %1540 = vmatprep.subr.mxu0 0.0
        %v1541 = vand.u32 %v377, 4294901760
        %v1542 = vsub.f32 %v377, %v1541
        %v1543 = vand.u32 %v1542, 4294901760
        %1544 = vmatpush1.msra.mxu0 %v1543
        %1545 = vmatprep.subr.mxu0 0.0
        %v1546 = vand.u32 %v376, 4294901760
        %v1547 = vsub.f32 %v376, %v1546
        %v1548 = vand.u32 %v1547, 4294901760
        %1549 = vmatpush1.msra.mxu0 %v1548
        %1550 = vmatprep.subr.mxu0 0.0
        %1551 = vmatpush2.msra.mxu0 0.0
        %1552 = vmatprep.subr.mxu0 0.0
        %1553 = vmatpush2.msra.mxu0 0.0
        %1554 = vmatprep.subr.mxu0 0.0
        %1555 = vmatpush2.msra.mxu0 0.0
        %1556 = vmatprep.subr.mxu0 0.0
        %1557 = vmatpush2.msra.mxu0 0.0
        %1558 = vmatprep.subr.mxu0 0.0
        %1559 = vmatpush2.msra.mxu0 0.0
        %1560 = vmatprep.subr.mxu0 0.0
        %1561 = vmatpush2.msra.mxu0 0.0
        %1562 = vmatprep.subr.mxu0 0.0
        %1563 = vmatpush2.msra.mxu0 0.0
        %1564 = vmatprep.subr.mxu0 0.0
        %1565 = vmatpush2.msra.mxu0 0.0
        %1566 = vmatprep.subr.mxu0 0.0
        %1567 = vmatpush2.msra.mxu0 0.0
        %1568 = vmatprep.subr.mxu0 0.0
        %1569 = vmatpush2.msra.mxu0 0.0
        %1570 = vmatprep.subr.mxu0 0.0
        %1571 = vmatpush2.msra.mxu0 0.0
        %1572 = vmatprep.subr.mxu0 0.0
        %1573 = vmatpush2.msra.mxu0 0.0
        %1574 = vmatprep.subr.mxu0 0.0
        %1575 = vmatpush2.msra.mxu0 0.0
        %1576 = vmatprep.subr.mxu0 0.0
        %1577 = vmatpush2.msra.mxu0 0.0
        %1578 = vmatprep.subr.mxu0 0.0
        %1579 = vmatpush2.msra.mxu0 0.0
        %1580 = vmatprep.subr.mxu0 0.0
        %1581 = vmatpush2.msra.mxu0 0.0
        %1582 = vmatprep.mubr.f32.mxu0 0.0
        %v1583 = vand.u32 %v1034, 4294901760
        %1584 = vmatmul.mubr.f32.gmra.mxu0 %v1583
        %v1585 = vpop.f32.mrf.mxu0
        %v1586 = vadd.f32 %v1467, %v1585
        %v1587 = vpop.f32.mrf.mxu0
        %1588 = vdwg.mxu0
        %1589 = vmatprep.subr.mxu0 0.0
        %v1590 = vand.u32 %v391, 4294901760
        %1591 = vmatpush1.msra.mxu0 %v1590
        %1592 = vmatprep.subr.mxu0 0.0
        %v1593 = vand.u32 %v390, 4294901760
        %1594 = vmatpush1.msra.mxu0 %v1593
        %1595 = vmatprep.subr.mxu0 0.0
        %v1596 = vand.u32 %v389, 4294901760
        %1597 = vmatpush1.msra.mxu0 %v1596
        %1598 = vmatprep.subr.mxu0 0.0
        %v1599 = vand.u32 %v388, 4294901760
        %1600 = vmatpush1.msra.mxu0 %v1599
        %1601 = vmatprep.subr.mxu0 0.0
        %v1602 = vand.u32 %v387, 4294901760
        %1603 = vmatpush1.msra.mxu0 %v1602
        %1604 = vmatprep.subr.mxu0 0.0
        %v1605 = vand.u32 %v386, 4294901760
        %1606 = vmatpush1.msra.mxu0 %v1605
        %1607 = vmatprep.subr.mxu0 0.0
        %v1608 = vand.u32 %v385, 4294901760
        %1609 = vmatpush1.msra.mxu0 %v1608
        %1610 = vmatprep.subr.mxu0 0.0
        %v1611 = vand.u32 %v384, 4294901760
        %1612 = vmatpush1.msra.mxu0 %v1611
        %1613 = vmatprep.subr.mxu0 0.0
        %v1614 = vand.u32 %v383, 4294901760
        %1615 = vmatpush1.msra.mxu0 %v1614
        %1616 = vmatprep.subr.mxu0 0.0
        %v1617 = vand.u32 %v382, 4294901760
        %1618 = vmatpush1.msra.mxu0 %v1617
        %1619 = vmatprep.subr.mxu0 0.0
        %v1620 = vand.u32 %v381, 4294901760
        %1621 = vmatpush1.msra.mxu0 %v1620
        %1622 = vmatprep.subr.mxu0 0.0
        %v1623 = vand.u32 %v380, 4294901760
        %1624 = vmatpush1.msra.mxu0 %v1623
        %1625 = vmatprep.subr.mxu0 0.0
        %v1626 = vand.u32 %v379, 4294901760
        %1627 = vmatpush1.msra.mxu0 %v1626
        %1628 = vmatprep.subr.mxu0 0.0
        %v1629 = vand.u32 %v378, 4294901760
        %1630 = vmatpush1.msra.mxu0 %v1629
        %1631 = vmatprep.subr.mxu0 0.0
        %v1632 = vand.u32 %v377, 4294901760
        %1633 = vmatpush1.msra.mxu0 %v1632
        %1634 = vmatprep.subr.mxu0 0.0
        %v1635 = vand.u32 %v376, 4294901760
        %1636 = vmatpush1.msra.mxu0 %v1635
        %1637 = vmatprep.subr.mxu0 0.0
        %1638 = vmatpush2.msra.mxu0 0.0
        %1639 = vmatprep.subr.mxu0 0.0
        %1640 = vmatpush2.msra.mxu0 0.0
        %1641 = vmatprep.subr.mxu0 0.0
        %1642 = vmatpush2.msra.mxu0 0.0
        %1643 = vmatprep.subr.mxu0 0.0
        %1644 = vmatpush2.msra.mxu0 0.0
        %1645 = vmatprep.subr.mxu0 0.0
        %1646 = vmatpush2.msra.mxu0 0.0
        %1647 = vmatprep.subr.mxu0 0.0
        %1648 = vmatpush2.msra.mxu0 0.0
        %1649 = vmatprep.subr.mxu0 0.0
        %1650 = vmatpush2.msra.mxu0 0.0
        %1651 = vmatprep.subr.mxu0 0.0
        %1652 = vmatpush2.msra.mxu0 0.0
        %1653 = vmatprep.subr.mxu0 0.0
        %1654 = vmatpush2.msra.mxu0 0.0
        %1655 = vmatprep.subr.mxu0 0.0
        %1656 = vmatpush2.msra.mxu0 0.0
        %1657 = vmatprep.subr.mxu0 0.0
        %1658 = vmatpush2.msra.mxu0 0.0
        %1659 = vmatprep.subr.mxu0 0.0
        %1660 = vmatpush2.msra.mxu0 0.0
        %1661 = vmatprep.subr.mxu0 0.0
        %1662 = vmatpush2.msra.mxu0 0.0
        %1663 = vmatprep.subr.mxu0 0.0
        %1664 = vmatpush2.msra.mxu0 0.0
        %1665 = vmatprep.subr.mxu0 0.0
        %1666 = vmatpush2.msra.mxu0 0.0
        %1667 = vmatprep.subr.mxu0 0.0
        %1668 = vmatpush2.msra.mxu0 0.0
        %1669 = vmatprep.mubr.f32.mxu0 0.0
        %v1670 = vand.u32 %v1034, 4294901760
        %1671 = vmatmul.mubr.f32.gmra.mxu0 %v1670
        %v1672 = vpop.f32.mrf.mxu0
        %v1673 = vadd.f32 %v1586, %v1672
        %v1674 = vpop.f32.mrf.mxu0
        %1675 = vdwg.mxu0
        %v1676 = vrsqrt.pop %v1673
        %v1677 = vmul.f32 %v1673, %v1676
        %vm1678 = vcmp.eq.f32.partialorder %v1673, inf
        %v1679 = vsel %vm1678, %v1673, %v1677
        %vm1680 = vcmp.eq.f32.partialorder %v1673, 0.0
        %v1681 = vand.u32 %v1673, 2147483648
        %v1682 = vsel %vm1680, %v1681, %v1679
        %v1683 = vadd.f32 %v1682, 1e-05
        %v1684 = vrcp.pop %v1683
        %v1685 = vmul.f32 %v1033, %v1684
        %v1687 = vlaneseq
        %v1688 = vshrl.u32 %v1687, 7
        %v1689 = vsub.s32 0, %v1688
        %v1690 = vrot.slane %v356, %v1689
        %v1692 = vmul.f32 %v1690, %v1685
        %v1694 = vlaneseq
        %v1695 = vshrl.u32 %v1694, 7
        %v1696 = vsub.s32 0, %v1695
        %v1697 = vrot.slane %v357, %v1696
        %v1699 = vadd.f32 %v1692, %v1697
        %v1701 = vlaneseq
        %v1702 = vshrl.u32 %v1701, 7
        %v1703 = vsub.s32 0, %v1702
        %v1704 = vrot.slane %v358, %v1703
        %v1706 = vmul.f32 %v1704, %v1685
        %v1708 = vlaneseq
        %v1709 = vshrl.u32 %v1708, 7
        %v1710 = vsub.s32 0, %v1709
        %v1711 = vrot.slane %v359, %v1710
        %v1713 = vadd.f32 %v1706, %v1711
        %1714 = vxpose.xlu0.b32.start [1/16] %v1699, 128
        %1715 = vxpose.xlu0.b32.cont [2/16] 0.0, 128
        %1716 = vxpose.xlu0.b32.cont [3/16] 0.0, 128
        %1717 = vxpose.xlu0.b32.cont [4/16] 0.0, 128
        %1718 = vxpose.xlu0.b32.cont [5/16] 0.0, 128
        %1719 = vxpose.xlu0.b32.cont [6/16] 0.0, 128
        %1720 = vxpose.xlu0.b32.cont [7/16] 0.0, 128
        %1721 = vxpose.xlu0.b32.cont [8/16] 0.0, 128
        %1722 = vxpose.xlu0.b32.cont [9/16] 0.0, 128
        %1723 = vxpose.xlu0.b32.cont [10/16] 0.0, 128
        %1724 = vxpose.xlu0.b32.cont [11/16] 0.0, 128
        %1725 = vxpose.xlu0.b32.cont [12/16] 0.0, 128
        %1726 = vxpose.xlu0.b32.cont [13/16] 0.0, 128
        %1727 = vxpose.xlu0.b32.cont [14/16] 0.0, 128
        %1728 = vxpose.xlu0.b32.cont [15/16] 0.0, 128
        %1729 = vxpose.xlu0.b32.end [16/16] 0.0, 128
        %v1730 = vpop.trf.xlu0
        %v1731 = vpop.trf.xlu0
        %v1732 = vpop.trf.xlu0
        %v1733 = vpop.trf.xlu0
        %v1734 = vpop.trf.xlu0
        %v1735 = vpop.trf.xlu0
        %v1736 = vpop.trf.xlu0
        %v1737 = vpop.trf.xlu0
        %v1738 = vpop.trf.xlu0
        %v1739 = vpop.trf.xlu0
        %v1740 = vpop.trf.xlu0
        %v1741 = vpop.trf.xlu0
        %v1742 = vpop.trf.xlu0
        %v1743 = vpop.trf.xlu0
        %v1744 = vpop.trf.xlu0
        %v1745 = vpop.trf.xlu0
        %vm1746 = vcmask 15360
        %v1748 = vsel %vm1746, %v1730, 0
        %v1751 = vsel %vm1746, %v1731, 0
        %v1754 = vsel %vm1746, %v1732, 0
        %v1757 = vsel %vm1746, %v1733, 0
        %v1760 = vsel %vm1746, %v1734, 0
        %v1763 = vsel %vm1746, %v1735, 0
        %v1766 = vsel %vm1746, %v1736, 0
        %v1769 = vsel %vm1746, %v1737, 0
        %v1772 = vsel %vm1746, %v1738, 0
        %v1775 = vsel %vm1746, %v1739, 0
        %v1778 = vsel %vm1746, %v1740, 0
        %v1781 = vsel %vm1746, %v1741, 0
        %v1784 = vsel %vm1746, %v1742, 0
        %v1787 = vsel %vm1746, %v1743, 0
        %v1790 = vsel %vm1746, %v1744, 0
        %v1793 = vsel %vm1746, %v1745, 0
        %vm1795 = vcmask 1041408
        %v1797 = vsel %vm1795, %v1713, 0
        %1799 = vmatprep.subr.mxu0 0.0
        %1800 = vmatpush1.msra.mxu0 0.0
        %1801 = vmatprep.subr.mxu0 0.0
        %1802 = vmatpush1.msra.mxu0 0.0
        %1803 = vmatprep.subr.mxu0 0.0
        %1804 = vmatpush1.msra.mxu0 0.0
        %1805 = vmatprep.subr.mxu0 0.0
        %1806 = vmatpush1.msra.mxu0 0.0
        %1807 = vmatprep.subr.mxu0 0.0
        %1808 = vmatpush1.msra.mxu0 0.0
        %1809 = vmatprep.subr.mxu0 0.0
        %1810 = vmatpush1.msra.mxu0 0.0
        %1811 = vmatprep.subr.mxu0 0.0
        %1812 = vmatpush1.msra.mxu0 0.0
        %1813 = vmatprep.subr.mxu0 0.0
        %1814 = vmatpush1.msra.mxu0 0.0
        %1815 = vmatprep.subr.mxu0 0.0
        %1816 = vmatpush1.msra.mxu0 0.0
        %1817 = vmatprep.subr.mxu0 0.0
        %1818 = vmatpush1.msra.mxu0 0.0
        %1819 = vmatprep.subr.mxu0 0.0
        %1820 = vmatpush1.msra.mxu0 0.0
        %1821 = vmatprep.subr.mxu0 0.0
        %1822 = vmatpush1.msra.mxu0 0.0
        %1823 = vmatprep.subr.mxu0 0.0
        %1824 = vmatpush1.msra.mxu0 0.0
        %1825 = vmatprep.subr.mxu0 0.0
        %1826 = vmatpush1.msra.mxu0 0.0
        %1827 = vmatprep.subr.mxu0 0.0
        %1828 = vmatpush1.msra.mxu0 0.0
        %1829 = vmatprep.subr.mxu0 0.0
        %1830 = vmatpush1.msra.mxu0 %v1797
        %1831 = vmatprep.subr.mxu0 0.0
        %1832 = vmatpush2.msra.mxu0 0.0
        %1833 = vmatprep.subr.mxu0 0.0
        %1834 = vmatpush2.msra.mxu0 0.0
        %1835 = vmatprep.subr.mxu0 0.0
        %1836 = vmatpush2.msra.mxu0 0.0
        %1837 = vmatprep.subr.mxu0 0.0
        %1838 = vmatpush2.msra.mxu0 0.0
        %1839 = vmatprep.subr.mxu0 0.0
        %1840 = vmatpush2.msra.mxu0 0.0
        %1841 = vmatprep.subr.mxu0 0.0
        %1842 = vmatpush2.msra.mxu0 0.0
        %1843 = vmatprep.subr.mxu0 0.0
        %1844 = vmatpush2.msra.mxu0 0.0
        %1845 = vmatprep.subr.mxu0 0.0
        %1846 = vmatpush2.msra.mxu0 0.0
        %1847 = vmatprep.subr.mxu0 0.0
        %1848 = vmatpush2.msra.mxu0 0.0
        %1849 = vmatprep.subr.mxu0 0.0
        %1850 = vmatpush2.msra.mxu0 0.0
        %1851 = vmatprep.subr.mxu0 0.0
        %1852 = vmatpush2.msra.mxu0 0.0
        %1853 = vmatprep.subr.mxu0 0.0
        %1854 = vmatpush2.msra.mxu0 0.0
        %1855 = vmatprep.subr.mxu0 0.0
        %1856 = vmatpush2.msra.mxu0 0.0
        %1857 = vmatprep.subr.mxu0 0.0
        %1858 = vmatpush2.msra.mxu0 0.0
        %1859 = vmatprep.subr.mxu0 0.0
        %1860 = vmatpush2.msra.mxu0 0.0
        %1861 = vmatprep.subr.mxu0 0.0
        %1862 = vmatpush2.msra.mxu0 0.0
        %1863 = vmatprep.mubr.f32.mxu0 0.0
        %1864 = vmatmul.mubr.f32.gmra.mxu0 %v1748
        %v1865 = vpop.f32.mrf.mxu0
        %v1866 = vadd.f32 0.0, %v1865
        %v1867 = vpop.f32.mrf.mxu0
        %1868 = vmatprep.mubr.f32.mxu0 0.0
        %1869 = vmatmul.mubr.f32.gmra.mxu0 %v1751
        %v1870 = vpop.f32.mrf.mxu0
        %v1871 = vadd.f32 0.0, %v1870
        %v1872 = vpop.f32.mrf.mxu0
        %1873 = vmatprep.mubr.f32.mxu0 0.0
        %1874 = vmatmul.mubr.f32.gmra.mxu0 %v1754
        %v1875 = vpop.f32.mrf.mxu0
        %v1876 = vadd.f32 0.0, %v1875
        %v1877 = vpop.f32.mrf.mxu0
        %1878 = vmatprep.mubr.f32.mxu0 0.0
        %1879 = vmatmul.mubr.f32.gmra.mxu0 %v1757
        %v1880 = vpop.f32.mrf.mxu0
        %v1881 = vadd.f32 0.0, %v1880
        %v1882 = vpop.f32.mrf.mxu0
        %1883 = vmatprep.mubr.f32.mxu0 0.0
        %1884 = vmatmul.mubr.f32.gmra.mxu0 %v1760
        %v1885 = vpop.f32.mrf.mxu0
        %v1886 = vadd.f32 0.0, %v1885
        %v1887 = vpop.f32.mrf.mxu0
        %1888 = vmatprep.mubr.f32.mxu0 0.0
        %1889 = vmatmul.mubr.f32.gmra.mxu0 %v1763
        %v1890 = vpop.f32.mrf.mxu0
        %v1891 = vadd.f32 0.0, %v1890
        %v1892 = vpop.f32.mrf.mxu0
        %1893 = vmatprep.mubr.f32.mxu0 0.0
        %1894 = vmatmul.mubr.f32.gmra.mxu0 %v1766
        %v1895 = vpop.f32.mrf.mxu0
        %v1896 = vadd.f32 0.0, %v1895
        %v1897 = vpop.f32.mrf.mxu0
        %1898 = vmatprep.mubr.f32.mxu0 0.0
        %1899 = vmatmul.mubr.f32.gmra.mxu0 %v1769
        %v1900 = vpop.f32.mrf.mxu0
        %v1901 = vadd.f32 0.0, %v1900
        %v1902 = vpop.f32.mrf.mxu0
        %1903 = vmatprep.mubr.f32.mxu0 0.0
        %1904 = vmatmul.mubr.f32.gmra.mxu0 %v1772
        %v1905 = vpop.f32.mrf.mxu0
        %v1906 = vadd.f32 0.0, %v1905
        %v1907 = vpop.f32.mrf.mxu0
        %1908 = vmatprep.mubr.f32.mxu0 0.0
        %1909 = vmatmul.mubr.f32.gmra.mxu0 %v1775
        %v1910 = vpop.f32.mrf.mxu0
        %v1911 = vadd.f32 0.0, %v1910
        %v1912 = vpop.f32.mrf.mxu0
        %1913 = vmatprep.mubr.f32.mxu0 0.0
        %1914 = vmatmul.mubr.f32.gmra.mxu0 %v1778
        %v1915 = vpop.f32.mrf.mxu0
        %v1916 = vadd.f32 0.0, %v1915
        %v1917 = vpop.f32.mrf.mxu0
        %1918 = vmatprep.mubr.f32.mxu0 0.0
        %1919 = vmatmul.mubr.f32.gmra.mxu0 %v1781
        %v1920 = vpop.f32.mrf.mxu0
        %v1921 = vadd.f32 0.0, %v1920
        %v1922 = vpop.f32.mrf.mxu0
        %1923 = vmatprep.mubr.f32.mxu0 0.0
        %1924 = vmatmul.mubr.f32.gmra.mxu0 %v1784
        %v1925 = vpop.f32.mrf.mxu0
        %v1926 = vadd.f32 0.0, %v1925
        %v1927 = vpop.f32.mrf.mxu0
        %1928 = vmatprep.mubr.f32.mxu0 0.0
        %1929 = vmatmul.mubr.f32.gmra.mxu0 %v1787
        %v1930 = vpop.f32.mrf.mxu0
        %v1931 = vadd.f32 0.0, %v1930
        %v1932 = vpop.f32.mrf.mxu0
        %1933 = vmatprep.mubr.f32.mxu0 0.0
        %1934 = vmatmul.mubr.f32.gmra.mxu0 %v1790
        %v1935 = vpop.f32.mrf.mxu0
        %v1936 = vadd.f32 0.0, %v1935
        %v1937 = vpop.f32.mrf.mxu0
        %1938 = vmatprep.mubr.f32.mxu0 0.0
        %1939 = vmatmul.mubr.f32.gmra.mxu0 %v1793
        %v1940 = vpop.f32.mrf.mxu0
        %v1941 = vadd.f32 0.0, %v1940
        %v1942 = vpop.f32.mrf.mxu0
        %1943 = vdwg.mxu0
        %v1944 = vmul.f32 %v1866, %v324
        %v1945 = vmul.f32 %v1871, %v325
        %v1946 = vmul.f32 %v1876, %v326
        %v1947 = vmul.f32 %v1881, %v327
        %v1948 = vmul.f32 %v1886, %v328
        %v1949 = vmul.f32 %v1891, %v329
        %v1950 = vmul.f32 %v1896, %v330
        %v1951 = vmul.f32 %v1901, %v331
        %v1952 = vmul.f32 %v1906, %v332
        %v1953 = vmul.f32 %v1911, %v333
        %v1954 = vmul.f32 %v1916, %v334
        %v1955 = vmul.f32 %v1921, %v335
        %v1956 = vmul.f32 %v1926, %v336
        %v1957 = vmul.f32 %v1931, %v337
        %v1958 = vmul.f32 %v1936, %v338
        %v1959 = vmul.f32 %v1941, %v339
        %1960 = vmatprep.subr.mxu0 0.0
        %v1961 = vand.u32 %v355, 4294901760
        %1962 = vmatpush1.msra.mxu0 %v1961
        %1963 = vmatprep.subr.mxu0 0.0
        %v1964 = vand.u32 %v354, 4294901760
        %1965 = vmatpush1.msra.mxu0 %v1964
        %1966 = vmatprep.subr.mxu0 0.0
        %v1967 = vand.u32 %v353, 4294901760
        %1968 = vmatpush1.msra.mxu0 %v1967
        %1969 = vmatprep.subr.mxu0 0.0
        %v1970 = vand.u32 %v352, 4294901760
        %1971 = vmatpush1.msra.mxu0 %v1970
        %1972 = vmatprep.subr.mxu0 0.0
        %v1973 = vand.u32 %v351, 4294901760
        %1974 = vmatpush1.msra.mxu0 %v1973
        %1975 = vmatprep.subr.mxu0 0.0
        %v1976 = vand.u32 %v350, 4294901760
        %1977 = vmatpush1.msra.mxu0 %v1976
        %1978 = vmatprep.subr.mxu0 0.0
        %v1979 = vand.u32 %v349, 4294901760
        %1980 = vmatpush1.msra.mxu0 %v1979
        %1981 = vmatprep.subr.mxu0 0.0
        %v1982 = vand.u32 %v348, 4294901760
        %1983 = vmatpush1.msra.mxu0 %v1982
        %1984 = vmatprep.subr.mxu0 0.0
        %v1985 = vand.u32 %v347, 4294901760
        %1986 = vmatpush1.msra.mxu0 %v1985
        %1987 = vmatprep.subr.mxu0 0.0
        %v1988 = vand.u32 %v346, 4294901760
        %1989 = vmatpush1.msra.mxu0 %v1988
        %1990 = vmatprep.subr.mxu0 0.0
        %v1991 = vand.u32 %v345, 4294901760
        %1992 = vmatpush1.msra.mxu0 %v1991
        %1993 = vmatprep.subr.mxu0 0.0
        %v1994 = vand.u32 %v344, 4294901760
        %1995 = vmatpush1.msra.mxu0 %v1994
        %1996 = vmatprep.subr.mxu0 0.0
        %v1997 = vand.u32 %v343, 4294901760
        %1998 = vmatpush1.msra.mxu0 %v1997
        %1999 = vmatprep.subr.mxu0 0.0
        %v2000 = vand.u32 %v342, 4294901760
        %2001 = vmatpush1.msra.mxu0 %v2000
        %2002 = vmatprep.subr.mxu0 0.0
        %v2003 = vand.u32 %v341, 4294901760
        %2004 = vmatpush1.msra.mxu0 %v2003
        %2005 = vmatprep.subr.mxu0 0.0
        %v2006 = vand.u32 %v340, 4294901760
        %2007 = vmatpush1.msra.mxu0 %v2006
        %2008 = vmatprep.subr.mxu0 0.0
        %2009 = vmatpush2.msra.mxu0 0.0
        %2010 = vmatprep.subr.mxu0 0.0
        %2011 = vmatpush2.msra.mxu0 0.0
        %2012 = vmatprep.subr.mxu0 0.0
        %2013 = vmatpush2.msra.mxu0 0.0
        %2014 = vmatprep.subr.mxu0 0.0
        %2015 = vmatpush2.msra.mxu0 0.0
        %2016 = vmatprep.subr.mxu0 0.0
        %2017 = vmatpush2.msra.mxu0 0.0
        %2018 = vmatprep.subr.mxu0 0.0
        %2019 = vmatpush2.msra.mxu0 0.0
        %2020 = vmatprep.subr.mxu0 0.0
        %2021 = vmatpush2.msra.mxu0 0.0
        %2022 = vmatprep.subr.mxu0 0.0
        %2023 = vmatpush2.msra.mxu0 0.0
        %2024 = vmatprep.subr.mxu0 0.0
        %2025 = vmatpush2.msra.mxu0 0.0
        %2026 = vmatprep.subr.mxu0 0.0
        %2027 = vmatpush2.msra.mxu0 0.0
        %2028 = vmatprep.subr.mxu0 0.0
        %2029 = vmatpush2.msra.mxu0 0.0
        %2030 = vmatprep.subr.mxu0 0.0
        %2031 = vmatpush2.msra.mxu0 0.0
        %2032 = vmatprep.subr.mxu0 0.0
        %2033 = vmatpush2.msra.mxu0 0.0
        %2034 = vmatprep.subr.mxu0 0.0
        %2035 = vmatpush2.msra.mxu0 0.0
        %2036 = vmatprep.subr.mxu0 0.0
        %2037 = vmatpush2.msra.mxu0 0.0
        %2038 = vmatprep.subr.mxu0 0.0
        %2039 = vmatpush2.msra.mxu0 0.0
        %2040 = vmatprep.mubr.f32.mxu0 0.0
        %v2041 = vand.u32 %v1944, 4294901760
        %v2042 = vsub.f32 %v1944, %v2041
        %v2043 = vand.u32 %v2042, 4294901760
        %v2044 = vsub.f32 %v2042, %v2043
        %v2045 = vand.u32 %v2044, 4294901760
        %2046 = vmatmul.mubr.f32.gmra.mxu0 %v2045
        %v2047 = vpop.f32.mrf.mxu0
        %v2048 = vadd.f32 0.0, %v2047
        %v2049 = vpop.f32.mrf.mxu0
        %2050 = vmatprep.mubr.f32.mxu0 0.0
        %v2051 = vand.u32 %v1945, 4294901760
        %v2052 = vsub.f32 %v1945, %v2051
        %v2053 = vand.u32 %v2052, 4294901760
        %v2054 = vsub.f32 %v2052, %v2053
        %v2055 = vand.u32 %v2054, 4294901760
        %2056 = vmatmul.mubr.f32.gmra.mxu0 %v2055
        %v2057 = vpop.f32.mrf.mxu0
        %v2058 = vadd.f32 0.0, %v2057
        %v2059 = vpop.f32.mrf.mxu0
        %2060 = vmatprep.mubr.f32.mxu0 0.0
        %v2061 = vand.u32 %v1946, 4294901760
        %v2062 = vsub.f32 %v1946, %v2061
        %v2063 = vand.u32 %v2062, 4294901760
        %v2064 = vsub.f32 %v2062, %v2063
        %v2065 = vand.u32 %v2064, 4294901760
        %2066 = vmatmul.mubr.f32.gmra.mxu0 %v2065
        %v2067 = vpop.f32.mrf.mxu0
        %v2068 = vadd.f32 0.0, %v2067
        %v2069 = vpop.f32.mrf.mxu0
        %2070 = vmatprep.mubr.f32.mxu0 0.0
        %v2071 = vand.u32 %v1947, 4294901760
        %v2072 = vsub.f32 %v1947, %v2071
        %v2073 = vand.u32 %v2072, 4294901760
        %v2074 = vsub.f32 %v2072, %v2073
        %v2075 = vand.u32 %v2074, 4294901760
        %2076 = vmatmul.mubr.f32.gmra.mxu0 %v2075
        %v2077 = vpop.f32.mrf.mxu0
        %v2078 = vadd.f32 0.0, %v2077
        %v2079 = vpop.f32.mrf.mxu0
        %2080 = vmatprep.mubr.f32.mxu0 0.0
        %v2081 = vand.u32 %v1948, 4294901760
        %v2082 = vsub.f32 %v1948, %v2081
        %v2083 = vand.u32 %v2082, 4294901760
        %v2084 = vsub.f32 %v2082, %v2083
        %v2085 = vand.u32 %v2084, 4294901760
        %2086 = vmatmul.mubr.f32.gmra.mxu0 %v2085
        %v2087 = vpop.f32.mrf.mxu0
        %v2088 = vadd.f32 0.0, %v2087
        %v2089 = vpop.f32.mrf.mxu0
        %2090 = vmatprep.mubr.f32.mxu0 0.0
        %v2091 = vand.u32 %v1949, 4294901760
        %v2092 = vsub.f32 %v1949, %v2091
        %v2093 = vand.u32 %v2092, 4294901760
        %v2094 = vsub.f32 %v2092, %v2093
        %v2095 = vand.u32 %v2094, 4294901760
        %2096 = vmatmul.mubr.f32.gmra.mxu0 %v2095
        %v2097 = vpop.f32.mrf.mxu0
        %v2098 = vadd.f32 0.0, %v2097
        %v2099 = vpop.f32.mrf.mxu0
        %2100 = vmatprep.mubr.f32.mxu0 0.0
        %v2101 = vand.u32 %v1950, 4294901760
        %v2102 = vsub.f32 %v1950, %v2101
        %v2103 = vand.u32 %v2102, 4294901760
        %v2104 = vsub.f32 %v2102, %v2103
        %v2105 = vand.u32 %v2104, 4294901760
        %2106 = vmatmul.mubr.f32.gmra.mxu0 %v2105
        %v2107 = vpop.f32.mrf.mxu0
        %v2108 = vadd.f32 0.0, %v2107
        %v2109 = vpop.f32.mrf.mxu0
        %2110 = vmatprep.mubr.f32.mxu0 0.0
        %v2111 = vand.u32 %v1951, 4294901760
        %v2112 = vsub.f32 %v1951, %v2111
        %v2113 = vand.u32 %v2112, 4294901760
        %v2114 = vsub.f32 %v2112, %v2113
        %v2115 = vand.u32 %v2114, 4294901760
        %2116 = vmatmul.mubr.f32.gmra.mxu0 %v2115
        %v2117 = vpop.f32.mrf.mxu0
        %v2118 = vadd.f32 0.0, %v2117
        %v2119 = vpop.f32.mrf.mxu0
        %2120 = vmatprep.mubr.f32.mxu0 0.0
        %v2121 = vand.u32 %v1952, 4294901760
        %v2122 = vsub.f32 %v1952, %v2121
        %v2123 = vand.u32 %v2122, 4294901760
        %v2124 = vsub.f32 %v2122, %v2123
        %v2125 = vand.u32 %v2124, 4294901760
        %2126 = vmatmul.mubr.f32.gmra.mxu0 %v2125
        %v2127 = vpop.f32.mrf.mxu0
        %v2128 = vadd.f32 0.0, %v2127
        %v2129 = vpop.f32.mrf.mxu0
        %2130 = vmatprep.mubr.f32.mxu0 0.0
        %v2131 = vand.u32 %v1953, 4294901760
        %v2132 = vsub.f32 %v1953, %v2131
        %v2133 = vand.u32 %v2132, 4294901760
        %v2134 = vsub.f32 %v2132, %v2133
        %v2135 = vand.u32 %v2134, 4294901760
        %2136 = vmatmul.mubr.f32.gmra.mxu0 %v2135
        %v2137 = vpop.f32.mrf.mxu0
        %v2138 = vadd.f32 0.0, %v2137
        %v2139 = vpop.f32.mrf.mxu0
        %2140 = vmatprep.mubr.f32.mxu0 0.0
        %v2141 = vand.u32 %v1954, 4294901760
        %v2142 = vsub.f32 %v1954, %v2141
        %v2143 = vand.u32 %v2142, 4294901760
        %v2144 = vsub.f32 %v2142, %v2143
        %v2145 = vand.u32 %v2144, 4294901760
        %2146 = vmatmul.mubr.f32.gmra.mxu0 %v2145
        %v2147 = vpop.f32.mrf.mxu0
        %v2148 = vadd.f32 0.0, %v2147
        %v2149 = vpop.f32.mrf.mxu0
        %2150 = vmatprep.mubr.f32.mxu0 0.0
        %v2151 = vand.u32 %v1955, 4294901760
        %v2152 = vsub.f32 %v1955, %v2151
        %v2153 = vand.u32 %v2152, 4294901760
        %v2154 = vsub.f32 %v2152, %v2153
        %v2155 = vand.u32 %v2154, 4294901760
        %2156 = vmatmul.mubr.f32.gmra.mxu0 %v2155
        %v2157 = vpop.f32.mrf.mxu0
        %v2158 = vadd.f32 0.0, %v2157
        %v2159 = vpop.f32.mrf.mxu0
        %2160 = vmatprep.mubr.f32.mxu0 0.0
        %v2161 = vand.u32 %v1956, 4294901760
        %v2162 = vsub.f32 %v1956, %v2161
        %v2163 = vand.u32 %v2162, 4294901760
        %v2164 = vsub.f32 %v2162, %v2163
        %v2165 = vand.u32 %v2164, 4294901760
        %2166 = vmatmul.mubr.f32.gmra.mxu0 %v2165
        %v2167 = vpop.f32.mrf.mxu0
        %v2168 = vadd.f32 0.0, %v2167
        %v2169 = vpop.f32.mrf.mxu0
        %2170 = vmatprep.mubr.f32.mxu0 0.0
        %v2171 = vand.u32 %v1957, 4294901760
        %v2172 = vsub.f32 %v1957, %v2171
        %v2173 = vand.u32 %v2172, 4294901760
        %v2174 = vsub.f32 %v2172, %v2173
        %v2175 = vand.u32 %v2174, 4294901760
        %2176 = vmatmul.mubr.f32.gmra.mxu0 %v2175
        %v2177 = vpop.f32.mrf.mxu0
        %v2178 = vadd.f32 0.0, %v2177
        %v2179 = vpop.f32.mrf.mxu0
        %2180 = vmatprep.mubr.f32.mxu0 0.0
        %v2181 = vand.u32 %v1958, 4294901760
        %v2182 = vsub.f32 %v1958, %v2181
        %v2183 = vand.u32 %v2182, 4294901760
        %v2184 = vsub.f32 %v2182, %v2183
        %v2185 = vand.u32 %v2184, 4294901760
        %2186 = vmatmul.mubr.f32.gmra.mxu0 %v2185
        %v2187 = vpop.f32.mrf.mxu0
        %v2188 = vadd.f32 0.0, %v2187
        %v2189 = vpop.f32.mrf.mxu0
        %2190 = vmatprep.mubr.f32.mxu0 0.0
        %v2191 = vand.u32 %v1959, 4294901760
        %v2192 = vsub.f32 %v1959, %v2191
        %v2193 = vand.u32 %v2192, 4294901760
        %v2194 = vsub.f32 %v2192, %v2193
        %v2195 = vand.u32 %v2194, 4294901760
        %2196 = vmatmul.mubr.f32.gmra.mxu0 %v2195
        %v2197 = vpop.f32.mrf.mxu0
        %v2198 = vadd.f32 0.0, %v2197
        %v2199 = vpop.f32.mrf.mxu0
        %2200 = vdwg.mxu0
        %2201 = vmatprep.subr.mxu0 0.0
        %v2202 = vand.u32 %v355, 4294901760
        %v2203 = vsub.f32 %v355, %v2202
        %v2204 = vand.u32 %v2203, 4294901760
        %v2205 = vsub.f32 %v2203, %v2204
        %v2206 = vand.u32 %v2205, 4294901760
        %2207 = vmatpush1.msra.mxu0 %v2206
        %2208 = vmatprep.subr.mxu0 0.0
        %v2209 = vand.u32 %v354, 4294901760
        %v2210 = vsub.f32 %v354, %v2209
        %v2211 = vand.u32 %v2210, 4294901760
        %v2212 = vsub.f32 %v2210, %v2211
        %v2213 = vand.u32 %v2212, 4294901760
        %2214 = vmatpush1.msra.mxu0 %v2213
        %2215 = vmatprep.subr.mxu0 0.0
        %v2216 = vand.u32 %v353, 4294901760
        %v2217 = vsub.f32 %v353, %v2216
        %v2218 = vand.u32 %v2217, 4294901760
        %v2219 = vsub.f32 %v2217, %v2218
        %v2220 = vand.u32 %v2219, 4294901760
        %2221 = vmatpush1.msra.mxu0 %v2220
        %2222 = vmatprep.subr.mxu0 0.0
        %v2223 = vand.u32 %v352, 4294901760
        %v2224 = vsub.f32 %v352, %v2223
        %v2225 = vand.u32 %v2224, 4294901760
        %v2226 = vsub.f32 %v2224, %v2225
        %v2227 = vand.u32 %v2226, 4294901760
        %2228 = vmatpush1.msra.mxu0 %v2227
        %2229 = vmatprep.subr.mxu0 0.0
        %v2230 = vand.u32 %v351, 4294901760
        %v2231 = vsub.f32 %v351, %v2230
        %v2232 = vand.u32 %v2231, 4294901760
        %v2233 = vsub.f32 %v2231, %v2232
        %v2234 = vand.u32 %v2233, 4294901760
        %2235 = vmatpush1.msra.mxu0 %v2234
        %2236 = vmatprep.subr.mxu0 0.0
        %v2237 = vand.u32 %v350, 4294901760
        %v2238 = vsub.f32 %v350, %v2237
        %v2239 = vand.u32 %v2238, 4294901760
        %v2240 = vsub.f32 %v2238, %v2239
        %v2241 = vand.u32 %v2240, 4294901760
        %2242 = vmatpush1.msra.mxu0 %v2241
        %2243 = vmatprep.subr.mxu0 0.0
        %v2244 = vand.u32 %v349, 4294901760
        %v2245 = vsub.f32 %v349, %v2244
        %v2246 = vand.u32 %v2245, 4294901760
        %v2247 = vsub.f32 %v2245, %v2246
        %v2248 = vand.u32 %v2247, 4294901760
        %2249 = vmatpush1.msra.mxu0 %v2248
        %2250 = vmatprep.subr.mxu0 0.0
        %v2251 = vand.u32 %v348, 4294901760
        %v2252 = vsub.f32 %v348, %v2251
        %v2253 = vand.u32 %v2252, 4294901760
        %v2254 = vsub.f32 %v2252, %v2253
        %v2255 = vand.u32 %v2254, 4294901760
        %2256 = vmatpush1.msra.mxu0 %v2255
        %2257 = vmatprep.subr.mxu0 0.0
        %v2258 = vand.u32 %v347, 4294901760
        %v2259 = vsub.f32 %v347, %v2258
        %v2260 = vand.u32 %v2259, 4294901760
        %v2261 = vsub.f32 %v2259, %v2260
        %v2262 = vand.u32 %v2261, 4294901760
        %2263 = vmatpush1.msra.mxu0 %v2262
        %2264 = vmatprep.subr.mxu0 0.0
        %v2265 = vand.u32 %v346, 4294901760
        %v2266 = vsub.f32 %v346, %v2265
        %v2267 = vand.u32 %v2266, 4294901760
        %v2268 = vsub.f32 %v2266, %v2267
        %v2269 = vand.u32 %v2268, 4294901760
        %2270 = vmatpush1.msra.mxu0 %v2269
        %2271 = vmatprep.subr.mxu0 0.0
        %v2272 = vand.u32 %v345, 4294901760
        %v2273 = vsub.f32 %v345, %v2272
        %v2274 = vand.u32 %v2273, 4294901760
        %v2275 = vsub.f32 %v2273, %v2274
        %v2276 = vand.u32 %v2275, 4294901760
        %2277 = vmatpush1.msra.mxu0 %v2276
        %2278 = vmatprep.subr.mxu0 0.0
        %v2279 = vand.u32 %v344, 4294901760
        %v2280 = vsub.f32 %v344, %v2279
        %v2281 = vand.u32 %v2280, 4294901760
        %v2282 = vsub.f32 %v2280, %v2281
        %v2283 = vand.u32 %v2282, 4294901760
        %2284 = vmatpush1.msra.mxu0 %v2283
        %2285 = vmatprep.subr.mxu0 0.0
        %v2286 = vand.u32 %v343, 4294901760
        %v2287 = vsub.f32 %v343, %v2286
        %v2288 = vand.u32 %v2287, 4294901760
        %v2289 = vsub.f32 %v2287, %v2288
        %v2290 = vand.u32 %v2289, 4294901760
        %2291 = vmatpush1.msra.mxu0 %v2290
        %2292 = vmatprep.subr.mxu0 0.0
        %v2293 = vand.u32 %v342, 4294901760
        %v2294 = vsub.f32 %v342, %v2293
        %v2295 = vand.u32 %v2294, 4294901760
        %v2296 = vsub.f32 %v2294, %v2295
        %v2297 = vand.u32 %v2296, 4294901760
        %2298 = vmatpush1.msra.mxu0 %v2297
        %2299 = vmatprep.subr.mxu0 0.0
        %v2300 = vand.u32 %v341, 4294901760
        %v2301 = vsub.f32 %v341, %v2300
        %v2302 = vand.u32 %v2301, 4294901760
        %v2303 = vsub.f32 %v2301, %v2302
        %v2304 = vand.u32 %v2303, 4294901760
        %2305 = vmatpush1.msra.mxu0 %v2304
        %2306 = vmatprep.subr.mxu0 0.0
        %v2307 = vand.u32 %v340, 4294901760
        %v2308 = vsub.f32 %v340, %v2307
        %v2309 = vand.u32 %v2308, 4294901760
        %v2310 = vsub.f32 %v2308, %v2309
        %v2311 = vand.u32 %v2310, 4294901760
        %2312 = vmatpush1.msra.mxu0 %v2311
        %2313 = vmatprep.subr.mxu0 0.0
        %2314 = vmatpush2.msra.mxu0 0.0
        %2315 = vmatprep.subr.mxu0 0.0
        %2316 = vmatpush2.msra.mxu0 0.0
        %2317 = vmatprep.subr.mxu0 0.0
        %2318 = vmatpush2.msra.mxu0 0.0
        %2319 = vmatprep.subr.mxu0 0.0
        %2320 = vmatpush2.msra.mxu0 0.0
        %2321 = vmatprep.subr.mxu0 0.0
        %2322 = vmatpush2.msra.mxu0 0.0
        %2323 = vmatprep.subr.mxu0 0.0
        %2324 = vmatpush2.msra.mxu0 0.0
        %2325 = vmatprep.subr.mxu0 0.0
        %2326 = vmatpush2.msra.mxu0 0.0
        %2327 = vmatprep.subr.mxu0 0.0
        %2328 = vmatpush2.msra.mxu0 0.0
        %2329 = vmatprep.subr.mxu0 0.0
        %2330 = vmatpush2.msra.mxu0 0.0
        %2331 = vmatprep.subr.mxu0 0.0
        %2332 = vmatpush2.msra.mxu0 0.0
        %2333 = vmatprep.subr.mxu0 0.0
        %2334 = vmatpush2.msra.mxu0 0.0
        %2335 = vmatprep.subr.mxu0 0.0
        %2336 = vmatpush2.msra.mxu0 0.0
        %2337 = vmatprep.subr.mxu0 0.0
        %2338 = vmatpush2.msra.mxu0 0.0
        %2339 = vmatprep.subr.mxu0 0.0
        %2340 = vmatpush2.msra.mxu0 0.0
        %2341 = vmatprep.subr.mxu0 0.0
        %2342 = vmatpush2.msra.mxu0 0.0
        %2343 = vmatprep.subr.mxu0 0.0
        %2344 = vmatpush2.msra.mxu0 0.0
        %2345 = vmatprep.mubr.f32.mxu0 0.0
        %v2346 = vand.u32 %v1944, 4294901760
        %2347 = vmatmul.mubr.f32.gmra.mxu0 %v2346
        %v2348 = vpop.f32.mrf.mxu0
        %v2349 = vadd.f32 %v2048, %v2348
        %v2350 = vpop.f32.mrf.mxu0
        %2351 = vmatprep.mubr.f32.mxu0 0.0
        %v2352 = vand.u32 %v1945, 4294901760
        %2353 = vmatmul.mubr.f32.gmra.mxu0 %v2352
        %v2354 = vpop.f32.mrf.mxu0
        %v2355 = vadd.f32 %v2058, %v2354
        %v2356 = vpop.f32.mrf.mxu0
        %2357 = vmatprep.mubr.f32.mxu0 0.0
        %v2358 = vand.u32 %v1946, 4294901760
        %2359 = vmatmul.mubr.f32.gmra.mxu0 %v2358
        %v2360 = vpop.f32.mrf.mxu0
        %v2361 = vadd.f32 %v2068, %v2360
        %v2362 = vpop.f32.mrf.mxu0
        %2363 = vmatprep.mubr.f32.mxu0 0.0
        %v2364 = vand.u32 %v1947, 4294901760
        %2365 = vmatmul.mubr.f32.gmra.mxu0 %v2364
        %v2366 = vpop.f32.mrf.mxu0
        %v2367 = vadd.f32 %v2078, %v2366
        %v2368 = vpop.f32.mrf.mxu0
        %2369 = vmatprep.mubr.f32.mxu0 0.0
        %v2370 = vand.u32 %v1948, 4294901760
        %2371 = vmatmul.mubr.f32.gmra.mxu0 %v2370
        %v2372 = vpop.f32.mrf.mxu0
        %v2373 = vadd.f32 %v2088, %v2372
        %v2374 = vpop.f32.mrf.mxu0
        %2375 = vmatprep.mubr.f32.mxu0 0.0
        %v2376 = vand.u32 %v1949, 4294901760
        %2377 = vmatmul.mubr.f32.gmra.mxu0 %v2376
        %v2378 = vpop.f32.mrf.mxu0
        %v2379 = vadd.f32 %v2098, %v2378
        %v2380 = vpop.f32.mrf.mxu0
        %2381 = vmatprep.mubr.f32.mxu0 0.0
        %v2382 = vand.u32 %v1950, 4294901760
        %2383 = vmatmul.mubr.f32.gmra.mxu0 %v2382
        %v2384 = vpop.f32.mrf.mxu0
        %v2385 = vadd.f32 %v2108, %v2384
        %v2386 = vpop.f32.mrf.mxu0
        %2387 = vmatprep.mubr.f32.mxu0 0.0
        %v2388 = vand.u32 %v1951, 4294901760
        %2389 = vmatmul.mubr.f32.gmra.mxu0 %v2388
        %v2390 = vpop.f32.mrf.mxu0
        %v2391 = vadd.f32 %v2118, %v2390
        %v2392 = vpop.f32.mrf.mxu0
        %2393 = vmatprep.mubr.f32.mxu0 0.0
        %v2394 = vand.u32 %v1952, 4294901760
        %2395 = vmatmul.mubr.f32.gmra.mxu0 %v2394
        %v2396 = vpop.f32.mrf.mxu0
        %v2397 = vadd.f32 %v2128, %v2396
        %v2398 = vpop.f32.mrf.mxu0
        %2399 = vmatprep.mubr.f32.mxu0 0.0
        %v2400 = vand.u32 %v1953, 4294901760
        %2401 = vmatmul.mubr.f32.gmra.mxu0 %v2400
        %v2402 = vpop.f32.mrf.mxu0
        %v2403 = vadd.f32 %v2138, %v2402
        %v2404 = vpop.f32.mrf.mxu0
        %2405 = vmatprep.mubr.f32.mxu0 0.0
        %v2406 = vand.u32 %v1954, 4294901760
        %2407 = vmatmul.mubr.f32.gmra.mxu0 %v2406
        %v2408 = vpop.f32.mrf.mxu0
        %v2409 = vadd.f32 %v2148, %v2408
        %v2410 = vpop.f32.mrf.mxu0
        %2411 = vmatprep.mubr.f32.mxu0 0.0
        %v2412 = vand.u32 %v1955, 4294901760
        %2413 = vmatmul.mubr.f32.gmra.mxu0 %v2412
        %v2414 = vpop.f32.mrf.mxu0
        %v2415 = vadd.f32 %v2158, %v2414
        %v2416 = vpop.f32.mrf.mxu0
        %2417 = vmatprep.mubr.f32.mxu0 0.0
        %v2418 = vand.u32 %v1956, 4294901760
        %2419 = vmatmul.mubr.f32.gmra.mxu0 %v2418
        %v2420 = vpop.f32.mrf.mxu0
        %v2421 = vadd.f32 %v2168, %v2420
        %v2422 = vpop.f32.mrf.mxu0
        %2423 = vmatprep.mubr.f32.mxu0 0.0
        %v2424 = vand.u32 %v1957, 4294901760
        %2425 = vmatmul.mubr.f32.gmra.mxu0 %v2424
        %v2426 = vpop.f32.mrf.mxu0
        %v2427 = vadd.f32 %v2178, %v2426
        %v2428 = vpop.f32.mrf.mxu0
        %2429 = vmatprep.mubr.f32.mxu0 0.0
        %v2430 = vand.u32 %v1958, 4294901760
        %2431 = vmatmul.mubr.f32.gmra.mxu0 %v2430
        %v2432 = vpop.f32.mrf.mxu0
        %v2433 = vadd.f32 %v2188, %v2432
        %v2434 = vpop.f32.mrf.mxu0
        %2435 = vmatprep.mubr.f32.mxu0 0.0
        %v2436 = vand.u32 %v1959, 4294901760
        %2437 = vmatmul.mubr.f32.gmra.mxu0 %v2436
        %v2438 = vpop.f32.mrf.mxu0
        %v2439 = vadd.f32 %v2198, %v2438
        %v2440 = vpop.f32.mrf.mxu0
        %2441 = vdwg.mxu0
        %2442 = vmatprep.subr.mxu0 0.0
        %v2443 = vand.u32 %v355, 4294901760
        %v2444 = vsub.f32 %v355, %v2443
        %2445 = vmatpush1.msra.mxu0 %v2444
        %2446 = vmatprep.subr.mxu0 0.0
        %v2447 = vand.u32 %v354, 4294901760
        %v2448 = vsub.f32 %v354, %v2447
        %2449 = vmatpush1.msra.mxu0 %v2448
        %2450 = vmatprep.subr.mxu0 0.0
        %v2451 = vand.u32 %v353, 4294901760
        %v2452 = vsub.f32 %v353, %v2451
        %2453 = vmatpush1.msra.mxu0 %v2452
        %2454 = vmatprep.subr.mxu0 0.0
        %v2455 = vand.u32 %v352, 4294901760
        %v2456 = vsub.f32 %v352, %v2455
        %2457 = vmatpush1.msra.mxu0 %v2456
        %2458 = vmatprep.subr.mxu0 0.0
        %v2459 = vand.u32 %v351, 4294901760
        %v2460 = vsub.f32 %v351, %v2459
        %2461 = vmatpush1.msra.mxu0 %v2460
        %2462 = vmatprep.subr.mxu0 0.0
        %v2463 = vand.u32 %v350, 4294901760
        %v2464 = vsub.f32 %v350, %v2463
        %2465 = vmatpush1.msra.mxu0 %v2464
        %2466 = vmatprep.subr.mxu0 0.0
        %v2467 = vand.u32 %v349, 4294901760
        %v2468 = vsub.f32 %v349, %v2467
        %2469 = vmatpush1.msra.mxu0 %v2468
        %2470 = vmatprep.subr.mxu0 0.0
        %v2471 = vand.u32 %v348, 4294901760
        %v2472 = vsub.f32 %v348, %v2471
        %2473 = vmatpush1.msra.mxu0 %v2472
        %2474 = vmatprep.subr.mxu0 0.0
        %v2475 = vand.u32 %v347, 4294901760
        %v2476 = vsub.f32 %v347, %v2475
        %2477 = vmatpush1.msra.mxu0 %v2476
        %2478 = vmatprep.subr.mxu0 0.0
        %v2479 = vand.u32 %v346, 4294901760
        %v2480 = vsub.f32 %v346, %v2479
        %2481 = vmatpush1.msra.mxu0 %v2480
        %2482 = vmatprep.subr.mxu0 0.0
        %v2483 = vand.u32 %v345, 4294901760
        %v2484 = vsub.f32 %v345, %v2483
        %2485 = vmatpush1.msra.mxu0 %v2484
        %2486 = vmatprep.subr.mxu0 0.0
        %v2487 = vand.u32 %v344, 4294901760
        %v2488 = vsub.f32 %v344, %v2487
        %2489 = vmatpush1.msra.mxu0 %v2488
        %2490 = vmatprep.subr.mxu0 0.0
        %v2491 = vand.u32 %v343, 4294901760
        %v2492 = vsub.f32 %v343, %v2491
        %2493 = vmatpush1.msra.mxu0 %v2492
        %2494 = vmatprep.subr.mxu0 0.0
        %v2495 = vand.u32 %v342, 4294901760
        %v2496 = vsub.f32 %v342, %v2495
        %2497 = vmatpush1.msra.mxu0 %v2496
        %2498 = vmatprep.subr.mxu0 0.0
        %v2499 = vand.u32 %v341, 4294901760
        %v2500 = vsub.f32 %v341, %v2499
        %2501 = vmatpush1.msra.mxu0 %v2500
        %2502 = vmatprep.subr.mxu0 0.0
        %v2503 = vand.u32 %v340, 4294901760
        %v2504 = vsub.f32 %v340, %v2503
        %2505 = vmatpush1.msra.mxu0 %v2504
        %2506 = vmatprep.subr.mxu0 0.0
        %2507 = vmatpush2.msra.mxu0 0.0
        %2508 = vmatprep.subr.mxu0 0.0
        %2509 = vmatpush2.msra.mxu0 0.0
        %2510 = vmatprep.subr.mxu0 0.0
        %2511 = vmatpush2.msra.mxu0 0.0
        %2512 = vmatprep.subr.mxu0 0.0
        %2513 = vmatpush2.msra.mxu0 0.0
        %2514 = vmatprep.subr.mxu0 0.0
        %2515 = vmatpush2.msra.mxu0 0.0
        %2516 = vmatprep.subr.mxu0 0.0
        %2517 = vmatpush2.msra.mxu0 0.0
        %2518 = vmatprep.subr.mxu0 0.0
        %2519 = vmatpush2.msra.mxu0 0.0
        %2520 = vmatprep.subr.mxu0 0.0
        %2521 = vmatpush2.msra.mxu0 0.0
        %2522 = vmatprep.subr.mxu0 0.0
        %2523 = vmatpush2.msra.mxu0 0.0
        %2524 = vmatprep.subr.mxu0 0.0
        %2525 = vmatpush2.msra.mxu0 0.0
        %2526 = vmatprep.subr.mxu0 0.0
        %2527 = vmatpush2.msra.mxu0 0.0
        %2528 = vmatprep.subr.mxu0 0.0
        %2529 = vmatpush2.msra.mxu0 0.0
        %2530 = vmatprep.subr.mxu0 0.0
        %2531 = vmatpush2.msra.mxu0 0.0
        %2532 = vmatprep.subr.mxu0 0.0
        %2533 = vmatpush2.msra.mxu0 0.0
        %2534 = vmatprep.subr.mxu0 0.0
        %2535 = vmatpush2.msra.mxu0 0.0
        %2536 = vmatprep.subr.mxu0 0.0
        %2537 = vmatpush2.msra.mxu0 0.0
        %2538 = vmatprep.mubr.f32.mxu0 0.0
        %v2539 = vand.u32 %v1944, 4294901760
        %v2540 = vsub.f32 %v1944, %v2539
        %2541 = vmatmul.mubr.f32.gmra.mxu0 %v2540
        %v2542 = vpop.f32.mrf.mxu0
        %v2543 = vadd.f32 %v2349, %v2542
        %v2544 = vpop.f32.mrf.mxu0
        %2545 = vmatprep.mubr.f32.mxu0 0.0
        %v2546 = vand.u32 %v1945, 4294901760
        %v2547 = vsub.f32 %v1945, %v2546
        %2548 = vmatmul.mubr.f32.gmra.mxu0 %v2547
        %v2549 = vpop.f32.mrf.mxu0
        %v2550 = vadd.f32 %v2355, %v2549
        %v2551 = vpop.f32.mrf.mxu0
        %2552 = vmatprep.mubr.f32.mxu0 0.0
        %v2553 = vand.u32 %v1946, 4294901760
        %v2554 = vsub.f32 %v1946, %v2553
        %2555 = vmatmul.mubr.f32.gmra.mxu0 %v2554
        %v2556 = vpop.f32.mrf.mxu0
        %v2557 = vadd.f32 %v2361, %v2556
        %v2558 = vpop.f32.mrf.mxu0
        %2559 = vmatprep.mubr.f32.mxu0 0.0
        %v2560 = vand.u32 %v1947, 4294901760
        %v2561 = vsub.f32 %v1947, %v2560
        %2562 = vmatmul.mubr.f32.gmra.mxu0 %v2561
        %v2563 = vpop.f32.mrf.mxu0
        %v2564 = vadd.f32 %v2367, %v2563
        %v2565 = vpop.f32.mrf.mxu0
        %2566 = vmatprep.mubr.f32.mxu0 0.0
        %v2567 = vand.u32 %v1948, 4294901760
        %v2568 = vsub.f32 %v1948, %v2567
        %2569 = vmatmul.mubr.f32.gmra.mxu0 %v2568
        %v2570 = vpop.f32.mrf.mxu0
        %v2571 = vadd.f32 %v2373, %v2570
        %v2572 = vpop.f32.mrf.mxu0
        %2573 = vmatprep.mubr.f32.mxu0 0.0
        %v2574 = vand.u32 %v1949, 4294901760
        %v2575 = vsub.f32 %v1949, %v2574
        %2576 = vmatmul.mubr.f32.gmra.mxu0 %v2575
        %v2577 = vpop.f32.mrf.mxu0
        %v2578 = vadd.f32 %v2379, %v2577
        %v2579 = vpop.f32.mrf.mxu0
        %2580 = vmatprep.mubr.f32.mxu0 0.0
        %v2581 = vand.u32 %v1950, 4294901760
        %v2582 = vsub.f32 %v1950, %v2581
        %2583 = vmatmul.mubr.f32.gmra.mxu0 %v2582
        %v2584 = vpop.f32.mrf.mxu0
        %v2585 = vadd.f32 %v2385, %v2584
        %v2586 = vpop.f32.mrf.mxu0
        %2587 = vmatprep.mubr.f32.mxu0 0.0
        %v2588 = vand.u32 %v1951, 4294901760
        %v2589 = vsub.f32 %v1951, %v2588
        %2590 = vmatmul.mubr.f32.gmra.mxu0 %v2589
        %v2591 = vpop.f32.mrf.mxu0
        %v2592 = vadd.f32 %v2391, %v2591
        %v2593 = vpop.f32.mrf.mxu0
        %2594 = vmatprep.mubr.f32.mxu0 0.0
        %v2595 = vand.u32 %v1952, 4294901760
        %v2596 = vsub.f32 %v1952, %v2595
        %2597 = vmatmul.mubr.f32.gmra.mxu0 %v2596
        %v2598 = vpop.f32.mrf.mxu0
        %v2599 = vadd.f32 %v2397, %v2598
        %v2600 = vpop.f32.mrf.mxu0
        %2601 = vmatprep.mubr.f32.mxu0 0.0
        %v2602 = vand.u32 %v1953, 4294901760
        %v2603 = vsub.f32 %v1953, %v2602
        %2604 = vmatmul.mubr.f32.gmra.mxu0 %v2603
        %v2605 = vpop.f32.mrf.mxu0
        %v2606 = vadd.f32 %v2403, %v2605
        %v2607 = vpop.f32.mrf.mxu0
        %2608 = vmatprep.mubr.f32.mxu0 0.0
        %v2609 = vand.u32 %v1954, 4294901760
        %v2610 = vsub.f32 %v1954, %v2609
        %2611 = vmatmul.mubr.f32.gmra.mxu0 %v2610
        %v2612 = vpop.f32.mrf.mxu0
        %v2613 = vadd.f32 %v2409, %v2612
        %v2614 = vpop.f32.mrf.mxu0
        %2615 = vmatprep.mubr.f32.mxu0 0.0
        %v2616 = vand.u32 %v1955, 4294901760
        %v2617 = vsub.f32 %v1955, %v2616
        %2618 = vmatmul.mubr.f32.gmra.mxu0 %v2617
        %v2619 = vpop.f32.mrf.mxu0
        %v2620 = vadd.f32 %v2415, %v2619
        %v2621 = vpop.f32.mrf.mxu0
        %2622 = vmatprep.mubr.f32.mxu0 0.0
        %v2623 = vand.u32 %v1956, 4294901760
        %v2624 = vsub.f32 %v1956, %v2623
        %2625 = vmatmul.mubr.f32.gmra.mxu0 %v2624
        %v2626 = vpop.f32.mrf.mxu0
        %v2627 = vadd.f32 %v2421, %v2626
        %v2628 = vpop.f32.mrf.mxu0
        %2629 = vmatprep.mubr.f32.mxu0 0.0
        %v2630 = vand.u32 %v1957, 4294901760
        %v2631 = vsub.f32 %v1957, %v2630
        %2632 = vmatmul.mubr.f32.gmra.mxu0 %v2631
        %v2633 = vpop.f32.mrf.mxu0
        %v2634 = vadd.f32 %v2427, %v2633
        %v2635 = vpop.f32.mrf.mxu0
        %2636 = vmatprep.mubr.f32.mxu0 0.0
        %v2637 = vand.u32 %v1958, 4294901760
        %v2638 = vsub.f32 %v1958, %v2637
        %2639 = vmatmul.mubr.f32.gmra.mxu0 %v2638
        %v2640 = vpop.f32.mrf.mxu0
        %v2641 = vadd.f32 %v2433, %v2640
        %v2642 = vpop.f32.mrf.mxu0
        %2643 = vmatprep.mubr.f32.mxu0 0.0
        %v2644 = vand.u32 %v1959, 4294901760
        %v2645 = vsub.f32 %v1959, %v2644
        %2646 = vmatmul.mubr.f32.gmra.mxu0 %v2645
        %v2647 = vpop.f32.mrf.mxu0
        %v2648 = vadd.f32 %v2439, %v2647
        %v2649 = vpop.f32.mrf.mxu0
        %2650 = vdwg.mxu0
        %2651 = vmatprep.subr.mxu0 0.0
        %v2652 = vand.u32 %v355, 4294901760
        %2653 = vmatpush1.msra.mxu0 %v2652
        %2654 = vmatprep.subr.mxu0 0.0
        %v2655 = vand.u32 %v354, 4294901760
        %2656 = vmatpush1.msra.mxu0 %v2655
        %2657 = vmatprep.subr.mxu0 0.0
        %v2658 = vand.u32 %v353, 4294901760
        %2659 = vmatpush1.msra.mxu0 %v2658
        %2660 = vmatprep.subr.mxu0 0.0
        %v2661 = vand.u32 %v352, 4294901760
        %2662 = vmatpush1.msra.mxu0 %v2661
        %2663 = vmatprep.subr.mxu0 0.0
        %v2664 = vand.u32 %v351, 4294901760
        %2665 = vmatpush1.msra.mxu0 %v2664
        %2666 = vmatprep.subr.mxu0 0.0
        %v2667 = vand.u32 %v350, 4294901760
        %2668 = vmatpush1.msra.mxu0 %v2667
        %2669 = vmatprep.subr.mxu0 0.0
        %v2670 = vand.u32 %v349, 4294901760
        %2671 = vmatpush1.msra.mxu0 %v2670
        %2672 = vmatprep.subr.mxu0 0.0
        %v2673 = vand.u32 %v348, 4294901760
        %2674 = vmatpush1.msra.mxu0 %v2673
        %2675 = vmatprep.subr.mxu0 0.0
        %v2676 = vand.u32 %v347, 4294901760
        %2677 = vmatpush1.msra.mxu0 %v2676
        %2678 = vmatprep.subr.mxu0 0.0
        %v2679 = vand.u32 %v346, 4294901760
        %2680 = vmatpush1.msra.mxu0 %v2679
        %2681 = vmatprep.subr.mxu0 0.0
        %v2682 = vand.u32 %v345, 4294901760
        %2683 = vmatpush1.msra.mxu0 %v2682
        %2684 = vmatprep.subr.mxu0 0.0
        %v2685 = vand.u32 %v344, 4294901760
        %2686 = vmatpush1.msra.mxu0 %v2685
        %2687 = vmatprep.subr.mxu0 0.0
        %v2688 = vand.u32 %v343, 4294901760
        %2689 = vmatpush1.msra.mxu0 %v2688
        %2690 = vmatprep.subr.mxu0 0.0
        %v2691 = vand.u32 %v342, 4294901760
        %2692 = vmatpush1.msra.mxu0 %v2691
        %2693 = vmatprep.subr.mxu0 0.0
        %v2694 = vand.u32 %v341, 4294901760
        %2695 = vmatpush1.msra.mxu0 %v2694
        %2696 = vmatprep.subr.mxu0 0.0
        %v2697 = vand.u32 %v340, 4294901760
        %2698 = vmatpush1.msra.mxu0 %v2697
        %2699 = vmatprep.subr.mxu0 0.0
        %2700 = vmatpush2.msra.mxu0 0.0
        %2701 = vmatprep.subr.mxu0 0.0
        %2702 = vmatpush2.msra.mxu0 0.0
        %2703 = vmatprep.subr.mxu0 0.0
        %2704 = vmatpush2.msra.mxu0 0.0
        %2705 = vmatprep.subr.mxu0 0.0
        %2706 = vmatpush2.msra.mxu0 0.0
        %2707 = vmatprep.subr.mxu0 0.0
        %2708 = vmatpush2.msra.mxu0 0.0
        %2709 = vmatprep.subr.mxu0 0.0
        %2710 = vmatpush2.msra.mxu0 0.0
        %2711 = vmatprep.subr.mxu0 0.0
        %2712 = vmatpush2.msra.mxu0 0.0
        %2713 = vmatprep.subr.mxu0 0.0
        %2714 = vmatpush2.msra.mxu0 0.0
        %2715 = vmatprep.subr.mxu0 0.0
        %2716 = vmatpush2.msra.mxu0 0.0
        %2717 = vmatprep.subr.mxu0 0.0
        %2718 = vmatpush2.msra.mxu0 0.0
        %2719 = vmatprep.subr.mxu0 0.0
        %2720 = vmatpush2.msra.mxu0 0.0
        %2721 = vmatprep.subr.mxu0 0.0
        %2722 = vmatpush2.msra.mxu0 0.0
        %2723 = vmatprep.subr.mxu0 0.0
        %2724 = vmatpush2.msra.mxu0 0.0
        %2725 = vmatprep.subr.mxu0 0.0
        %2726 = vmatpush2.msra.mxu0 0.0
        %2727 = vmatprep.subr.mxu0 0.0
        %2728 = vmatpush2.msra.mxu0 0.0
        %2729 = vmatprep.subr.mxu0 0.0
        %2730 = vmatpush2.msra.mxu0 0.0
        %2731 = vmatprep.mubr.f32.mxu0 0.0
        %v2732 = vand.u32 %v1944, 4294901760
        %v2733 = vsub.f32 %v1944, %v2732
        %v2734 = vand.u32 %v2733, 4294901760
        %2735 = vmatmul.mubr.f32.gmra.mxu0 %v2734
        %v2736 = vpop.f32.mrf.mxu0
        %v2737 = vadd.f32 %v2543, %v2736
        %v2738 = vpop.f32.mrf.mxu0
        %2739 = vmatprep.mubr.f32.mxu0 0.0
        %v2740 = vand.u32 %v1945, 4294901760
        %v2741 = vsub.f32 %v1945, %v2740
        %v2742 = vand.u32 %v2741, 4294901760
        %2743 = vmatmul.mubr.f32.gmra.mxu0 %v2742
        %v2744 = vpop.f32.mrf.mxu0
        %v2745 = vadd.f32 %v2550, %v2744
        %v2746 = vpop.f32.mrf.mxu0
        %2747 = vmatprep.mubr.f32.mxu0 0.0
        %v2748 = vand.u32 %v1946, 4294901760
        %v2749 = vsub.f32 %v1946, %v2748
        %v2750 = vand.u32 %v2749, 4294901760
        %2751 = vmatmul.mubr.f32.gmra.mxu0 %v2750
        %v2752 = vpop.f32.mrf.mxu0
        %v2753 = vadd.f32 %v2557, %v2752
        %v2754 = vpop.f32.mrf.mxu0
        %2755 = vmatprep.mubr.f32.mxu0 0.0
        %v2756 = vand.u32 %v1947, 4294901760
        %v2757 = vsub.f32 %v1947, %v2756
        %v2758 = vand.u32 %v2757, 4294901760
        %2759 = vmatmul.mubr.f32.gmra.mxu0 %v2758
        %v2760 = vpop.f32.mrf.mxu0
        %v2761 = vadd.f32 %v2564, %v2760
        %v2762 = vpop.f32.mrf.mxu0
        %2763 = vmatprep.mubr.f32.mxu0 0.0
        %v2764 = vand.u32 %v1948, 4294901760
        %v2765 = vsub.f32 %v1948, %v2764
        %v2766 = vand.u32 %v2765, 4294901760
        %2767 = vmatmul.mubr.f32.gmra.mxu0 %v2766
        %v2768 = vpop.f32.mrf.mxu0
        %v2769 = vadd.f32 %v2571, %v2768
        %v2770 = vpop.f32.mrf.mxu0
        %2771 = vmatprep.mubr.f32.mxu0 0.0
        %v2772 = vand.u32 %v1949, 4294901760
        %v2773 = vsub.f32 %v1949, %v2772
        %v2774 = vand.u32 %v2773, 4294901760
        %2775 = vmatmul.mubr.f32.gmra.mxu0 %v2774
        %v2776 = vpop.f32.mrf.mxu0
        %v2777 = vadd.f32 %v2578, %v2776
        %v2778 = vpop.f32.mrf.mxu0
        %2779 = vmatprep.mubr.f32.mxu0 0.0
        %v2780 = vand.u32 %v1950, 4294901760
        %v2781 = vsub.f32 %v1950, %v2780
        %v2782 = vand.u32 %v2781, 4294901760
        %2783 = vmatmul.mubr.f32.gmra.mxu0 %v2782
        %v2784 = vpop.f32.mrf.mxu0
        %v2785 = vadd.f32 %v2585, %v2784
        %v2786 = vpop.f32.mrf.mxu0
        %2787 = vmatprep.mubr.f32.mxu0 0.0
        %v2788 = vand.u32 %v1951, 4294901760
        %v2789 = vsub.f32 %v1951, %v2788
        %v2790 = vand.u32 %v2789, 4294901760
        %2791 = vmatmul.mubr.f32.gmra.mxu0 %v2790
        %v2792 = vpop.f32.mrf.mxu0
        %v2793 = vadd.f32 %v2592, %v2792
        %v2794 = vpop.f32.mrf.mxu0
        %2795 = vmatprep.mubr.f32.mxu0 0.0
        %v2796 = vand.u32 %v1952, 4294901760
        %v2797 = vsub.f32 %v1952, %v2796
        %v2798 = vand.u32 %v2797, 4294901760
        %2799 = vmatmul.mubr.f32.gmra.mxu0 %v2798
        %v2800 = vpop.f32.mrf.mxu0
        %v2801 = vadd.f32 %v2599, %v2800
        %v2802 = vpop.f32.mrf.mxu0
        %2803 = vmatprep.mubr.f32.mxu0 0.0
        %v2804 = vand.u32 %v1953, 4294901760
        %v2805 = vsub.f32 %v1953, %v2804
        %v2806 = vand.u32 %v2805, 4294901760
        %2807 = vmatmul.mubr.f32.gmra.mxu0 %v2806
        %v2808 = vpop.f32.mrf.mxu0
        %v2809 = vadd.f32 %v2606, %v2808
        %v2810 = vpop.f32.mrf.mxu0
        %2811 = vmatprep.mubr.f32.mxu0 0.0
        %v2812 = vand.u32 %v1954, 4294901760
        %v2813 = vsub.f32 %v1954, %v2812
        %v2814 = vand.u32 %v2813, 4294901760
        %2815 = vmatmul.mubr.f32.gmra.mxu0 %v2814
        %v2816 = vpop.f32.mrf.mxu0
        %v2817 = vadd.f32 %v2613, %v2816
        %v2818 = vpop.f32.mrf.mxu0
        %2819 = vmatprep.mubr.f32.mxu0 0.0
        %v2820 = vand.u32 %v1955, 4294901760
        %v2821 = vsub.f32 %v1955, %v2820
        %v2822 = vand.u32 %v2821, 4294901760
        %2823 = vmatmul.mubr.f32.gmra.mxu0 %v2822
        %v2824 = vpop.f32.mrf.mxu0
        %v2825 = vadd.f32 %v2620, %v2824
        %v2826 = vpop.f32.mrf.mxu0
        %2827 = vmatprep.mubr.f32.mxu0 0.0
        %v2828 = vand.u32 %v1956, 4294901760
        %v2829 = vsub.f32 %v1956, %v2828
        %v2830 = vand.u32 %v2829, 4294901760
        %2831 = vmatmul.mubr.f32.gmra.mxu0 %v2830
        %v2832 = vpop.f32.mrf.mxu0
        %v2833 = vadd.f32 %v2627, %v2832
        %v2834 = vpop.f32.mrf.mxu0
        %2835 = vmatprep.mubr.f32.mxu0 0.0
        %v2836 = vand.u32 %v1957, 4294901760
        %v2837 = vsub.f32 %v1957, %v2836
        %v2838 = vand.u32 %v2837, 4294901760
        %2839 = vmatmul.mubr.f32.gmra.mxu0 %v2838
        %v2840 = vpop.f32.mrf.mxu0
        %v2841 = vadd.f32 %v2634, %v2840
        %v2842 = vpop.f32.mrf.mxu0
        %2843 = vmatprep.mubr.f32.mxu0 0.0
        %v2844 = vand.u32 %v1958, 4294901760
        %v2845 = vsub.f32 %v1958, %v2844
        %v2846 = vand.u32 %v2845, 4294901760
        %2847 = vmatmul.mubr.f32.gmra.mxu0 %v2846
        %v2848 = vpop.f32.mrf.mxu0
        %v2849 = vadd.f32 %v2641, %v2848
        %v2850 = vpop.f32.mrf.mxu0
        %2851 = vmatprep.mubr.f32.mxu0 0.0
        %v2852 = vand.u32 %v1959, 4294901760
        %v2853 = vsub.f32 %v1959, %v2852
        %v2854 = vand.u32 %v2853, 4294901760
        %2855 = vmatmul.mubr.f32.gmra.mxu0 %v2854
        %v2856 = vpop.f32.mrf.mxu0
        %v2857 = vadd.f32 %v2648, %v2856
        %v2858 = vpop.f32.mrf.mxu0
        %2859 = vdwg.mxu0
        %2860 = vmatprep.subr.mxu0 0.0
        %v2861 = vand.u32 %v355, 4294901760
        %v2862 = vsub.f32 %v355, %v2861
        %v2863 = vand.u32 %v2862, 4294901760
        %2864 = vmatpush1.msra.mxu0 %v2863
        %2865 = vmatprep.subr.mxu0 0.0
        %v2866 = vand.u32 %v354, 4294901760
        %v2867 = vsub.f32 %v354, %v2866
        %v2868 = vand.u32 %v2867, 4294901760
        %2869 = vmatpush1.msra.mxu0 %v2868
        %2870 = vmatprep.subr.mxu0 0.0
        %v2871 = vand.u32 %v353, 4294901760
        %v2872 = vsub.f32 %v353, %v2871
        %v2873 = vand.u32 %v2872, 4294901760
        %2874 = vmatpush1.msra.mxu0 %v2873
        %2875 = vmatprep.subr.mxu0 0.0
        %v2876 = vand.u32 %v352, 4294901760
        %v2877 = vsub.f32 %v352, %v2876
        %v2878 = vand.u32 %v2877, 4294901760
        %2879 = vmatpush1.msra.mxu0 %v2878
        %2880 = vmatprep.subr.mxu0 0.0
        %v2881 = vand.u32 %v351, 4294901760
        %v2882 = vsub.f32 %v351, %v2881
        %v2883 = vand.u32 %v2882, 4294901760
        %2884 = vmatpush1.msra.mxu0 %v2883
        %2885 = vmatprep.subr.mxu0 0.0
        %v2886 = vand.u32 %v350, 4294901760
        %v2887 = vsub.f32 %v350, %v2886
        %v2888 = vand.u32 %v2887, 4294901760
        %2889 = vmatpush1.msra.mxu0 %v2888
        %2890 = vmatprep.subr.mxu0 0.0
        %v2891 = vand.u32 %v349, 4294901760
        %v2892 = vsub.f32 %v349, %v2891
        %v2893 = vand.u32 %v2892, 4294901760
        %2894 = vmatpush1.msra.mxu0 %v2893
        %2895 = vmatprep.subr.mxu0 0.0
        %v2896 = vand.u32 %v348, 4294901760
        %v2897 = vsub.f32 %v348, %v2896
        %v2898 = vand.u32 %v2897, 4294901760
        %2899 = vmatpush1.msra.mxu0 %v2898
        %2900 = vmatprep.subr.mxu0 0.0
        %v2901 = vand.u32 %v347, 4294901760
        %v2902 = vsub.f32 %v347, %v2901
        %v2903 = vand.u32 %v2902, 4294901760
        %2904 = vmatpush1.msra.mxu0 %v2903
        %2905 = vmatprep.subr.mxu0 0.0
        %v2906 = vand.u32 %v346, 4294901760
        %v2907 = vsub.f32 %v346, %v2906
        %v2908 = vand.u32 %v2907, 4294901760
        %2909 = vmatpush1.msra.mxu0 %v2908
        %2910 = vmatprep.subr.mxu0 0.0
        %v2911 = vand.u32 %v345, 4294901760
        %v2912 = vsub.f32 %v345, %v2911
        %v2913 = vand.u32 %v2912, 4294901760
        %2914 = vmatpush1.msra.mxu0 %v2913
        %2915 = vmatprep.subr.mxu0 0.0
        %v2916 = vand.u32 %v344, 4294901760
        %v2917 = vsub.f32 %v344, %v2916
        %v2918 = vand.u32 %v2917, 4294901760
        %2919 = vmatpush1.msra.mxu0 %v2918
        %2920 = vmatprep.subr.mxu0 0.0
        %v2921 = vand.u32 %v343, 4294901760
        %v2922 = vsub.f32 %v343, %v2921
        %v2923 = vand.u32 %v2922, 4294901760
        %2924 = vmatpush1.msra.mxu0 %v2923
        %2925 = vmatprep.subr.mxu0 0.0
        %v2926 = vand.u32 %v342, 4294901760
        %v2927 = vsub.f32 %v342, %v2926
        %v2928 = vand.u32 %v2927, 4294901760
        %2929 = vmatpush1.msra.mxu0 %v2928
        %2930 = vmatprep.subr.mxu0 0.0
        %v2931 = vand.u32 %v341, 4294901760
        %v2932 = vsub.f32 %v341, %v2931
        %v2933 = vand.u32 %v2932, 4294901760
        %2934 = vmatpush1.msra.mxu0 %v2933
        %2935 = vmatprep.subr.mxu0 0.0
        %v2936 = vand.u32 %v340, 4294901760
        %v2937 = vsub.f32 %v340, %v2936
        %v2938 = vand.u32 %v2937, 4294901760
        %2939 = vmatpush1.msra.mxu0 %v2938
        %2940 = vmatprep.subr.mxu0 0.0
        %2941 = vmatpush2.msra.mxu0 0.0
        %2942 = vmatprep.subr.mxu0 0.0
        %2943 = vmatpush2.msra.mxu0 0.0
        %2944 = vmatprep.subr.mxu0 0.0
        %2945 = vmatpush2.msra.mxu0 0.0
        %2946 = vmatprep.subr.mxu0 0.0
        %2947 = vmatpush2.msra.mxu0 0.0
        %2948 = vmatprep.subr.mxu0 0.0
        %2949 = vmatpush2.msra.mxu0 0.0
        %2950 = vmatprep.subr.mxu0 0.0
        %2951 = vmatpush2.msra.mxu0 0.0
        %2952 = vmatprep.subr.mxu0 0.0
        %2953 = vmatpush2.msra.mxu0 0.0
        %2954 = vmatprep.subr.mxu0 0.0
        %2955 = vmatpush2.msra.mxu0 0.0
        %2956 = vmatprep.subr.mxu0 0.0
        %2957 = vmatpush2.msra.mxu0 0.0
        %2958 = vmatprep.subr.mxu0 0.0
        %2959 = vmatpush2.msra.mxu0 0.0
        %2960 = vmatprep.subr.mxu0 0.0
        %2961 = vmatpush2.msra.mxu0 0.0
        %2962 = vmatprep.subr.mxu0 0.0
        %2963 = vmatpush2.msra.mxu0 0.0
        %2964 = vmatprep.subr.mxu0 0.0
        %2965 = vmatpush2.msra.mxu0 0.0
        %2966 = vmatprep.subr.mxu0 0.0
        %2967 = vmatpush2.msra.mxu0 0.0
        %2968 = vmatprep.subr.mxu0 0.0
        %2969 = vmatpush2.msra.mxu0 0.0
        %2970 = vmatprep.subr.mxu0 0.0
        %2971 = vmatpush2.msra.mxu0 0.0
        %2972 = vmatprep.mubr.f32.mxu0 0.0
        %v2973 = vand.u32 %v1944, 4294901760
        %2974 = vmatmul.mubr.f32.gmra.mxu0 %v2973
        %v2975 = vpop.f32.mrf.mxu0
        %v2976 = vadd.f32 %v2737, %v2975
        %v2977 = vpop.f32.mrf.mxu0
        %2978 = vmatprep.mubr.f32.mxu0 0.0
        %v2979 = vand.u32 %v1945, 4294901760
        %2980 = vmatmul.mubr.f32.gmra.mxu0 %v2979
        %v2981 = vpop.f32.mrf.mxu0
        %v2982 = vadd.f32 %v2745, %v2981
        %v2983 = vpop.f32.mrf.mxu0
        %2984 = vmatprep.mubr.f32.mxu0 0.0
        %v2985 = vand.u32 %v1946, 4294901760
        %2986 = vmatmul.mubr.f32.gmra.mxu0 %v2985
        %v2987 = vpop.f32.mrf.mxu0
        %v2988 = vadd.f32 %v2753, %v2987
        %v2989 = vpop.f32.mrf.mxu0
        %2990 = vmatprep.mubr.f32.mxu0 0.0
        %v2991 = vand.u32 %v1947, 4294901760
        %2992 = vmatmul.mubr.f32.gmra.mxu0 %v2991
        %v2993 = vpop.f32.mrf.mxu0
        %v2994 = vadd.f32 %v2761, %v2993
        %v2995 = vpop.f32.mrf.mxu0
        %2996 = vmatprep.mubr.f32.mxu0 0.0
        %v2997 = vand.u32 %v1948, 4294901760
        %2998 = vmatmul.mubr.f32.gmra.mxu0 %v2997
        %v2999 = vpop.f32.mrf.mxu0
        %v3000 = vadd.f32 %v2769, %v2999
        %v3001 = vpop.f32.mrf.mxu0
        %3002 = vmatprep.mubr.f32.mxu0 0.0
        %v3003 = vand.u32 %v1949, 4294901760
        %3004 = vmatmul.mubr.f32.gmra.mxu0 %v3003
        %v3005 = vpop.f32.mrf.mxu0
        %v3006 = vadd.f32 %v2777, %v3005
        %v3007 = vpop.f32.mrf.mxu0
        %3008 = vmatprep.mubr.f32.mxu0 0.0
        %v3009 = vand.u32 %v1950, 4294901760
        %3010 = vmatmul.mubr.f32.gmra.mxu0 %v3009
        %v3011 = vpop.f32.mrf.mxu0
        %v3012 = vadd.f32 %v2785, %v3011
        %v3013 = vpop.f32.mrf.mxu0
        %3014 = vmatprep.mubr.f32.mxu0 0.0
        %v3015 = vand.u32 %v1951, 4294901760
        %3016 = vmatmul.mubr.f32.gmra.mxu0 %v3015
        %v3017 = vpop.f32.mrf.mxu0
        %v3018 = vadd.f32 %v2793, %v3017
        %v3019 = vpop.f32.mrf.mxu0
        %3020 = vmatprep.mubr.f32.mxu0 0.0
        %v3021 = vand.u32 %v1952, 4294901760
        %3022 = vmatmul.mubr.f32.gmra.mxu0 %v3021
        %v3023 = vpop.f32.mrf.mxu0
        %v3024 = vadd.f32 %v2801, %v3023
        %v3025 = vpop.f32.mrf.mxu0
        %3026 = vmatprep.mubr.f32.mxu0 0.0
        %v3027 = vand.u32 %v1953, 4294901760
        %3028 = vmatmul.mubr.f32.gmra.mxu0 %v3027
        %v3029 = vpop.f32.mrf.mxu0
        %v3030 = vadd.f32 %v2809, %v3029
        %v3031 = vpop.f32.mrf.mxu0
        %3032 = vmatprep.mubr.f32.mxu0 0.0
        %v3033 = vand.u32 %v1954, 4294901760
        %3034 = vmatmul.mubr.f32.gmra.mxu0 %v3033
        %v3035 = vpop.f32.mrf.mxu0
        %v3036 = vadd.f32 %v2817, %v3035
        %v3037 = vpop.f32.mrf.mxu0
        %3038 = vmatprep.mubr.f32.mxu0 0.0
        %v3039 = vand.u32 %v1955, 4294901760
        %3040 = vmatmul.mubr.f32.gmra.mxu0 %v3039
        %v3041 = vpop.f32.mrf.mxu0
        %v3042 = vadd.f32 %v2825, %v3041
        %v3043 = vpop.f32.mrf.mxu0
        %3044 = vmatprep.mubr.f32.mxu0 0.0
        %v3045 = vand.u32 %v1956, 4294901760
        %3046 = vmatmul.mubr.f32.gmra.mxu0 %v3045
        %v3047 = vpop.f32.mrf.mxu0
        %v3048 = vadd.f32 %v2833, %v3047
        %v3049 = vpop.f32.mrf.mxu0
        %3050 = vmatprep.mubr.f32.mxu0 0.0
        %v3051 = vand.u32 %v1957, 4294901760
        %3052 = vmatmul.mubr.f32.gmra.mxu0 %v3051
        %v3053 = vpop.f32.mrf.mxu0
        %v3054 = vadd.f32 %v2841, %v3053
        %v3055 = vpop.f32.mrf.mxu0
        %3056 = vmatprep.mubr.f32.mxu0 0.0
        %v3057 = vand.u32 %v1958, 4294901760
        %3058 = vmatmul.mubr.f32.gmra.mxu0 %v3057
        %v3059 = vpop.f32.mrf.mxu0
        %v3060 = vadd.f32 %v2849, %v3059
        %v3061 = vpop.f32.mrf.mxu0
        %3062 = vmatprep.mubr.f32.mxu0 0.0
        %v3063 = vand.u32 %v1959, 4294901760
        %3064 = vmatmul.mubr.f32.gmra.mxu0 %v3063
        %v3065 = vpop.f32.mrf.mxu0
        %v3066 = vadd.f32 %v2857, %v3065
        %v3067 = vpop.f32.mrf.mxu0
        %3068 = vdwg.mxu0
        %3069 = vmatprep.subr.mxu0 0.0
        %v3070 = vand.u32 %v355, 4294901760
        %3071 = vmatpush1.msra.mxu0 %v3070
        %3072 = vmatprep.subr.mxu0 0.0
        %v3073 = vand.u32 %v354, 4294901760
        %3074 = vmatpush1.msra.mxu0 %v3073
        %3075 = vmatprep.subr.mxu0 0.0
        %v3076 = vand.u32 %v353, 4294901760
        %3077 = vmatpush1.msra.mxu0 %v3076
        %3078 = vmatprep.subr.mxu0 0.0
        %v3079 = vand.u32 %v352, 4294901760
        %3080 = vmatpush1.msra.mxu0 %v3079
        %3081 = vmatprep.subr.mxu0 0.0
        %v3082 = vand.u32 %v351, 4294901760
        %3083 = vmatpush1.msra.mxu0 %v3082
        %3084 = vmatprep.subr.mxu0 0.0
        %v3085 = vand.u32 %v350, 4294901760
        %3086 = vmatpush1.msra.mxu0 %v3085
        %3087 = vmatprep.subr.mxu0 0.0
        %v3088 = vand.u32 %v349, 4294901760
        %3089 = vmatpush1.msra.mxu0 %v3088
        %3090 = vmatprep.subr.mxu0 0.0
        %v3091 = vand.u32 %v348, 4294901760
        %3092 = vmatpush1.msra.mxu0 %v3091
        %3093 = vmatprep.subr.mxu0 0.0
        %v3094 = vand.u32 %v347, 4294901760
        %3095 = vmatpush1.msra.mxu0 %v3094
        %3096 = vmatprep.subr.mxu0 0.0
        %v3097 = vand.u32 %v346, 4294901760
        %3098 = vmatpush1.msra.mxu0 %v3097
        %3099 = vmatprep.subr.mxu0 0.0
        %v3100 = vand.u32 %v345, 4294901760
        %3101 = vmatpush1.msra.mxu0 %v3100
        %3102 = vmatprep.subr.mxu0 0.0
        %v3103 = vand.u32 %v344, 4294901760
        %3104 = vmatpush1.msra.mxu0 %v3103
        %3105 = vmatprep.subr.mxu0 0.0
        %v3106 = vand.u32 %v343, 4294901760
        %3107 = vmatpush1.msra.mxu0 %v3106
        %3108 = vmatprep.subr.mxu0 0.0
        %v3109 = vand.u32 %v342, 4294901760
        %3110 = vmatpush1.msra.mxu0 %v3109
        %3111 = vmatprep.subr.mxu0 0.0
        %v3112 = vand.u32 %v341, 4294901760
        %3113 = vmatpush1.msra.mxu0 %v3112
        %3114 = vmatprep.subr.mxu0 0.0
        %v3115 = vand.u32 %v340, 4294901760
        %3116 = vmatpush1.msra.mxu0 %v3115
        %3117 = vmatprep.subr.mxu0 0.0
        %3118 = vmatpush2.msra.mxu0 0.0
        %3119 = vmatprep.subr.mxu0 0.0
        %3120 = vmatpush2.msra.mxu0 0.0
        %3121 = vmatprep.subr.mxu0 0.0
        %3122 = vmatpush2.msra.mxu0 0.0
        %3123 = vmatprep.subr.mxu0 0.0
        %3124 = vmatpush2.msra.mxu0 0.0
        %3125 = vmatprep.subr.mxu0 0.0
        %3126 = vmatpush2.msra.mxu0 0.0
        %3127 = vmatprep.subr.mxu0 0.0
        %3128 = vmatpush2.msra.mxu0 0.0
        %3129 = vmatprep.subr.mxu0 0.0
        %3130 = vmatpush2.msra.mxu0 0.0
        %3131 = vmatprep.subr.mxu0 0.0
        %3132 = vmatpush2.msra.mxu0 0.0
        %3133 = vmatprep.subr.mxu0 0.0
        %3134 = vmatpush2.msra.mxu0 0.0
        %3135 = vmatprep.subr.mxu0 0.0
        %3136 = vmatpush2.msra.mxu0 0.0
        %3137 = vmatprep.subr.mxu0 0.0
        %3138 = vmatpush2.msra.mxu0 0.0
        %3139 = vmatprep.subr.mxu0 0.0
        %3140 = vmatpush2.msra.mxu0 0.0
        %3141 = vmatprep.subr.mxu0 0.0
        %3142 = vmatpush2.msra.mxu0 0.0
        %3143 = vmatprep.subr.mxu0 0.0
        %3144 = vmatpush2.msra.mxu0 0.0
        %3145 = vmatprep.subr.mxu0 0.0
        %3146 = vmatpush2.msra.mxu0 0.0
        %3147 = vmatprep.subr.mxu0 0.0
        %3148 = vmatpush2.msra.mxu0 0.0
        %3149 = vmatprep.mubr.f32.mxu0 0.0
        %v3150 = vand.u32 %v1944, 4294901760
        %3151 = vmatmul.mubr.f32.gmra.mxu0 %v3150
        %v3152 = vpop.f32.mrf.mxu0
        %v3153 = vadd.f32 %v2976, %v3152
        %v3154 = vpop.f32.mrf.mxu0
        %3155 = vmatprep.mubr.f32.mxu0 0.0
        %v3156 = vand.u32 %v1945, 4294901760
        %3157 = vmatmul.mubr.f32.gmra.mxu0 %v3156
        %v3158 = vpop.f32.mrf.mxu0
        %v3159 = vadd.f32 %v2982, %v3158
        %v3160 = vpop.f32.mrf.mxu0
        %3161 = vmatprep.mubr.f32.mxu0 0.0
        %v3162 = vand.u32 %v1946, 4294901760
        %3163 = vmatmul.mubr.f32.gmra.mxu0 %v3162
        %v3164 = vpop.f32.mrf.mxu0
        %v3165 = vadd.f32 %v2988, %v3164
        %v3166 = vpop.f32.mrf.mxu0
        %3167 = vmatprep.mubr.f32.mxu0 0.0
        %v3168 = vand.u32 %v1947, 4294901760
        %3169 = vmatmul.mubr.f32.gmra.mxu0 %v3168
        %v3170 = vpop.f32.mrf.mxu0
        %v3171 = vadd.f32 %v2994, %v3170
        %v3172 = vpop.f32.mrf.mxu0
        %3173 = vmatprep.mubr.f32.mxu0 0.0
        %v3174 = vand.u32 %v1948, 4294901760
        %3175 = vmatmul.mubr.f32.gmra.mxu0 %v3174
        %v3176 = vpop.f32.mrf.mxu0
        %v3177 = vadd.f32 %v3000, %v3176
        %v3178 = vpop.f32.mrf.mxu0
        %3179 = vmatprep.mubr.f32.mxu0 0.0
        %v3180 = vand.u32 %v1949, 4294901760
        %3181 = vmatmul.mubr.f32.gmra.mxu0 %v3180
        %v3182 = vpop.f32.mrf.mxu0
        %v3183 = vadd.f32 %v3006, %v3182
        %v3184 = vpop.f32.mrf.mxu0
        %3185 = vmatprep.mubr.f32.mxu0 0.0
        %v3186 = vand.u32 %v1950, 4294901760
        %3187 = vmatmul.mubr.f32.gmra.mxu0 %v3186
        %v3188 = vpop.f32.mrf.mxu0
        %v3189 = vadd.f32 %v3012, %v3188
        %v3190 = vpop.f32.mrf.mxu0
        %3191 = vmatprep.mubr.f32.mxu0 0.0
        %v3192 = vand.u32 %v1951, 4294901760
        %3193 = vmatmul.mubr.f32.gmra.mxu0 %v3192
        %v3194 = vpop.f32.mrf.mxu0
        %v3195 = vadd.f32 %v3018, %v3194
        %v3196 = vpop.f32.mrf.mxu0
        %3197 = vmatprep.mubr.f32.mxu0 0.0
        %v3198 = vand.u32 %v1952, 4294901760
        %3199 = vmatmul.mubr.f32.gmra.mxu0 %v3198
        %v3200 = vpop.f32.mrf.mxu0
        %v3201 = vadd.f32 %v3024, %v3200
        %v3202 = vpop.f32.mrf.mxu0
        %3203 = vmatprep.mubr.f32.mxu0 0.0
        %v3204 = vand.u32 %v1953, 4294901760
        %3205 = vmatmul.mubr.f32.gmra.mxu0 %v3204
        %v3206 = vpop.f32.mrf.mxu0
        %v3207 = vadd.f32 %v3030, %v3206
        %v3208 = vpop.f32.mrf.mxu0
        %3209 = vmatprep.mubr.f32.mxu0 0.0
        %v3210 = vand.u32 %v1954, 4294901760
        %3211 = vmatmul.mubr.f32.gmra.mxu0 %v3210
        %v3212 = vpop.f32.mrf.mxu0
        %v3213 = vadd.f32 %v3036, %v3212
        %v3214 = vpop.f32.mrf.mxu0
        %3215 = vmatprep.mubr.f32.mxu0 0.0
        %v3216 = vand.u32 %v1955, 4294901760
        %3217 = vmatmul.mubr.f32.gmra.mxu0 %v3216
        %v3218 = vpop.f32.mrf.mxu0
        %v3219 = vadd.f32 %v3042, %v3218
        %v3220 = vpop.f32.mrf.mxu0
        %3221 = vmatprep.mubr.f32.mxu0 0.0
        %v3222 = vand.u32 %v1956, 4294901760
        %3223 = vmatmul.mubr.f32.gmra.mxu0 %v3222
        %v3224 = vpop.f32.mrf.mxu0
        %v3225 = vadd.f32 %v3048, %v3224
        %v3226 = vpop.f32.mrf.mxu0
        %3227 = vmatprep.mubr.f32.mxu0 0.0
        %v3228 = vand.u32 %v1957, 4294901760
        %3229 = vmatmul.mubr.f32.gmra.mxu0 %v3228
        %v3230 = vpop.f32.mrf.mxu0
        %v3231 = vadd.f32 %v3054, %v3230
        %v3232 = vpop.f32.mrf.mxu0
        %3233 = vmatprep.mubr.f32.mxu0 0.0
        %v3234 = vand.u32 %v1958, 4294901760
        %3235 = vmatmul.mubr.f32.gmra.mxu0 %v3234
        %v3236 = vpop.f32.mrf.mxu0
        %v3237 = vadd.f32 %v3060, %v3236
        %v3238 = vpop.f32.mrf.mxu0
        %3239 = vmatprep.mubr.f32.mxu0 0.0
        %v3240 = vand.u32 %v1959, 4294901760
        %3241 = vmatmul.mubr.f32.gmra.mxu0 %v3240
        %v3242 = vpop.f32.mrf.mxu0
        %v3243 = vadd.f32 %v3066, %v3242
        %v3244 = vpop.f32.mrf.mxu0
        %3245 = vdwg.mxu0
        %3246 = vmatprep.subr.mxu0 0.0
        %v3247 = vand.u32 %v3243, 4294901760
        %3248 = vmatpush1.msra.mxu0 %v3247
        %3249 = vmatprep.subr.mxu0 0.0
        %v3250 = vand.u32 %v3237, 4294901760
        %3251 = vmatpush1.msra.mxu0 %v3250
        %3252 = vmatprep.subr.mxu0 0.0
        %v3253 = vand.u32 %v3231, 4294901760
        %3254 = vmatpush1.msra.mxu0 %v3253
        %3255 = vmatprep.subr.mxu0 0.0
        %v3256 = vand.u32 %v3225, 4294901760
        %3257 = vmatpush1.msra.mxu0 %v3256
        %3258 = vmatprep.subr.mxu0 0.0
        %v3259 = vand.u32 %v3219, 4294901760
        %3260 = vmatpush1.msra.mxu0 %v3259
        %3261 = vmatprep.subr.mxu0 0.0
        %v3262 = vand.u32 %v3213, 4294901760
        %3263 = vmatpush1.msra.mxu0 %v3262
        %3264 = vmatprep.subr.mxu0 0.0
        %v3265 = vand.u32 %v3207, 4294901760
        %3266 = vmatpush1.msra.mxu0 %v3265
        %3267 = vmatprep.subr.mxu0 0.0
        %v3268 = vand.u32 %v3201, 4294901760
        %3269 = vmatpush1.msra.mxu0 %v3268
        %3270 = vmatprep.subr.mxu0 0.0
        %v3271 = vand.u32 %v3195, 4294901760
        %3272 = vmatpush1.msra.mxu0 %v3271
        %3273 = vmatprep.subr.mxu0 0.0
        %v3274 = vand.u32 %v3189, 4294901760
        %3275 = vmatpush1.msra.mxu0 %v3274
        %3276 = vmatprep.subr.mxu0 0.0
        %v3277 = vand.u32 %v3183, 4294901760
        %3278 = vmatpush1.msra.mxu0 %v3277
        %3279 = vmatprep.subr.mxu0 0.0
        %v3280 = vand.u32 %v3177, 4294901760
        %3281 = vmatpush1.msra.mxu0 %v3280
        %3282 = vmatprep.subr.mxu0 0.0
        %v3283 = vand.u32 %v3171, 4294901760
        %3284 = vmatpush1.msra.mxu0 %v3283
        %3285 = vmatprep.subr.mxu0 0.0
        %v3286 = vand.u32 %v3165, 4294901760
        %3287 = vmatpush1.msra.mxu0 %v3286
        %3288 = vmatprep.subr.mxu0 0.0
        %v3289 = vand.u32 %v3159, 4294901760
        %3290 = vmatpush1.msra.mxu0 %v3289
        %3291 = vmatprep.subr.mxu0 0.0
        %v3292 = vand.u32 %v3153, 4294901760
        %3293 = vmatpush1.msra.mxu0 %v3292
        %3294 = vmatprep.subr.mxu0 0.0
        %3295 = vmatpush2.msra.mxu0 0.0
        %3296 = vmatprep.subr.mxu0 0.0
        %3297 = vmatpush2.msra.mxu0 0.0
        %3298 = vmatprep.subr.mxu0 0.0
        %3299 = vmatpush2.msra.mxu0 0.0
        %3300 = vmatprep.subr.mxu0 0.0
        %3301 = vmatpush2.msra.mxu0 0.0
        %3302 = vmatprep.subr.mxu0 0.0
        %3303 = vmatpush2.msra.mxu0 0.0
        %3304 = vmatprep.subr.mxu0 0.0
        %3305 = vmatpush2.msra.mxu0 0.0
        %3306 = vmatprep.subr.mxu0 0.0
        %3307 = vmatpush2.msra.mxu0 0.0
        %3308 = vmatprep.subr.mxu0 0.0
        %3309 = vmatpush2.msra.mxu0 0.0
        %3310 = vmatprep.subr.mxu0 0.0
        %3311 = vmatpush2.msra.mxu0 0.0
        %3312 = vmatprep.subr.mxu0 0.0
        %3313 = vmatpush2.msra.mxu0 0.0
        %3314 = vmatprep.subr.mxu0 0.0
        %3315 = vmatpush2.msra.mxu0 0.0
        %3316 = vmatprep.subr.mxu0 0.0
        %3317 = vmatpush2.msra.mxu0 0.0
        %3318 = vmatprep.subr.mxu0 0.0
        %3319 = vmatpush2.msra.mxu0 0.0
        %3320 = vmatprep.subr.mxu0 0.0
        %3321 = vmatpush2.msra.mxu0 0.0
        %3322 = vmatprep.subr.mxu0 0.0
        %3323 = vmatpush2.msra.mxu0 0.0
        %3324 = vmatprep.subr.mxu0 0.0
        %3325 = vmatpush2.msra.mxu0 0.0
        %3326 = vmatprep.mubr.f32.mxu0 0.0
        %v3327 = vand.u32 %v340, 4294901760
        %v3328 = vsub.f32 %v340, %v3327
        %v3329 = vand.u32 %v3328, 4294901760
        %v3330 = vsub.f32 %v3328, %v3329
        %v3331 = vand.u32 %v3330, 4294901760
        %3332 = vmatmul.mubr.f32.gmra.mxu0 %v3331
        %v3333 = vpop.f32.mrf.mxu0
        %v3334 = vadd.f32 0.0, %v3333
        %v3335 = vpop.f32.mrf.mxu0
        %3336 = vmatprep.mubr.f32.mxu0 0.0
        %v3337 = vand.u32 %v341, 4294901760
        %v3338 = vsub.f32 %v341, %v3337
        %v3339 = vand.u32 %v3338, 4294901760
        %v3340 = vsub.f32 %v3338, %v3339
        %v3341 = vand.u32 %v3340, 4294901760
        %3342 = vmatmul.mubr.f32.gmra.mxu0 %v3341
        %v3343 = vpop.f32.mrf.mxu0
        %v3344 = vadd.f32 0.0, %v3343
        %v3345 = vpop.f32.mrf.mxu0
        %3346 = vmatprep.mubr.f32.mxu0 0.0
        %v3347 = vand.u32 %v342, 4294901760
        %v3348 = vsub.f32 %v342, %v3347
        %v3349 = vand.u32 %v3348, 4294901760
        %v3350 = vsub.f32 %v3348, %v3349
        %v3351 = vand.u32 %v3350, 4294901760
        %3352 = vmatmul.mubr.f32.gmra.mxu0 %v3351
        %v3353 = vpop.f32.mrf.mxu0
        %v3354 = vadd.f32 0.0, %v3353
        %v3355 = vpop.f32.mrf.mxu0
        %3356 = vmatprep.mubr.f32.mxu0 0.0
        %v3357 = vand.u32 %v343, 4294901760
        %v3358 = vsub.f32 %v343, %v3357
        %v3359 = vand.u32 %v3358, 4294901760
        %v3360 = vsub.f32 %v3358, %v3359
        %v3361 = vand.u32 %v3360, 4294901760
        %3362 = vmatmul.mubr.f32.gmra.mxu0 %v3361
        %v3363 = vpop.f32.mrf.mxu0
        %v3364 = vadd.f32 0.0, %v3363
        %v3365 = vpop.f32.mrf.mxu0
        %3366 = vmatprep.mubr.f32.mxu0 0.0
        %v3367 = vand.u32 %v344, 4294901760
        %v3368 = vsub.f32 %v344, %v3367
        %v3369 = vand.u32 %v3368, 4294901760
        %v3370 = vsub.f32 %v3368, %v3369
        %v3371 = vand.u32 %v3370, 4294901760
        %3372 = vmatmul.mubr.f32.gmra.mxu0 %v3371
        %v3373 = vpop.f32.mrf.mxu0
        %v3374 = vadd.f32 0.0, %v3373
        %v3375 = vpop.f32.mrf.mxu0
        %3376 = vmatprep.mubr.f32.mxu0 0.0
        %v3377 = vand.u32 %v345, 4294901760
        %v3378 = vsub.f32 %v345, %v3377
        %v3379 = vand.u32 %v3378, 4294901760
        %v3380 = vsub.f32 %v3378, %v3379
        %v3381 = vand.u32 %v3380, 4294901760
        %3382 = vmatmul.mubr.f32.gmra.mxu0 %v3381
        %v3383 = vpop.f32.mrf.mxu0
        %v3384 = vadd.f32 0.0, %v3383
        %v3385 = vpop.f32.mrf.mxu0
        %3386 = vmatprep.mubr.f32.mxu0 0.0
        %v3387 = vand.u32 %v346, 4294901760
        %v3388 = vsub.f32 %v346, %v3387
        %v3389 = vand.u32 %v3388, 4294901760
        %v3390 = vsub.f32 %v3388, %v3389
        %v3391 = vand.u32 %v3390, 4294901760
        %3392 = vmatmul.mubr.f32.gmra.mxu0 %v3391
        %v3393 = vpop.f32.mrf.mxu0
        %v3394 = vadd.f32 0.0, %v3393
        %v3395 = vpop.f32.mrf.mxu0
        %3396 = vmatprep.mubr.f32.mxu0 0.0
        %v3397 = vand.u32 %v347, 4294901760
        %v3398 = vsub.f32 %v347, %v3397
        %v3399 = vand.u32 %v3398, 4294901760
        %v3400 = vsub.f32 %v3398, %v3399
        %v3401 = vand.u32 %v3400, 4294901760
        %3402 = vmatmul.mubr.f32.gmra.mxu0 %v3401
        %v3403 = vpop.f32.mrf.mxu0
        %v3404 = vadd.f32 0.0, %v3403
        %v3405 = vpop.f32.mrf.mxu0
        %3406 = vmatprep.mubr.f32.mxu0 0.0
        %v3407 = vand.u32 %v348, 4294901760
        %v3408 = vsub.f32 %v348, %v3407
        %v3409 = vand.u32 %v3408, 4294901760
        %v3410 = vsub.f32 %v3408, %v3409
        %v3411 = vand.u32 %v3410, 4294901760
        %3412 = vmatmul.mubr.f32.gmra.mxu0 %v3411
        %v3413 = vpop.f32.mrf.mxu0
        %v3414 = vadd.f32 0.0, %v3413
        %v3415 = vpop.f32.mrf.mxu0
        %3416 = vmatprep.mubr.f32.mxu0 0.0
        %v3417 = vand.u32 %v349, 4294901760
        %v3418 = vsub.f32 %v349, %v3417
        %v3419 = vand.u32 %v3418, 4294901760
        %v3420 = vsub.f32 %v3418, %v3419
        %v3421 = vand.u32 %v3420, 4294901760
        %3422 = vmatmul.mubr.f32.gmra.mxu0 %v3421
        %v3423 = vpop.f32.mrf.mxu0
        %v3424 = vadd.f32 0.0, %v3423
        %v3425 = vpop.f32.mrf.mxu0
        %3426 = vmatprep.mubr.f32.mxu0 0.0
        %v3427 = vand.u32 %v350, 4294901760
        %v3428 = vsub.f32 %v350, %v3427
        %v3429 = vand.u32 %v3428, 4294901760
        %v3430 = vsub.f32 %v3428, %v3429
        %v3431 = vand.u32 %v3430, 4294901760
        %3432 = vmatmul.mubr.f32.gmra.mxu0 %v3431
        %v3433 = vpop.f32.mrf.mxu0
        %v3434 = vadd.f32 0.0, %v3433
        %v3435 = vpop.f32.mrf.mxu0
        %3436 = vmatprep.mubr.f32.mxu0 0.0
        %v3437 = vand.u32 %v351, 4294901760
        %v3438 = vsub.f32 %v351, %v3437
        %v3439 = vand.u32 %v3438, 4294901760
        %v3440 = vsub.f32 %v3438, %v3439
        %v3441 = vand.u32 %v3440, 4294901760
        %3442 = vmatmul.mubr.f32.gmra.mxu0 %v3441
        %v3443 = vpop.f32.mrf.mxu0
        %v3444 = vadd.f32 0.0, %v3443
        %v3445 = vpop.f32.mrf.mxu0
        %3446 = vmatprep.mubr.f32.mxu0 0.0
        %v3447 = vand.u32 %v352, 4294901760
        %v3448 = vsub.f32 %v352, %v3447
        %v3449 = vand.u32 %v3448, 4294901760
        %v3450 = vsub.f32 %v3448, %v3449
        %v3451 = vand.u32 %v3450, 4294901760
        %3452 = vmatmul.mubr.f32.gmra.mxu0 %v3451
        %v3453 = vpop.f32.mrf.mxu0
        %v3454 = vadd.f32 0.0, %v3453
        %v3455 = vpop.f32.mrf.mxu0
        %3456 = vmatprep.mubr.f32.mxu0 0.0
        %v3457 = vand.u32 %v353, 4294901760
        %v3458 = vsub.f32 %v353, %v3457
        %v3459 = vand.u32 %v3458, 4294901760
        %v3460 = vsub.f32 %v3458, %v3459
        %v3461 = vand.u32 %v3460, 4294901760
        %3462 = vmatmul.mubr.f32.gmra.mxu0 %v3461
        %v3463 = vpop.f32.mrf.mxu0
        %v3464 = vadd.f32 0.0, %v3463
        %v3465 = vpop.f32.mrf.mxu0
        %3466 = vmatprep.mubr.f32.mxu0 0.0
        %v3467 = vand.u32 %v354, 4294901760
        %v3468 = vsub.f32 %v354, %v3467
        %v3469 = vand.u32 %v3468, 4294901760
        %v3470 = vsub.f32 %v3468, %v3469
        %v3471 = vand.u32 %v3470, 4294901760
        %3472 = vmatmul.mubr.f32.gmra.mxu0 %v3471
        %v3473 = vpop.f32.mrf.mxu0
        %v3474 = vadd.f32 0.0, %v3473
        %v3475 = vpop.f32.mrf.mxu0
        %3476 = vmatprep.mubr.f32.mxu0 0.0
        %v3477 = vand.u32 %v355, 4294901760
        %v3478 = vsub.f32 %v355, %v3477
        %v3479 = vand.u32 %v3478, 4294901760
        %v3480 = vsub.f32 %v3478, %v3479
        %v3481 = vand.u32 %v3480, 4294901760
        %3482 = vmatmul.mubr.f32.gmra.mxu0 %v3481
        %v3483 = vpop.f32.mrf.mxu0
        %v3484 = vadd.f32 0.0, %v3483
        %v3485 = vpop.f32.mrf.mxu0
        %3486 = vdwg.mxu0
        %3487 = vmatprep.subr.mxu0 0.0
        %v3488 = vand.u32 %v3243, 4294901760
        %v3489 = vsub.f32 %v3243, %v3488
        %v3490 = vand.u32 %v3489, 4294901760
        %v3491 = vsub.f32 %v3489, %v3490
        %v3492 = vand.u32 %v3491, 4294901760
        %3493 = vmatpush1.msra.mxu0 %v3492
        %3494 = vmatprep.subr.mxu0 0.0
        %v3495 = vand.u32 %v3237, 4294901760
        %v3496 = vsub.f32 %v3237, %v3495
        %v3497 = vand.u32 %v3496, 4294901760
        %v3498 = vsub.f32 %v3496, %v3497
        %v3499 = vand.u32 %v3498, 4294901760
        %3500 = vmatpush1.msra.mxu0 %v3499
        %3501 = vmatprep.subr.mxu0 0.0
        %v3502 = vand.u32 %v3231, 4294901760
        %v3503 = vsub.f32 %v3231, %v3502
        %v3504 = vand.u32 %v3503, 4294901760
        %v3505 = vsub.f32 %v3503, %v3504
        %v3506 = vand.u32 %v3505, 4294901760
        %3507 = vmatpush1.msra.mxu0 %v3506
        %3508 = vmatprep.subr.mxu0 0.0
        %v3509 = vand.u32 %v3225, 4294901760
        %v3510 = vsub.f32 %v3225, %v3509
        %v3511 = vand.u32 %v3510, 4294901760
        %v3512 = vsub.f32 %v3510, %v3511
        %v3513 = vand.u32 %v3512, 4294901760
        %3514 = vmatpush1.msra.mxu0 %v3513
        %3515 = vmatprep.subr.mxu0 0.0
        %v3516 = vand.u32 %v3219, 4294901760
        %v3517 = vsub.f32 %v3219, %v3516
        %v3518 = vand.u32 %v3517, 4294901760
        %v3519 = vsub.f32 %v3517, %v3518
        %v3520 = vand.u32 %v3519, 4294901760
        %3521 = vmatpush1.msra.mxu0 %v3520
        %3522 = vmatprep.subr.mxu0 0.0
        %v3523 = vand.u32 %v3213, 4294901760
        %v3524 = vsub.f32 %v3213, %v3523
        %v3525 = vand.u32 %v3524, 4294901760
        %v3526 = vsub.f32 %v3524, %v3525
        %v3527 = vand.u32 %v3526, 4294901760
        %3528 = vmatpush1.msra.mxu0 %v3527
        %3529 = vmatprep.subr.mxu0 0.0
        %v3530 = vand.u32 %v3207, 4294901760
        %v3531 = vsub.f32 %v3207, %v3530
        %v3532 = vand.u32 %v3531, 4294901760
        %v3533 = vsub.f32 %v3531, %v3532
        %v3534 = vand.u32 %v3533, 4294901760
        %3535 = vmatpush1.msra.mxu0 %v3534
        %3536 = vmatprep.subr.mxu0 0.0
        %v3537 = vand.u32 %v3201, 4294901760
        %v3538 = vsub.f32 %v3201, %v3537
        %v3539 = vand.u32 %v3538, 4294901760
        %v3540 = vsub.f32 %v3538, %v3539
        %v3541 = vand.u32 %v3540, 4294901760
        %3542 = vmatpush1.msra.mxu0 %v3541
        %3543 = vmatprep.subr.mxu0 0.0
        %v3544 = vand.u32 %v3195, 4294901760
        %v3545 = vsub.f32 %v3195, %v3544
        %v3546 = vand.u32 %v3545, 4294901760
        %v3547 = vsub.f32 %v3545, %v3546
        %v3548 = vand.u32 %v3547, 4294901760
        %3549 = vmatpush1.msra.mxu0 %v3548
        %3550 = vmatprep.subr.mxu0 0.0
        %v3551 = vand.u32 %v3189, 4294901760
        %v3552 = vsub.f32 %v3189, %v3551
        %v3553 = vand.u32 %v3552, 4294901760
        %v3554 = vsub.f32 %v3552, %v3553
        %v3555 = vand.u32 %v3554, 4294901760
        %3556 = vmatpush1.msra.mxu0 %v3555
        %3557 = vmatprep.subr.mxu0 0.0
        %v3558 = vand.u32 %v3183, 4294901760
        %v3559 = vsub.f32 %v3183, %v3558
        %v3560 = vand.u32 %v3559, 4294901760
        %v3561 = vsub.f32 %v3559, %v3560
        %v3562 = vand.u32 %v3561, 4294901760
        %3563 = vmatpush1.msra.mxu0 %v3562
        %3564 = vmatprep.subr.mxu0 0.0
        %v3565 = vand.u32 %v3177, 4294901760
        %v3566 = vsub.f32 %v3177, %v3565
        %v3567 = vand.u32 %v3566, 4294901760
        %v3568 = vsub.f32 %v3566, %v3567
        %v3569 = vand.u32 %v3568, 4294901760
        %3570 = vmatpush1.msra.mxu0 %v3569
        %3571 = vmatprep.subr.mxu0 0.0
        %v3572 = vand.u32 %v3171, 4294901760
        %v3573 = vsub.f32 %v3171, %v3572
        %v3574 = vand.u32 %v3573, 4294901760
        %v3575 = vsub.f32 %v3573, %v3574
        %v3576 = vand.u32 %v3575, 4294901760
        %3577 = vmatpush1.msra.mxu0 %v3576
        %3578 = vmatprep.subr.mxu0 0.0
        %v3579 = vand.u32 %v3165, 4294901760
        %v3580 = vsub.f32 %v3165, %v3579
        %v3581 = vand.u32 %v3580, 4294901760
        %v3582 = vsub.f32 %v3580, %v3581
        %v3583 = vand.u32 %v3582, 4294901760
        %3584 = vmatpush1.msra.mxu0 %v3583
        %3585 = vmatprep.subr.mxu0 0.0
        %v3586 = vand.u32 %v3159, 4294901760
        %v3587 = vsub.f32 %v3159, %v3586
        %v3588 = vand.u32 %v3587, 4294901760
        %v3589 = vsub.f32 %v3587, %v3588
        %v3590 = vand.u32 %v3589, 4294901760
        %3591 = vmatpush1.msra.mxu0 %v3590
        %3592 = vmatprep.subr.mxu0 0.0
        %v3593 = vand.u32 %v3153, 4294901760
        %v3594 = vsub.f32 %v3153, %v3593
        %v3595 = vand.u32 %v3594, 4294901760
        %v3596 = vsub.f32 %v3594, %v3595
        %v3597 = vand.u32 %v3596, 4294901760
        %3598 = vmatpush1.msra.mxu0 %v3597
        %3599 = vmatprep.subr.mxu0 0.0
        %3600 = vmatpush2.msra.mxu0 0.0
        %3601 = vmatprep.subr.mxu0 0.0
        %3602 = vmatpush2.msra.mxu0 0.0
        %3603 = vmatprep.subr.mxu0 0.0
        %3604 = vmatpush2.msra.mxu0 0.0
        %3605 = vmatprep.subr.mxu0 0.0
        %3606 = vmatpush2.msra.mxu0 0.0
        %3607 = vmatprep.subr.mxu0 0.0
        %3608 = vmatpush2.msra.mxu0 0.0
        %3609 = vmatprep.subr.mxu0 0.0
        %3610 = vmatpush2.msra.mxu0 0.0
        %3611 = vmatprep.subr.mxu0 0.0
        %3612 = vmatpush2.msra.mxu0 0.0
        %3613 = vmatprep.subr.mxu0 0.0
        %3614 = vmatpush2.msra.mxu0 0.0
        %3615 = vmatprep.subr.mxu0 0.0
        %3616 = vmatpush2.msra.mxu0 0.0
        %3617 = vmatprep.subr.mxu0 0.0
        %3618 = vmatpush2.msra.mxu0 0.0
        %3619 = vmatprep.subr.mxu0 0.0
        %3620 = vmatpush2.msra.mxu0 0.0
        %3621 = vmatprep.subr.mxu0 0.0
        %3622 = vmatpush2.msra.mxu0 0.0
        %3623 = vmatprep.subr.mxu0 0.0
        %3624 = vmatpush2.msra.mxu0 0.0
        %3625 = vmatprep.subr.mxu0 0.0
        %3626 = vmatpush2.msra.mxu0 0.0
        %3627 = vmatprep.subr.mxu0 0.0
        %3628 = vmatpush2.msra.mxu0 0.0
        %3629 = vmatprep.subr.mxu0 0.0
        %3630 = vmatpush2.msra.mxu0 0.0
        %3631 = vmatprep.mubr.f32.mxu0 0.0
        %v3632 = vand.u32 %v340, 4294901760
        %3633 = vmatmul.mubr.f32.gmra.mxu0 %v3632
        %v3634 = vpop.f32.mrf.mxu0
        %v3635 = vadd.f32 %v3334, %v3634
        %v3636 = vpop.f32.mrf.mxu0
        %3637 = vmatprep.mubr.f32.mxu0 0.0
        %v3638 = vand.u32 %v341, 4294901760
        %3639 = vmatmul.mubr.f32.gmra.mxu0 %v3638
        %v3640 = vpop.f32.mrf.mxu0
        %v3641 = vadd.f32 %v3344, %v3640
        %v3642 = vpop.f32.mrf.mxu0
        %3643 = vmatprep.mubr.f32.mxu0 0.0
        %v3644 = vand.u32 %v342, 4294901760
        %3645 = vmatmul.mubr.f32.gmra.mxu0 %v3644
        %v3646 = vpop.f32.mrf.mxu0
        %v3647 = vadd.f32 %v3354, %v3646
        %v3648 = vpop.f32.mrf.mxu0
        %3649 = vmatprep.mubr.f32.mxu0 0.0
        %v3650 = vand.u32 %v343, 4294901760
        %3651 = vmatmul.mubr.f32.gmra.mxu0 %v3650
        %v3652 = vpop.f32.mrf.mxu0
        %v3653 = vadd.f32 %v3364, %v3652
        %v3654 = vpop.f32.mrf.mxu0
        %3655 = vmatprep.mubr.f32.mxu0 0.0
        %v3656 = vand.u32 %v344, 4294901760
        %3657 = vmatmul.mubr.f32.gmra.mxu0 %v3656
        %v3658 = vpop.f32.mrf.mxu0
        %v3659 = vadd.f32 %v3374, %v3658
        %v3660 = vpop.f32.mrf.mxu0
        %3661 = vmatprep.mubr.f32.mxu0 0.0
        %v3662 = vand.u32 %v345, 4294901760
        %3663 = vmatmul.mubr.f32.gmra.mxu0 %v3662
        %v3664 = vpop.f32.mrf.mxu0
        %v3665 = vadd.f32 %v3384, %v3664
        %v3666 = vpop.f32.mrf.mxu0
        %3667 = vmatprep.mubr.f32.mxu0 0.0
        %v3668 = vand.u32 %v346, 4294901760
        %3669 = vmatmul.mubr.f32.gmra.mxu0 %v3668
        %v3670 = vpop.f32.mrf.mxu0
        %v3671 = vadd.f32 %v3394, %v3670
        %v3672 = vpop.f32.mrf.mxu0
        %3673 = vmatprep.mubr.f32.mxu0 0.0
        %v3674 = vand.u32 %v347, 4294901760
        %3675 = vmatmul.mubr.f32.gmra.mxu0 %v3674
        %v3676 = vpop.f32.mrf.mxu0
        %v3677 = vadd.f32 %v3404, %v3676
        %v3678 = vpop.f32.mrf.mxu0
        %3679 = vmatprep.mubr.f32.mxu0 0.0
        %v3680 = vand.u32 %v348, 4294901760
        %3681 = vmatmul.mubr.f32.gmra.mxu0 %v3680
        %v3682 = vpop.f32.mrf.mxu0
        %v3683 = vadd.f32 %v3414, %v3682
        %v3684 = vpop.f32.mrf.mxu0
        %3685 = vmatprep.mubr.f32.mxu0 0.0
        %v3686 = vand.u32 %v349, 4294901760
        %3687 = vmatmul.mubr.f32.gmra.mxu0 %v3686
        %v3688 = vpop.f32.mrf.mxu0
        %v3689 = vadd.f32 %v3424, %v3688
        %v3690 = vpop.f32.mrf.mxu0
        %3691 = vmatprep.mubr.f32.mxu0 0.0
        %v3692 = vand.u32 %v350, 4294901760
        %3693 = vmatmul.mubr.f32.gmra.mxu0 %v3692
        %v3694 = vpop.f32.mrf.mxu0
        %v3695 = vadd.f32 %v3434, %v3694
        %v3696 = vpop.f32.mrf.mxu0
        %3697 = vmatprep.mubr.f32.mxu0 0.0
        %v3698 = vand.u32 %v351, 4294901760
        %3699 = vmatmul.mubr.f32.gmra.mxu0 %v3698
        %v3700 = vpop.f32.mrf.mxu0
        %v3701 = vadd.f32 %v3444, %v3700
        %v3702 = vpop.f32.mrf.mxu0
        %3703 = vmatprep.mubr.f32.mxu0 0.0
        %v3704 = vand.u32 %v352, 4294901760
        %3705 = vmatmul.mubr.f32.gmra.mxu0 %v3704
        %v3706 = vpop.f32.mrf.mxu0
        %v3707 = vadd.f32 %v3454, %v3706
        %v3708 = vpop.f32.mrf.mxu0
        %3709 = vmatprep.mubr.f32.mxu0 0.0
        %v3710 = vand.u32 %v353, 4294901760
        %3711 = vmatmul.mubr.f32.gmra.mxu0 %v3710
        %v3712 = vpop.f32.mrf.mxu0
        %v3713 = vadd.f32 %v3464, %v3712
        %v3714 = vpop.f32.mrf.mxu0
        %3715 = vmatprep.mubr.f32.mxu0 0.0
        %v3716 = vand.u32 %v354, 4294901760
        %3717 = vmatmul.mubr.f32.gmra.mxu0 %v3716
        %v3718 = vpop.f32.mrf.mxu0
        %v3719 = vadd.f32 %v3474, %v3718
        %v3720 = vpop.f32.mrf.mxu0
        %3721 = vmatprep.mubr.f32.mxu0 0.0
        %v3722 = vand.u32 %v355, 4294901760
        %3723 = vmatmul.mubr.f32.gmra.mxu0 %v3722
        %v3724 = vpop.f32.mrf.mxu0
        %v3725 = vadd.f32 %v3484, %v3724
        %v3726 = vpop.f32.mrf.mxu0
        %3727 = vdwg.mxu0
        %3728 = vmatprep.subr.mxu0 0.0
        %v3729 = vand.u32 %v3243, 4294901760
        %v3730 = vsub.f32 %v3243, %v3729
        %3731 = vmatpush1.msra.mxu0 %v3730
        %3732 = vmatprep.subr.mxu0 0.0
        %v3733 = vand.u32 %v3237, 4294901760
        %v3734 = vsub.f32 %v3237, %v3733
        %3735 = vmatpush1.msra.mxu0 %v3734
        %3736 = vmatprep.subr.mxu0 0.0
        %v3737 = vand.u32 %v3231, 4294901760
        %v3738 = vsub.f32 %v3231, %v3737
        %3739 = vmatpush1.msra.mxu0 %v3738
        %3740 = vmatprep.subr.mxu0 0.0
        %v3741 = vand.u32 %v3225, 4294901760
        %v3742 = vsub.f32 %v3225, %v3741
        %3743 = vmatpush1.msra.mxu0 %v3742
        %3744 = vmatprep.subr.mxu0 0.0
        %v3745 = vand.u32 %v3219, 4294901760
        %v3746 = vsub.f32 %v3219, %v3745
        %3747 = vmatpush1.msra.mxu0 %v3746
        %3748 = vmatprep.subr.mxu0 0.0
        %v3749 = vand.u32 %v3213, 4294901760
        %v3750 = vsub.f32 %v3213, %v3749
        %3751 = vmatpush1.msra.mxu0 %v3750
        %3752 = vmatprep.subr.mxu0 0.0
        %v3753 = vand.u32 %v3207, 4294901760
        %v3754 = vsub.f32 %v3207, %v3753
        %3755 = vmatpush1.msra.mxu0 %v3754
        %3756 = vmatprep.subr.mxu0 0.0
        %v3757 = vand.u32 %v3201, 4294901760
        %v3758 = vsub.f32 %v3201, %v3757
        %3759 = vmatpush1.msra.mxu0 %v3758
        %3760 = vmatprep.subr.mxu0 0.0
        %v3761 = vand.u32 %v3195, 4294901760
        %v3762 = vsub.f32 %v3195, %v3761
        %3763 = vmatpush1.msra.mxu0 %v3762
        %3764 = vmatprep.subr.mxu0 0.0
        %v3765 = vand.u32 %v3189, 4294901760
        %v3766 = vsub.f32 %v3189, %v3765
        %3767 = vmatpush1.msra.mxu0 %v3766
        %3768 = vmatprep.subr.mxu0 0.0
        %v3769 = vand.u32 %v3183, 4294901760
        %v3770 = vsub.f32 %v3183, %v3769
        %3771 = vmatpush1.msra.mxu0 %v3770
        %3772 = vmatprep.subr.mxu0 0.0
        %v3773 = vand.u32 %v3177, 4294901760
        %v3774 = vsub.f32 %v3177, %v3773
        %3775 = vmatpush1.msra.mxu0 %v3774
        %3776 = vmatprep.subr.mxu0 0.0
        %v3777 = vand.u32 %v3171, 4294901760
        %v3778 = vsub.f32 %v3171, %v3777
        %3779 = vmatpush1.msra.mxu0 %v3778
        %3780 = vmatprep.subr.mxu0 0.0
        %v3781 = vand.u32 %v3165, 4294901760
        %v3782 = vsub.f32 %v3165, %v3781
        %3783 = vmatpush1.msra.mxu0 %v3782
        %3784 = vmatprep.subr.mxu0 0.0
        %v3785 = vand.u32 %v3159, 4294901760
        %v3786 = vsub.f32 %v3159, %v3785
        %3787 = vmatpush1.msra.mxu0 %v3786
        %3788 = vmatprep.subr.mxu0 0.0
        %v3789 = vand.u32 %v3153, 4294901760
        %v3790 = vsub.f32 %v3153, %v3789
        %3791 = vmatpush1.msra.mxu0 %v3790
        %3792 = vmatprep.subr.mxu0 0.0
        %3793 = vmatpush2.msra.mxu0 0.0
        %3794 = vmatprep.subr.mxu0 0.0
        %3795 = vmatpush2.msra.mxu0 0.0
        %3796 = vmatprep.subr.mxu0 0.0
        %3797 = vmatpush2.msra.mxu0 0.0
        %3798 = vmatprep.subr.mxu0 0.0
        %3799 = vmatpush2.msra.mxu0 0.0
        %3800 = vmatprep.subr.mxu0 0.0
        %3801 = vmatpush2.msra.mxu0 0.0
        %3802 = vmatprep.subr.mxu0 0.0
        %3803 = vmatpush2.msra.mxu0 0.0
        %3804 = vmatprep.subr.mxu0 0.0
        %3805 = vmatpush2.msra.mxu0 0.0
        %3806 = vmatprep.subr.mxu0 0.0
        %3807 = vmatpush2.msra.mxu0 0.0
        %3808 = vmatprep.subr.mxu0 0.0
        %3809 = vmatpush2.msra.mxu0 0.0
        %3810 = vmatprep.subr.mxu0 0.0
        %3811 = vmatpush2.msra.mxu0 0.0
        %3812 = vmatprep.subr.mxu0 0.0
        %3813 = vmatpush2.msra.mxu0 0.0
        %3814 = vmatprep.subr.mxu0 0.0
        %3815 = vmatpush2.msra.mxu0 0.0
        %3816 = vmatprep.subr.mxu0 0.0
        %3817 = vmatpush2.msra.mxu0 0.0
        %3818 = vmatprep.subr.mxu0 0.0
        %3819 = vmatpush2.msra.mxu0 0.0
        %3820 = vmatprep.subr.mxu0 0.0
        %3821 = vmatpush2.msra.mxu0 0.0
        %3822 = vmatprep.subr.mxu0 0.0
        %3823 = vmatpush2.msra.mxu0 0.0
        %3824 = vmatprep.mubr.f32.mxu0 0.0
        %v3825 = vand.u32 %v340, 4294901760
        %v3826 = vsub.f32 %v340, %v3825
        %3827 = vmatmul.mubr.f32.gmra.mxu0 %v3826
        %v3828 = vpop.f32.mrf.mxu0
        %v3829 = vadd.f32 %v3635, %v3828
        %v3830 = vpop.f32.mrf.mxu0
        %3831 = vmatprep.mubr.f32.mxu0 0.0
        %v3832 = vand.u32 %v341, 4294901760
        %v3833 = vsub.f32 %v341, %v3832
        %3834 = vmatmul.mubr.f32.gmra.mxu0 %v3833
        %v3835 = vpop.f32.mrf.mxu0
        %v3836 = vadd.f32 %v3641, %v3835
        %v3837 = vpop.f32.mrf.mxu0
        %3838 = vmatprep.mubr.f32.mxu0 0.0
        %v3839 = vand.u32 %v342, 4294901760
        %v3840 = vsub.f32 %v342, %v3839
        %3841 = vmatmul.mubr.f32.gmra.mxu0 %v3840
        %v3842 = vpop.f32.mrf.mxu0
        %v3843 = vadd.f32 %v3647, %v3842
        %v3844 = vpop.f32.mrf.mxu0
        %3845 = vmatprep.mubr.f32.mxu0 0.0
        %v3846 = vand.u32 %v343, 4294901760
        %v3847 = vsub.f32 %v343, %v3846
        %3848 = vmatmul.mubr.f32.gmra.mxu0 %v3847
        %v3849 = vpop.f32.mrf.mxu0
        %v3850 = vadd.f32 %v3653, %v3849
        %v3851 = vpop.f32.mrf.mxu0
        %3852 = vmatprep.mubr.f32.mxu0 0.0
        %v3853 = vand.u32 %v344, 4294901760
        %v3854 = vsub.f32 %v344, %v3853
        %3855 = vmatmul.mubr.f32.gmra.mxu0 %v3854
        %v3856 = vpop.f32.mrf.mxu0
        %v3857 = vadd.f32 %v3659, %v3856
        %v3858 = vpop.f32.mrf.mxu0
        %3859 = vmatprep.mubr.f32.mxu0 0.0
        %v3860 = vand.u32 %v345, 4294901760
        %v3861 = vsub.f32 %v345, %v3860
        %3862 = vmatmul.mubr.f32.gmra.mxu0 %v3861
        %v3863 = vpop.f32.mrf.mxu0
        %v3864 = vadd.f32 %v3665, %v3863
        %v3865 = vpop.f32.mrf.mxu0
        %3866 = vmatprep.mubr.f32.mxu0 0.0
        %v3867 = vand.u32 %v346, 4294901760
        %v3868 = vsub.f32 %v346, %v3867
        %3869 = vmatmul.mubr.f32.gmra.mxu0 %v3868
        %v3870 = vpop.f32.mrf.mxu0
        %v3871 = vadd.f32 %v3671, %v3870
        %v3872 = vpop.f32.mrf.mxu0
        %3873 = vmatprep.mubr.f32.mxu0 0.0
        %v3874 = vand.u32 %v347, 4294901760
        %v3875 = vsub.f32 %v347, %v3874
        %3876 = vmatmul.mubr.f32.gmra.mxu0 %v3875
        %v3877 = vpop.f32.mrf.mxu0
        %v3878 = vadd.f32 %v3677, %v3877
        %v3879 = vpop.f32.mrf.mxu0
        %3880 = vmatprep.mubr.f32.mxu0 0.0
        %v3881 = vand.u32 %v348, 4294901760
        %v3882 = vsub.f32 %v348, %v3881
        %3883 = vmatmul.mubr.f32.gmra.mxu0 %v3882
        %v3884 = vpop.f32.mrf.mxu0
        %v3885 = vadd.f32 %v3683, %v3884
        %v3886 = vpop.f32.mrf.mxu0
        %3887 = vmatprep.mubr.f32.mxu0 0.0
        %v3888 = vand.u32 %v349, 4294901760
        %v3889 = vsub.f32 %v349, %v3888
        %3890 = vmatmul.mubr.f32.gmra.mxu0 %v3889
        %v3891 = vpop.f32.mrf.mxu0
        %v3892 = vadd.f32 %v3689, %v3891
        %v3893 = vpop.f32.mrf.mxu0
        %3894 = vmatprep.mubr.f32.mxu0 0.0
        %v3895 = vand.u32 %v350, 4294901760
        %v3896 = vsub.f32 %v350, %v3895
        %3897 = vmatmul.mubr.f32.gmra.mxu0 %v3896
        %v3898 = vpop.f32.mrf.mxu0
        %v3899 = vadd.f32 %v3695, %v3898
        %v3900 = vpop.f32.mrf.mxu0
        %3901 = vmatprep.mubr.f32.mxu0 0.0
        %v3902 = vand.u32 %v351, 4294901760
        %v3903 = vsub.f32 %v351, %v3902
        %3904 = vmatmul.mubr.f32.gmra.mxu0 %v3903
        %v3905 = vpop.f32.mrf.mxu0
        %v3906 = vadd.f32 %v3701, %v3905
        %v3907 = vpop.f32.mrf.mxu0
        %3908 = vmatprep.mubr.f32.mxu0 0.0
        %v3909 = vand.u32 %v352, 4294901760
        %v3910 = vsub.f32 %v352, %v3909
        %3911 = vmatmul.mubr.f32.gmra.mxu0 %v3910
        %v3912 = vpop.f32.mrf.mxu0
        %v3913 = vadd.f32 %v3707, %v3912
        %v3914 = vpop.f32.mrf.mxu0
        %3915 = vmatprep.mubr.f32.mxu0 0.0
        %v3916 = vand.u32 %v353, 4294901760
        %v3917 = vsub.f32 %v353, %v3916
        %3918 = vmatmul.mubr.f32.gmra.mxu0 %v3917
        %v3919 = vpop.f32.mrf.mxu0
        %v3920 = vadd.f32 %v3713, %v3919
        %v3921 = vpop.f32.mrf.mxu0
        %3922 = vmatprep.mubr.f32.mxu0 0.0
        %v3923 = vand.u32 %v354, 4294901760
        %v3924 = vsub.f32 %v354, %v3923
        %3925 = vmatmul.mubr.f32.gmra.mxu0 %v3924
        %v3926 = vpop.f32.mrf.mxu0
        %v3927 = vadd.f32 %v3719, %v3926
        %v3928 = vpop.f32.mrf.mxu0
        %3929 = vmatprep.mubr.f32.mxu0 0.0
        %v3930 = vand.u32 %v355, 4294901760
        %v3931 = vsub.f32 %v355, %v3930
        %3932 = vmatmul.mubr.f32.gmra.mxu0 %v3931
        %v3933 = vpop.f32.mrf.mxu0
        %v3934 = vadd.f32 %v3725, %v3933
        %v3935 = vpop.f32.mrf.mxu0
        %3936 = vdwg.mxu0
        %3937 = vmatprep.subr.mxu0 0.0
        %v3938 = vand.u32 %v3243, 4294901760
        %3939 = vmatpush1.msra.mxu0 %v3938
        %3940 = vmatprep.subr.mxu0 0.0
        %v3941 = vand.u32 %v3237, 4294901760
        %3942 = vmatpush1.msra.mxu0 %v3941
        %3943 = vmatprep.subr.mxu0 0.0
        %v3944 = vand.u32 %v3231, 4294901760
        %3945 = vmatpush1.msra.mxu0 %v3944
        %3946 = vmatprep.subr.mxu0 0.0
        %v3947 = vand.u32 %v3225, 4294901760
        %3948 = vmatpush1.msra.mxu0 %v3947
        %3949 = vmatprep.subr.mxu0 0.0
        %v3950 = vand.u32 %v3219, 4294901760
        %3951 = vmatpush1.msra.mxu0 %v3950
        %3952 = vmatprep.subr.mxu0 0.0
        %v3953 = vand.u32 %v3213, 4294901760
        %3954 = vmatpush1.msra.mxu0 %v3953
        %3955 = vmatprep.subr.mxu0 0.0
        %v3956 = vand.u32 %v3207, 4294901760
        %3957 = vmatpush1.msra.mxu0 %v3956
        %3958 = vmatprep.subr.mxu0 0.0
        %v3959 = vand.u32 %v3201, 4294901760
        %3960 = vmatpush1.msra.mxu0 %v3959
        %3961 = vmatprep.subr.mxu0 0.0
        %v3962 = vand.u32 %v3195, 4294901760
        %3963 = vmatpush1.msra.mxu0 %v3962
        %3964 = vmatprep.subr.mxu0 0.0
        %v3965 = vand.u32 %v3189, 4294901760
        %3966 = vmatpush1.msra.mxu0 %v3965
        %3967 = vmatprep.subr.mxu0 0.0
        %v3968 = vand.u32 %v3183, 4294901760
        %3969 = vmatpush1.msra.mxu0 %v3968
        %3970 = vmatprep.subr.mxu0 0.0
        %v3971 = vand.u32 %v3177, 4294901760
        %3972 = vmatpush1.msra.mxu0 %v3971
        %3973 = vmatprep.subr.mxu0 0.0
        %v3974 = vand.u32 %v3171, 4294901760
        %3975 = vmatpush1.msra.mxu0 %v3974
        %3976 = vmatprep.subr.mxu0 0.0
        %v3977 = vand.u32 %v3165, 4294901760
        %3978 = vmatpush1.msra.mxu0 %v3977
        %3979 = vmatprep.subr.mxu0 0.0
        %v3980 = vand.u32 %v3159, 4294901760
        %3981 = vmatpush1.msra.mxu0 %v3980
        %3982 = vmatprep.subr.mxu0 0.0
        %v3983 = vand.u32 %v3153, 4294901760
        %3984 = vmatpush1.msra.mxu0 %v3983
        %3985 = vmatprep.subr.mxu0 0.0
        %3986 = vmatpush2.msra.mxu0 0.0
        %3987 = vmatprep.subr.mxu0 0.0
        %3988 = vmatpush2.msra.mxu0 0.0
        %3989 = vmatprep.subr.mxu0 0.0
        %3990 = vmatpush2.msra.mxu0 0.0
        %3991 = vmatprep.subr.mxu0 0.0
        %3992 = vmatpush2.msra.mxu0 0.0
        %3993 = vmatprep.subr.mxu0 0.0
        %3994 = vmatpush2.msra.mxu0 0.0
        %3995 = vmatprep.subr.mxu0 0.0
        %3996 = vmatpush2.msra.mxu0 0.0
        %3997 = vmatprep.subr.mxu0 0.0
        %3998 = vmatpush2.msra.mxu0 0.0
        %3999 = vmatprep.subr.mxu0 0.0
        %4000 = vmatpush2.msra.mxu0 0.0
        %4001 = vmatprep.subr.mxu0 0.0
        %4002 = vmatpush2.msra.mxu0 0.0
        %4003 = vmatprep.subr.mxu0 0.0
        %4004 = vmatpush2.msra.mxu0 0.0
        %4005 = vmatprep.subr.mxu0 0.0
        %4006 = vmatpush2.msra.mxu0 0.0
        %4007 = vmatprep.subr.mxu0 0.0
        %4008 = vmatpush2.msra.mxu0 0.0
        %4009 = vmatprep.subr.mxu0 0.0
        %4010 = vmatpush2.msra.mxu0 0.0
        %4011 = vmatprep.subr.mxu0 0.0
        %4012 = vmatpush2.msra.mxu0 0.0
        %4013 = vmatprep.subr.mxu0 0.0
        %4014 = vmatpush2.msra.mxu0 0.0
        %4015 = vmatprep.subr.mxu0 0.0
        %4016 = vmatpush2.msra.mxu0 0.0
        %4017 = vmatprep.mubr.f32.mxu0 0.0
        %v4018 = vand.u32 %v340, 4294901760
        %v4019 = vsub.f32 %v340, %v4018
        %v4020 = vand.u32 %v4019, 4294901760
        %4021 = vmatmul.mubr.f32.gmra.mxu0 %v4020
        %v4022 = vpop.f32.mrf.mxu0
        %v4023 = vadd.f32 %v3829, %v4022
        %v4024 = vpop.f32.mrf.mxu0
        %4025 = vmatprep.mubr.f32.mxu0 0.0
        %v4026 = vand.u32 %v341, 4294901760
        %v4027 = vsub.f32 %v341, %v4026
        %v4028 = vand.u32 %v4027, 4294901760
        %4029 = vmatmul.mubr.f32.gmra.mxu0 %v4028
        %v4030 = vpop.f32.mrf.mxu0
        %v4031 = vadd.f32 %v3836, %v4030
        %v4032 = vpop.f32.mrf.mxu0
        %4033 = vmatprep.mubr.f32.mxu0 0.0
        %v4034 = vand.u32 %v342, 4294901760
        %v4035 = vsub.f32 %v342, %v4034
        %v4036 = vand.u32 %v4035, 4294901760
        %4037 = vmatmul.mubr.f32.gmra.mxu0 %v4036
        %v4038 = vpop.f32.mrf.mxu0
        %v4039 = vadd.f32 %v3843, %v4038
        %v4040 = vpop.f32.mrf.mxu0
        %4041 = vmatprep.mubr.f32.mxu0 0.0
        %v4042 = vand.u32 %v343, 4294901760
        %v4043 = vsub.f32 %v343, %v4042
        %v4044 = vand.u32 %v4043, 4294901760
        %4045 = vmatmul.mubr.f32.gmra.mxu0 %v4044
        %v4046 = vpop.f32.mrf.mxu0
        %v4047 = vadd.f32 %v3850, %v4046
        %v4048 = vpop.f32.mrf.mxu0
        %4049 = vmatprep.mubr.f32.mxu0 0.0
        %v4050 = vand.u32 %v344, 4294901760
        %v4051 = vsub.f32 %v344, %v4050
        %v4052 = vand.u32 %v4051, 4294901760
        %4053 = vmatmul.mubr.f32.gmra.mxu0 %v4052
        %v4054 = vpop.f32.mrf.mxu0
        %v4055 = vadd.f32 %v3857, %v4054
        %v4056 = vpop.f32.mrf.mxu0
        %4057 = vmatprep.mubr.f32.mxu0 0.0
        %v4058 = vand.u32 %v345, 4294901760
        %v4059 = vsub.f32 %v345, %v4058
        %v4060 = vand.u32 %v4059, 4294901760
        %4061 = vmatmul.mubr.f32.gmra.mxu0 %v4060
        %v4062 = vpop.f32.mrf.mxu0
        %v4063 = vadd.f32 %v3864, %v4062
        %v4064 = vpop.f32.mrf.mxu0
        %4065 = vmatprep.mubr.f32.mxu0 0.0
        %v4066 = vand.u32 %v346, 4294901760
        %v4067 = vsub.f32 %v346, %v4066
        %v4068 = vand.u32 %v4067, 4294901760
        %4069 = vmatmul.mubr.f32.gmra.mxu0 %v4068
        %v4070 = vpop.f32.mrf.mxu0
        %v4071 = vadd.f32 %v3871, %v4070
        %v4072 = vpop.f32.mrf.mxu0
        %4073 = vmatprep.mubr.f32.mxu0 0.0
        %v4074 = vand.u32 %v347, 4294901760
        %v4075 = vsub.f32 %v347, %v4074
        %v4076 = vand.u32 %v4075, 4294901760
        %4077 = vmatmul.mubr.f32.gmra.mxu0 %v4076
        %v4078 = vpop.f32.mrf.mxu0
        %v4079 = vadd.f32 %v3878, %v4078
        %v4080 = vpop.f32.mrf.mxu0
        %4081 = vmatprep.mubr.f32.mxu0 0.0
        %v4082 = vand.u32 %v348, 4294901760
        %v4083 = vsub.f32 %v348, %v4082
        %v4084 = vand.u32 %v4083, 4294901760
        %4085 = vmatmul.mubr.f32.gmra.mxu0 %v4084
        %v4086 = vpop.f32.mrf.mxu0
        %v4087 = vadd.f32 %v3885, %v4086
        %v4088 = vpop.f32.mrf.mxu0
        %4089 = vmatprep.mubr.f32.mxu0 0.0
        %v4090 = vand.u32 %v349, 4294901760
        %v4091 = vsub.f32 %v349, %v4090
        %v4092 = vand.u32 %v4091, 4294901760
        %4093 = vmatmul.mubr.f32.gmra.mxu0 %v4092
        %v4094 = vpop.f32.mrf.mxu0
        %v4095 = vadd.f32 %v3892, %v4094
        %v4096 = vpop.f32.mrf.mxu0
        %4097 = vmatprep.mubr.f32.mxu0 0.0
        %v4098 = vand.u32 %v350, 4294901760
        %v4099 = vsub.f32 %v350, %v4098
        %v4100 = vand.u32 %v4099, 4294901760
        %4101 = vmatmul.mubr.f32.gmra.mxu0 %v4100
        %v4102 = vpop.f32.mrf.mxu0
        %v4103 = vadd.f32 %v3899, %v4102
        %v4104 = vpop.f32.mrf.mxu0
        %4105 = vmatprep.mubr.f32.mxu0 0.0
        %v4106 = vand.u32 %v351, 4294901760
        %v4107 = vsub.f32 %v351, %v4106
        %v4108 = vand.u32 %v4107, 4294901760
        %4109 = vmatmul.mubr.f32.gmra.mxu0 %v4108
        %v4110 = vpop.f32.mrf.mxu0
        %v4111 = vadd.f32 %v3906, %v4110
        %v4112 = vpop.f32.mrf.mxu0
        %4113 = vmatprep.mubr.f32.mxu0 0.0
        %v4114 = vand.u32 %v352, 4294901760
        %v4115 = vsub.f32 %v352, %v4114
        %v4116 = vand.u32 %v4115, 4294901760
        %4117 = vmatmul.mubr.f32.gmra.mxu0 %v4116
        %v4118 = vpop.f32.mrf.mxu0
        %v4119 = vadd.f32 %v3913, %v4118
        %v4120 = vpop.f32.mrf.mxu0
        %4121 = vmatprep.mubr.f32.mxu0 0.0
        %v4122 = vand.u32 %v353, 4294901760
        %v4123 = vsub.f32 %v353, %v4122
        %v4124 = vand.u32 %v4123, 4294901760
        %4125 = vmatmul.mubr.f32.gmra.mxu0 %v4124
        %v4126 = vpop.f32.mrf.mxu0
        %v4127 = vadd.f32 %v3920, %v4126
        %v4128 = vpop.f32.mrf.mxu0
        %4129 = vmatprep.mubr.f32.mxu0 0.0
        %v4130 = vand.u32 %v354, 4294901760
        %v4131 = vsub.f32 %v354, %v4130
        %v4132 = vand.u32 %v4131, 4294901760
        %4133 = vmatmul.mubr.f32.gmra.mxu0 %v4132
        %v4134 = vpop.f32.mrf.mxu0
        %v4135 = vadd.f32 %v3927, %v4134
        %v4136 = vpop.f32.mrf.mxu0
        %4137 = vmatprep.mubr.f32.mxu0 0.0
        %v4138 = vand.u32 %v355, 4294901760
        %v4139 = vsub.f32 %v355, %v4138
        %v4140 = vand.u32 %v4139, 4294901760
        %4141 = vmatmul.mubr.f32.gmra.mxu0 %v4140
        %v4142 = vpop.f32.mrf.mxu0
        %v4143 = vadd.f32 %v3934, %v4142
        %v4144 = vpop.f32.mrf.mxu0
        %4145 = vdwg.mxu0
        %4146 = vmatprep.subr.mxu0 0.0
        %v4147 = vand.u32 %v3243, 4294901760
        %v4148 = vsub.f32 %v3243, %v4147
        %v4149 = vand.u32 %v4148, 4294901760
        %4150 = vmatpush1.msra.mxu0 %v4149
        %4151 = vmatprep.subr.mxu0 0.0
        %v4152 = vand.u32 %v3237, 4294901760
        %v4153 = vsub.f32 %v3237, %v4152
        %v4154 = vand.u32 %v4153, 4294901760
        %4155 = vmatpush1.msra.mxu0 %v4154
        %4156 = vmatprep.subr.mxu0 0.0
        %v4157 = vand.u32 %v3231, 4294901760
        %v4158 = vsub.f32 %v3231, %v4157
        %v4159 = vand.u32 %v4158, 4294901760
        %4160 = vmatpush1.msra.mxu0 %v4159
        %4161 = vmatprep.subr.mxu0 0.0
        %v4162 = vand.u32 %v3225, 4294901760
        %v4163 = vsub.f32 %v3225, %v4162
        %v4164 = vand.u32 %v4163, 4294901760
        %4165 = vmatpush1.msra.mxu0 %v4164
        %4166 = vmatprep.subr.mxu0 0.0
        %v4167 = vand.u32 %v3219, 4294901760
        %v4168 = vsub.f32 %v3219, %v4167
        %v4169 = vand.u32 %v4168, 4294901760
        %4170 = vmatpush1.msra.mxu0 %v4169
        %4171 = vmatprep.subr.mxu0 0.0
        %v4172 = vand.u32 %v3213, 4294901760
        %v4173 = vsub.f32 %v3213, %v4172
        %v4174 = vand.u32 %v4173, 4294901760
        %4175 = vmatpush1.msra.mxu0 %v4174
        %4176 = vmatprep.subr.mxu0 0.0
        %v4177 = vand.u32 %v3207, 4294901760
        %v4178 = vsub.f32 %v3207, %v4177
        %v4179 = vand.u32 %v4178, 4294901760
        %4180 = vmatpush1.msra.mxu0 %v4179
        %4181 = vmatprep.subr.mxu0 0.0
        %v4182 = vand.u32 %v3201, 4294901760
        %v4183 = vsub.f32 %v3201, %v4182
        %v4184 = vand.u32 %v4183, 4294901760
        %4185 = vmatpush1.msra.mxu0 %v4184
        %4186 = vmatprep.subr.mxu0 0.0
        %v4187 = vand.u32 %v3195, 4294901760
        %v4188 = vsub.f32 %v3195, %v4187
        %v4189 = vand.u32 %v4188, 4294901760
        %4190 = vmatpush1.msra.mxu0 %v4189
        %4191 = vmatprep.subr.mxu0 0.0
        %v4192 = vand.u32 %v3189, 4294901760
        %v4193 = vsub.f32 %v3189, %v4192
        %v4194 = vand.u32 %v4193, 4294901760
        %4195 = vmatpush1.msra.mxu0 %v4194
        %4196 = vmatprep.subr.mxu0 0.0
        %v4197 = vand.u32 %v3183, 4294901760
        %v4198 = vsub.f32 %v3183, %v4197
        %v4199 = vand.u32 %v4198, 4294901760
        %4200 = vmatpush1.msra.mxu0 %v4199
        %4201 = vmatprep.subr.mxu0 0.0
        %v4202 = vand.u32 %v3177, 4294901760
        %v4203 = vsub.f32 %v3177, %v4202
        %v4204 = vand.u32 %v4203, 4294901760
        %4205 = vmatpush1.msra.mxu0 %v4204
        %4206 = vmatprep.subr.mxu0 0.0
        %v4207 = vand.u32 %v3171, 4294901760
        %v4208 = vsub.f32 %v3171, %v4207
        %v4209 = vand.u32 %v4208, 4294901760
        %4210 = vmatpush1.msra.mxu0 %v4209
        %4211 = vmatprep.subr.mxu0 0.0
        %v4212 = vand.u32 %v3165, 4294901760
        %v4213 = vsub.f32 %v3165, %v4212
        %v4214 = vand.u32 %v4213, 4294901760
        %4215 = vmatpush1.msra.mxu0 %v4214
        %4216 = vmatprep.subr.mxu0 0.0
        %v4217 = vand.u32 %v3159, 4294901760
        %v4218 = vsub.f32 %v3159, %v4217
        %v4219 = vand.u32 %v4218, 4294901760
        %4220 = vmatpush1.msra.mxu0 %v4219
        %4221 = vmatprep.subr.mxu0 0.0
        %v4222 = vand.u32 %v3153, 4294901760
        %v4223 = vsub.f32 %v3153, %v4222
        %v4224 = vand.u32 %v4223, 4294901760
        %4225 = vmatpush1.msra.mxu0 %v4224
        %4226 = vmatprep.subr.mxu0 0.0
        %4227 = vmatpush2.msra.mxu0 0.0
        %4228 = vmatprep.subr.mxu0 0.0
        %4229 = vmatpush2.msra.mxu0 0.0
        %4230 = vmatprep.subr.mxu0 0.0
        %4231 = vmatpush2.msra.mxu0 0.0
        %4232 = vmatprep.subr.mxu0 0.0
        %4233 = vmatpush2.msra.mxu0 0.0
        %4234 = vmatprep.subr.mxu0 0.0
        %4235 = vmatpush2.msra.mxu0 0.0
        %4236 = vmatprep.subr.mxu0 0.0
        %4237 = vmatpush2.msra.mxu0 0.0
        %4238 = vmatprep.subr.mxu0 0.0
        %4239 = vmatpush2.msra.mxu0 0.0
        %4240 = vmatprep.subr.mxu0 0.0
        %4241 = vmatpush2.msra.mxu0 0.0
        %4242 = vmatprep.subr.mxu0 0.0
        %4243 = vmatpush2.msra.mxu0 0.0
        %4244 = vmatprep.subr.mxu0 0.0
        %4245 = vmatpush2.msra.mxu0 0.0
        %4246 = vmatprep.subr.mxu0 0.0
        %4247 = vmatpush2.msra.mxu0 0.0
        %4248 = vmatprep.subr.mxu0 0.0
        %4249 = vmatpush2.msra.mxu0 0.0
        %4250 = vmatprep.subr.mxu0 0.0
        %4251 = vmatpush2.msra.mxu0 0.0
        %4252 = vmatprep.subr.mxu0 0.0
        %4253 = vmatpush2.msra.mxu0 0.0
        %4254 = vmatprep.subr.mxu0 0.0
        %4255 = vmatpush2.msra.mxu0 0.0
        %4256 = vmatprep.subr.mxu0 0.0
        %4257 = vmatpush2.msra.mxu0 0.0
        %4258 = vmatprep.mubr.f32.mxu0 0.0
        %v4259 = vand.u32 %v340, 4294901760
        %4260 = vmatmul.mubr.f32.gmra.mxu0 %v4259
        %v4261 = vpop.f32.mrf.mxu0
        %v4262 = vadd.f32 %v4023, %v4261
        %v4263 = vpop.f32.mrf.mxu0
        %4264 = vmatprep.mubr.f32.mxu0 0.0
        %v4265 = vand.u32 %v341, 4294901760
        %4266 = vmatmul.mubr.f32.gmra.mxu0 %v4265
        %v4267 = vpop.f32.mrf.mxu0
        %v4268 = vadd.f32 %v4031, %v4267
        %v4269 = vpop.f32.mrf.mxu0
        %4270 = vmatprep.mubr.f32.mxu0 0.0
        %v4271 = vand.u32 %v342, 4294901760
        %4272 = vmatmul.mubr.f32.gmra.mxu0 %v4271
        %v4273 = vpop.f32.mrf.mxu0
        %v4274 = vadd.f32 %v4039, %v4273
        %v4275 = vpop.f32.mrf.mxu0
        %4276 = vmatprep.mubr.f32.mxu0 0.0
        %v4277 = vand.u32 %v343, 4294901760
        %4278 = vmatmul.mubr.f32.gmra.mxu0 %v4277
        %v4279 = vpop.f32.mrf.mxu0
        %v4280 = vadd.f32 %v4047, %v4279
        %v4281 = vpop.f32.mrf.mxu0
        %4282 = vmatprep.mubr.f32.mxu0 0.0
        %v4283 = vand.u32 %v344, 4294901760
        %4284 = vmatmul.mubr.f32.gmra.mxu0 %v4283
        %v4285 = vpop.f32.mrf.mxu0
        %v4286 = vadd.f32 %v4055, %v4285
        %v4287 = vpop.f32.mrf.mxu0
        %4288 = vmatprep.mubr.f32.mxu0 0.0
        %v4289 = vand.u32 %v345, 4294901760
        %4290 = vmatmul.mubr.f32.gmra.mxu0 %v4289
        %v4291 = vpop.f32.mrf.mxu0
        %v4292 = vadd.f32 %v4063, %v4291
        %v4293 = vpop.f32.mrf.mxu0
        %4294 = vmatprep.mubr.f32.mxu0 0.0
        %v4295 = vand.u32 %v346, 4294901760
        %4296 = vmatmul.mubr.f32.gmra.mxu0 %v4295
        %v4297 = vpop.f32.mrf.mxu0
        %v4298 = vadd.f32 %v4071, %v4297
        %v4299 = vpop.f32.mrf.mxu0
        %4300 = vmatprep.mubr.f32.mxu0 0.0
        %v4301 = vand.u32 %v347, 4294901760
        %4302 = vmatmul.mubr.f32.gmra.mxu0 %v4301
        %v4303 = vpop.f32.mrf.mxu0
        %v4304 = vadd.f32 %v4079, %v4303
        %v4305 = vpop.f32.mrf.mxu0
        %4306 = vmatprep.mubr.f32.mxu0 0.0
        %v4307 = vand.u32 %v348, 4294901760
        %4308 = vmatmul.mubr.f32.gmra.mxu0 %v4307
        %v4309 = vpop.f32.mrf.mxu0
        %v4310 = vadd.f32 %v4087, %v4309
        %v4311 = vpop.f32.mrf.mxu0
        %4312 = vmatprep.mubr.f32.mxu0 0.0
        %v4313 = vand.u32 %v349, 4294901760
        %4314 = vmatmul.mubr.f32.gmra.mxu0 %v4313
        %v4315 = vpop.f32.mrf.mxu0
        %v4316 = vadd.f32 %v4095, %v4315
        %v4317 = vpop.f32.mrf.mxu0
        %4318 = vmatprep.mubr.f32.mxu0 0.0
        %v4319 = vand.u32 %v350, 4294901760
        %4320 = vmatmul.mubr.f32.gmra.mxu0 %v4319
        %v4321 = vpop.f32.mrf.mxu0
        %v4322 = vadd.f32 %v4103, %v4321
        %v4323 = vpop.f32.mrf.mxu0
        %4324 = vmatprep.mubr.f32.mxu0 0.0
        %v4325 = vand.u32 %v351, 4294901760
        %4326 = vmatmul.mubr.f32.gmra.mxu0 %v4325
        %v4327 = vpop.f32.mrf.mxu0
        %v4328 = vadd.f32 %v4111, %v4327
        %v4329 = vpop.f32.mrf.mxu0
        %4330 = vmatprep.mubr.f32.mxu0 0.0
        %v4331 = vand.u32 %v352, 4294901760
        %4332 = vmatmul.mubr.f32.gmra.mxu0 %v4331
        %v4333 = vpop.f32.mrf.mxu0
        %v4334 = vadd.f32 %v4119, %v4333
        %v4335 = vpop.f32.mrf.mxu0
        %4336 = vmatprep.mubr.f32.mxu0 0.0
        %v4337 = vand.u32 %v353, 4294901760
        %4338 = vmatmul.mubr.f32.gmra.mxu0 %v4337
        %v4339 = vpop.f32.mrf.mxu0
        %v4340 = vadd.f32 %v4127, %v4339
        %v4341 = vpop.f32.mrf.mxu0
        %4342 = vmatprep.mubr.f32.mxu0 0.0
        %v4343 = vand.u32 %v354, 4294901760
        %4344 = vmatmul.mubr.f32.gmra.mxu0 %v4343
        %v4345 = vpop.f32.mrf.mxu0
        %v4346 = vadd.f32 %v4135, %v4345
        %v4347 = vpop.f32.mrf.mxu0
        %4348 = vmatprep.mubr.f32.mxu0 0.0
        %v4349 = vand.u32 %v355, 4294901760
        %4350 = vmatmul.mubr.f32.gmra.mxu0 %v4349
        %v4351 = vpop.f32.mrf.mxu0
        %v4352 = vadd.f32 %v4143, %v4351
        %v4353 = vpop.f32.mrf.mxu0
        %4354 = vdwg.mxu0
        %4355 = vmatprep.subr.mxu0 0.0
        %v4356 = vand.u32 %v3243, 4294901760
        %4357 = vmatpush1.msra.mxu0 %v4356
        %4358 = vmatprep.subr.mxu0 0.0
        %v4359 = vand.u32 %v3237, 4294901760
        %4360 = vmatpush1.msra.mxu0 %v4359
        %4361 = vmatprep.subr.mxu0 0.0
        %v4362 = vand.u32 %v3231, 4294901760
        %4363 = vmatpush1.msra.mxu0 %v4362
        %4364 = vmatprep.subr.mxu0 0.0
        %v4365 = vand.u32 %v3225, 4294901760
        %4366 = vmatpush1.msra.mxu0 %v4365
        %4367 = vmatprep.subr.mxu0 0.0
        %v4368 = vand.u32 %v3219, 4294901760
        %4369 = vmatpush1.msra.mxu0 %v4368
        %4370 = vmatprep.subr.mxu0 0.0
        %v4371 = vand.u32 %v3213, 4294901760
        %4372 = vmatpush1.msra.mxu0 %v4371
        %4373 = vmatprep.subr.mxu0 0.0
        %v4374 = vand.u32 %v3207, 4294901760
        %4375 = vmatpush1.msra.mxu0 %v4374
        %4376 = vmatprep.subr.mxu0 0.0
        %v4377 = vand.u32 %v3201, 4294901760
        %4378 = vmatpush1.msra.mxu0 %v4377
        %4379 = vmatprep.subr.mxu0 0.0
        %v4380 = vand.u32 %v3195, 4294901760
        %4381 = vmatpush1.msra.mxu0 %v4380
        %4382 = vmatprep.subr.mxu0 0.0
        %v4383 = vand.u32 %v3189, 4294901760
        %4384 = vmatpush1.msra.mxu0 %v4383
        %4385 = vmatprep.subr.mxu0 0.0
        %v4386 = vand.u32 %v3183, 4294901760
        %4387 = vmatpush1.msra.mxu0 %v4386
        %4388 = vmatprep.subr.mxu0 0.0
        %v4389 = vand.u32 %v3177, 4294901760
        %4390 = vmatpush1.msra.mxu0 %v4389
        %4391 = vmatprep.subr.mxu0 0.0
        %v4392 = vand.u32 %v3171, 4294901760
        %4393 = vmatpush1.msra.mxu0 %v4392
        %4394 = vmatprep.subr.mxu0 0.0
        %v4395 = vand.u32 %v3165, 4294901760
        %4396 = vmatpush1.msra.mxu0 %v4395
        %4397 = vmatprep.subr.mxu0 0.0
        %v4398 = vand.u32 %v3159, 4294901760
        %4399 = vmatpush1.msra.mxu0 %v4398
        %4400 = vmatprep.subr.mxu0 0.0
        %v4401 = vand.u32 %v3153, 4294901760
        %4402 = vmatpush1.msra.mxu0 %v4401
        %4403 = vmatprep.subr.mxu0 0.0
        %4404 = vmatpush2.msra.mxu0 0.0
        %4405 = vmatprep.subr.mxu0 0.0
        %4406 = vmatpush2.msra.mxu0 0.0
        %4407 = vmatprep.subr.mxu0 0.0
        %4408 = vmatpush2.msra.mxu0 0.0
        %4409 = vmatprep.subr.mxu0 0.0
        %4410 = vmatpush2.msra.mxu0 0.0
        %4411 = vmatprep.subr.mxu0 0.0
        %4412 = vmatpush2.msra.mxu0 0.0
        %4413 = vmatprep.subr.mxu0 0.0
        %4414 = vmatpush2.msra.mxu0 0.0
        %4415 = vmatprep.subr.mxu0 0.0
        %4416 = vmatpush2.msra.mxu0 0.0
        %4417 = vmatprep.subr.mxu0 0.0
        %4418 = vmatpush2.msra.mxu0 0.0
        %4419 = vmatprep.subr.mxu0 0.0
        %4420 = vmatpush2.msra.mxu0 0.0
        %4421 = vmatprep.subr.mxu0 0.0
        %4422 = vmatpush2.msra.mxu0 0.0
        %4423 = vmatprep.subr.mxu0 0.0
        %4424 = vmatpush2.msra.mxu0 0.0
        %4425 = vmatprep.subr.mxu0 0.0
        %4426 = vmatpush2.msra.mxu0 0.0
        %4427 = vmatprep.subr.mxu0 0.0
        %4428 = vmatpush2.msra.mxu0 0.0
        %4429 = vmatprep.subr.mxu0 0.0
        %4430 = vmatpush2.msra.mxu0 0.0
        %4431 = vmatprep.subr.mxu0 0.0
        %4432 = vmatpush2.msra.mxu0 0.0
        %4433 = vmatprep.subr.mxu0 0.0
        %4434 = vmatpush2.msra.mxu0 0.0
        %4435 = vmatprep.mubr.f32.mxu0 0.0
        %v4436 = vand.u32 %v340, 4294901760
        %4437 = vmatmul.mubr.f32.gmra.mxu0 %v4436
        %v4438 = vpop.f32.mrf.mxu0
        %v4439 = vadd.f32 %v4262, %v4438
        %v4440 = vpop.f32.mrf.mxu0
        %4441 = vmatprep.mubr.f32.mxu0 0.0
        %v4442 = vand.u32 %v341, 4294901760
        %4443 = vmatmul.mubr.f32.gmra.mxu0 %v4442
        %v4444 = vpop.f32.mrf.mxu0
        %v4445 = vadd.f32 %v4268, %v4444
        %v4446 = vpop.f32.mrf.mxu0
        %4447 = vmatprep.mubr.f32.mxu0 0.0
        %v4448 = vand.u32 %v342, 4294901760
        %4449 = vmatmul.mubr.f32.gmra.mxu0 %v4448
        %v4450 = vpop.f32.mrf.mxu0
        %v4451 = vadd.f32 %v4274, %v4450
        %v4452 = vpop.f32.mrf.mxu0
        %4453 = vmatprep.mubr.f32.mxu0 0.0
        %v4454 = vand.u32 %v343, 4294901760
        %4455 = vmatmul.mubr.f32.gmra.mxu0 %v4454
        %v4456 = vpop.f32.mrf.mxu0
        %v4457 = vadd.f32 %v4280, %v4456
        %v4458 = vpop.f32.mrf.mxu0
        %4459 = vmatprep.mubr.f32.mxu0 0.0
        %v4460 = vand.u32 %v344, 4294901760
        %4461 = vmatmul.mubr.f32.gmra.mxu0 %v4460
        %v4462 = vpop.f32.mrf.mxu0
        %v4463 = vadd.f32 %v4286, %v4462
        %v4464 = vpop.f32.mrf.mxu0
        %4465 = vmatprep.mubr.f32.mxu0 0.0
        %v4466 = vand.u32 %v345, 4294901760
        %4467 = vmatmul.mubr.f32.gmra.mxu0 %v4466
        %v4468 = vpop.f32.mrf.mxu0
        %v4469 = vadd.f32 %v4292, %v4468
        %v4470 = vpop.f32.mrf.mxu0
        %4471 = vmatprep.mubr.f32.mxu0 0.0
        %v4472 = vand.u32 %v346, 4294901760
        %4473 = vmatmul.mubr.f32.gmra.mxu0 %v4472
        %v4474 = vpop.f32.mrf.mxu0
        %v4475 = vadd.f32 %v4298, %v4474
        %v4476 = vpop.f32.mrf.mxu0
        %4477 = vmatprep.mubr.f32.mxu0 0.0
        %v4478 = vand.u32 %v347, 4294901760
        %4479 = vmatmul.mubr.f32.gmra.mxu0 %v4478
        %v4480 = vpop.f32.mrf.mxu0
        %v4481 = vadd.f32 %v4304, %v4480
        %v4482 = vpop.f32.mrf.mxu0
        %4483 = vmatprep.mubr.f32.mxu0 0.0
        %v4484 = vand.u32 %v348, 4294901760
        %4485 = vmatmul.mubr.f32.gmra.mxu0 %v4484
        %v4486 = vpop.f32.mrf.mxu0
        %v4487 = vadd.f32 %v4310, %v4486
        %v4488 = vpop.f32.mrf.mxu0
        %4489 = vmatprep.mubr.f32.mxu0 0.0
        %v4490 = vand.u32 %v349, 4294901760
        %4491 = vmatmul.mubr.f32.gmra.mxu0 %v4490
        %v4492 = vpop.f32.mrf.mxu0
        %v4493 = vadd.f32 %v4316, %v4492
        %v4494 = vpop.f32.mrf.mxu0
        %4495 = vmatprep.mubr.f32.mxu0 0.0
        %v4496 = vand.u32 %v350, 4294901760
        %4497 = vmatmul.mubr.f32.gmra.mxu0 %v4496
        %v4498 = vpop.f32.mrf.mxu0
        %v4499 = vadd.f32 %v4322, %v4498
        %v4500 = vpop.f32.mrf.mxu0
        %4501 = vmatprep.mubr.f32.mxu0 0.0
        %v4502 = vand.u32 %v351, 4294901760
        %4503 = vmatmul.mubr.f32.gmra.mxu0 %v4502
        %v4504 = vpop.f32.mrf.mxu0
        %v4505 = vadd.f32 %v4328, %v4504
        %v4506 = vpop.f32.mrf.mxu0
        %4507 = vmatprep.mubr.f32.mxu0 0.0
        %v4508 = vand.u32 %v352, 4294901760
        %4509 = vmatmul.mubr.f32.gmra.mxu0 %v4508
        %v4510 = vpop.f32.mrf.mxu0
        %v4511 = vadd.f32 %v4334, %v4510
        %v4512 = vpop.f32.mrf.mxu0
        %4513 = vmatprep.mubr.f32.mxu0 0.0
        %v4514 = vand.u32 %v353, 4294901760
        %4515 = vmatmul.mubr.f32.gmra.mxu0 %v4514
        %v4516 = vpop.f32.mrf.mxu0
        %v4517 = vadd.f32 %v4340, %v4516
        %v4518 = vpop.f32.mrf.mxu0
        %4519 = vmatprep.mubr.f32.mxu0 0.0
        %v4520 = vand.u32 %v354, 4294901760
        %4521 = vmatmul.mubr.f32.gmra.mxu0 %v4520
        %v4522 = vpop.f32.mrf.mxu0
        %v4523 = vadd.f32 %v4346, %v4522
        %v4524 = vpop.f32.mrf.mxu0
        %4525 = vmatprep.mubr.f32.mxu0 0.0
        %v4526 = vand.u32 %v355, 4294901760
        %4527 = vmatmul.mubr.f32.gmra.mxu0 %v4526
        %v4528 = vpop.f32.mrf.mxu0
        %v4529 = vadd.f32 %v4352, %v4528
        %v4530 = vpop.f32.mrf.mxu0
        %4531 = vdwg.mxu0
        %v4532 = vmul.f32 %v4439, %v360
        %v4533 = vmul.f32 %v4445, %v361
        %v4534 = vmul.f32 %v4451, %v362
        %v4535 = vmul.f32 %v4457, %v363
        %v4536 = vmul.f32 %v4463, %v364
        %v4537 = vmul.f32 %v4469, %v365
        %v4538 = vmul.f32 %v4475, %v366
        %v4539 = vmul.f32 %v4481, %v367
        %v4540 = vmul.f32 %v4487, %v368
        %v4541 = vmul.f32 %v4493, %v369
        %v4542 = vmul.f32 %v4499, %v370
        %v4543 = vmul.f32 %v4505, %v371
        %v4544 = vmul.f32 %v4511, %v372
        %v4545 = vmul.f32 %v4517, %v373
        %v4546 = vmul.f32 %v4523, %v374
        %v4547 = vmul.f32 %v4529, %v375
        %4548 = vmatprep.subr.mxu0 0.0
        %4549 = vmatpush1.msra.mxu0 %v4547
        %4550 = vmatprep.subr.mxu0 0.0
        %4551 = vmatpush1.msra.mxu0 %v4546
        %4552 = vmatprep.subr.mxu0 0.0
        %4553 = vmatpush1.msra.mxu0 %v4545
        %4554 = vmatprep.subr.mxu0 0.0
        %4555 = vmatpush1.msra.mxu0 %v4544
        %4556 = vmatprep.subr.mxu0 0.0
        %4557 = vmatpush1.msra.mxu0 %v4543
        %4558 = vmatprep.subr.mxu0 0.0
        %4559 = vmatpush1.msra.mxu0 %v4542
        %4560 = vmatprep.subr.mxu0 0.0
        %4561 = vmatpush1.msra.mxu0 %v4541
        %4562 = vmatprep.subr.mxu0 0.0
        %4563 = vmatpush1.msra.mxu0 %v4540
        %4564 = vmatprep.subr.mxu0 0.0
        %4565 = vmatpush1.msra.mxu0 %v4539
        %4566 = vmatprep.subr.mxu0 0.0
        %4567 = vmatpush1.msra.mxu0 %v4538
        %4568 = vmatprep.subr.mxu0 0.0
        %4569 = vmatpush1.msra.mxu0 %v4537
        %4570 = vmatprep.subr.mxu0 0.0
        %4571 = vmatpush1.msra.mxu0 %v4536
        %4572 = vmatprep.subr.mxu0 0.0
        %4573 = vmatpush1.msra.mxu0 %v4535
        %4574 = vmatprep.subr.mxu0 0.0
        %4575 = vmatpush1.msra.mxu0 %v4534
        %4576 = vmatprep.subr.mxu0 0.0
        %4577 = vmatpush1.msra.mxu0 %v4533
        %4578 = vmatprep.subr.mxu0 0.0
        %4579 = vmatpush1.msra.mxu0 %v4532
        %4580 = vmatprep.subr.mxu0 0.0
        %4581 = vmatpush2.msra.mxu0 0.0
        %4582 = vmatprep.subr.mxu0 0.0
        %4583 = vmatpush2.msra.mxu0 0.0
        %4584 = vmatprep.subr.mxu0 0.0
        %4585 = vmatpush2.msra.mxu0 0.0
        %4586 = vmatprep.subr.mxu0 0.0
        %4587 = vmatpush2.msra.mxu0 0.0
        %4588 = vmatprep.subr.mxu0 0.0
        %4589 = vmatpush2.msra.mxu0 0.0
        %4590 = vmatprep.subr.mxu0 0.0
        %4591 = vmatpush2.msra.mxu0 0.0
        %4592 = vmatprep.subr.mxu0 0.0
        %4593 = vmatpush2.msra.mxu0 0.0
        %4594 = vmatprep.subr.mxu0 0.0
        %4595 = vmatpush2.msra.mxu0 0.0
        %4596 = vmatprep.subr.mxu0 0.0
        %4597 = vmatpush2.msra.mxu0 0.0
        %4598 = vmatprep.subr.mxu0 0.0
        %4599 = vmatpush2.msra.mxu0 0.0
        %4600 = vmatprep.subr.mxu0 0.0
        %4601 = vmatpush2.msra.mxu0 0.0
        %4602 = vmatprep.subr.mxu0 0.0
        %4603 = vmatpush2.msra.mxu0 0.0
        %4604 = vmatprep.subr.mxu0 0.0
        %4605 = vmatpush2.msra.mxu0 0.0
        %4606 = vmatprep.subr.mxu0 0.0
        %4607 = vmatpush2.msra.mxu0 0.0
        %4608 = vmatprep.subr.mxu0 0.0
        %4609 = vmatpush2.msra.mxu0 0.0
        %4610 = vmatprep.subr.mxu0 0.0
        %4611 = vmatpush2.msra.mxu0 0.0
        %4612 = vmatprep.mubr.f32.mxu0 0.0
        %4613 = vmatmul.mubr.f32.gmra.mxu0 %v323
        %v4614 = vpop.f32.mrf.mxu0
        %v4615 = vadd.f32 %v323, %v4614
        %v4616 = vpop.f32.mrf.mxu0
        %4617 = vdwg.mxu0
        %4618 = vst [vmem:[%s322] sm:$0x3] %v4615
        %s4619 = sand.u32 %s185, 1
        %s4620 = scalar_lea.sflag [#allocation4], %s4619
        %s4621 = sand.u32 %s185, 1
        %s4622 = smul.addr %s4621, 2
        %s4623 = scalar_lea.vmem [#allocation8], %s4622
        // Predicated region
        $region61: #{tpu_custom_call.1} parent=47 // pred_check
          %p4624 = pneg %p195
        $region62: #{tpu_custom_call.1} parent=47 // pred_check_branch
          %4626 = sbr.rel (%p4624) target = $region64
        $region63: #{tpu_custom_call.1} parent=47 // pred_region
          %s4628 = ssub.s32 32, 32
          %4629 = vsyncadd %s4620, %s4628
          %s4630 = smul.addr %s25, 32
          %s4631 = scalar_lea.hbm %s7, %s4630
          %s4633 = sshll.u32 %s4623, 4
          %s4634 = int_to_ptr.vmem [resolvable:$true] %s4633
          %4636 = dma.vmem_to_hbm [thread:$0]  %s4634, 32, %s4631, %s4620
        $region64: #{tpu_custom_call.1} parent=47 // pred_fallthru
          _
      $region48: #{tpu_custom_call.1} parent=5 // pred_fallthru
        _
      %p4637 = scmp.le.s32.totalorder 2, %s20
      // Predicated region
      $region65: #{tpu_custom_call.1} parent=5 // pred_check
        %p4638 = pneg %p4637
      $region66: #{tpu_custom_call.1} parent=5 // pred_check_branch
        %4640 = sbr.rel (%p4638) target = $region68
      $region67: #{tpu_custom_call.1} parent=5 // pred_region
        %s4641 = ssub.s32 %s20, 2
        // Predicated region
        $region69: #{tpu_custom_call.1} parent=67 // pred_check
          %p4642 = pneg %p201
        $region70: #{tpu_custom_call.1} parent=67 // pred_check_branch
          %4644 = sbr.rel (%p4642) target = $region72
        $region71: #{tpu_custom_call.1} parent=67 // pred_region
          %s4645 = sand.u32 %s186, 1
          %s4646 = scalar_lea.sflag [#allocation4], %s4645
          %s4647 = sand.u32 %s186, 1
          %s4648 = smul.addr %s4647, 2
          %s4649 = scalar_lea.vmem [#allocation8], %s4648
          %4650 = dma.done %s4646, 32
        $region72: #{tpu_custom_call.1} parent=67 // pred_fallthru
          _
      $region68: #{tpu_custom_call.1} parent=5 // pred_fallthru
        _
    $region6: #{tpu_custom_call.1} parent=1 // loop_footer
      %s24 = sadd.s32 1, %s20
    $region7: #{tpu_custom_call.1} parent=1 // loop_footer_branch
      %19 = sbr.rel target = $region3
    $region8: #{tpu_custom_call.1} parent=1 // loop_exit
      _
    %4651 = vsyncpa [#allocation3], 1
    %s4652 = scalar_lea.sflag [#allocation3], 1
    %4653 = vsyncpa %s4652, 1
    %4654 = vsyncpa [#allocation6], 1
    %4655 = vsyncpa [#allocation4], 1
    %s4656 = scalar_lea.sflag [#allocation4], 1
    %4657 = vsyncpa %s4656, 1

</llo_original>
